<compile_context>
chip_gen: v7x
topology: tpu7x:2x2x1
jax: 0.10.0
libtpu: 0.0.40
codegen_flags: <defaults>
</compile_context>

<pallas_src>
import functools

import jax
import jax.numpy as jnp
from jax.experimental import pallas as pl
from jax.experimental.pallas import tpu as pltpu

_BF16 = jnp.bfloat16
_F32 = jnp.float32


# ---------------------------------------------------------------------------
# Fused kernel: full LeNet5 forward for a tile of `bt` images.
#
# Activation layout: every conv/pool activation is carried as row-residue
# "planes" of shape (rows_per_image*bt, W*C) with plane row index
# = row_in_plane * bt + image and lane index = w*C + c.  A 5x5 stride-1 conv
# is then a matmul of a full plane against a banded lane matrix (row-taps
# concatenated along N) followed by shifted-slab adds, and a 2x2/2 average
# pool is a plane pair-sum (H direction) plus one matmul with a 0.25
# selection matrix (W direction).
# ---------------------------------------------------------------------------
def _lenet5_kernel(x_ref, w1_ref, b1_ref, pw1_ref, w2_ref, b2_ref, pw2_ref,
                   w3_ref, b3_ref, fw1_ref, fb1_ref, fw2_ref, fb2_ref,
                   o_ref, *, bt):
    dot = functools.partial(jnp.dot, preferred_element_type=_F32)

    # --- conv1 (1->6, k=5) + tanh: 4 MXU matmuls (taps stacked along N) -----
    acc1 = [b1_ref[...] for _ in range(4)]                # (1, 168) f32
    for src in range(4):
        y = dot(x_ref[0, src], w1_ref[...])               # (8*bt, 5*168) f32
        for s in range(4):
            k0 = (src - s) % 4
            for ki in (k0, k0 + 4):
                if ki > 4:
                    continue
                m = (s + ki) // 4
                acc1[s] = acc1[s] + y[m * bt:(m + 7) * bt,
                                      ki * 168:(ki + 1) * 168]
    z1 = [jnp.tanh(a).astype(_BF16) for a in acc1]        # 4 x (7*bt, 168)

    # --- avg_pool2d 2x2/2: H pair-sum + W 0.25-selection matmul -------------
    p1e = dot(z1[0] + z1[1], pw1_ref[...]).astype(_BF16)  # (7*bt, 84)
    p1o = dot(z1[2] + z1[3], pw1_ref[...]).astype(_BF16)

    # --- conv2 (6->16, k=5) + tanh: 2 MXU matmuls (taps stacked along N) ----
    ye = dot(p1e, w2_ref[...])                            # (7*bt, 5*160) f32
    yo = dot(p1o, w2_ref[...])
    acc_e = b2_ref[...]                                    # (1, 160) f32
    acc_o = b2_ref[...]
    for ki in range(5):
        m, c0 = ki // 2, ki * 160
        if ki % 2 == 0:
            acc_e = acc_e + ye[m * bt:(m + 5) * bt, c0:c0 + 160]
            acc_o = acc_o + yo[m * bt:(m + 5) * bt, c0:c0 + 160]
        else:
            acc_e = acc_e + yo[m * bt:(m + 5) * bt, c0:c0 + 160]
            acc_o = acc_o + ye[(m + 1) * bt:(m + 6) * bt, c0:c0 + 160]
    z2e = jnp.tanh(acc_e).astype(_BF16)                    # (5*bt, 160)
    z2o = jnp.tanh(acc_o).astype(_BF16)

    # --- avg_pool2d 2x2/2 ----------------------------------------------------
    p2 = dot(z2e + z2o, pw2_ref[...]).astype(_BF16)        # (5*bt, 80)

    # --- conv3 (16->120, k=5) + tanh -----------------------------------------
    acc3 = b3_ref[...]                                     # (1, 120) f32
    for ki in range(5):
        acc3 = acc3 + dot(p2[ki * bt:(ki + 1) * bt, :], w3_ref[ki])
    z3 = jnp.tanh(acc3).astype(_BF16)                      # (bt, 120)

    # --- fc1 (120->84) + tanh, fc2 (84->10, lane-padded to 128) --------------
    a1 = jnp.tanh(dot(z3, fw1_ref[...]) + fb1_ref[...]).astype(_BF16)
    logits = dot(a1, fw2_ref[...]) + fb2_ref[...]          # (bt, 128) f32
    o_ref[0] = logits.astype(o_ref.dtype)


# ---------------------------------------------------------------------------
# Weight preprocessing (done ONCE per parameter set, outside the jitted
# forward; total prepared weights ~0.4 MB in bf16).
# ---------------------------------------------------------------------------
def _banded_lane_matrix(w_ki, w_in):
    """Tap weights (Kw, Cin, Cout) for a fixed row tap -> (w_in*Cin, w_out*Cout)
    matrix M with M[w*Cin+c, j*Cout+o] = w_ki[w-j, c, o] for 0 <= w-j < Kw."""
    k, cin, cout = w_ki.shape
    w_out = w_in - k + 1
    r = jnp.arange(w_in * cin)
    col = jnp.arange(w_out * cout)
    wpos, c = r // cin, r % cin
    j, o = col // cout, col % cout
    kj = wpos[:, None] - j[None, :]
    valid = (kj >= 0) & (kj < k)
    vals = w_ki[jnp.clip(kj, 0, k - 1), c[:, None], o[None, :]]
    return jnp.where(valid, vals, 0.0).astype(_F32)


def _pool_lane_matrix(w_in, c):
    """(w_in*c, (w_in//2)*c) matrix averaging adjacent W positions (x0.25);
    the 0.25 also accounts for the H-direction pair-sum done by the caller."""
    w_out = w_in // 2
    r = jnp.arange(w_in * c)
    col = jnp.arange(w_out * c)
    rw, rc = r // c, r % c
    cw, cc = col // c, col % c
    sel = (rc[:, None] == cc[None, :]) & ((rw[:, None] // 2) == cw[None, :])
    return jnp.where(sel, 0.25, 0.0).astype(_F32)


def prepare_params(p):
    """Build the MXU-ready (mostly bf16) weight set.  Call once per params."""
    def stacked_n(w, w_in):
        return jnp.concatenate(
            [_banded_lane_matrix(w[ki], w_in) for ki in range(w.shape[0])],
            axis=1).astype(_BF16)

    def taps(w, w_in):
        return jnp.stack([_banded_lane_matrix(w[ki], w_in)
                          for ki in range(w.shape[0])]).astype(_BF16)

    fw2_pad = jnp.zeros((84, 128), _F32).at[:, :10].set(p["fw2"]).astype(_BF16)
    fb2_pad = jnp.zeros((1, 128), _F32).at[0, :10].set(p["fb2"])

    return (
        stacked_n(p["w1"], 32),                          # (32, 840)    bf16
        jnp.tile(p["b1"], 28)[None, :].astype(_F32),     # (1, 168)     f32
        _pool_lane_matrix(28, 6).astype(_BF16),          # (168, 84)    bf16
        stacked_n(p["w2"], 14),                          # (84, 800)    bf16
        jnp.tile(p["b2"], 10)[None, :].astype(_F32),     # (1, 160)     f32
        _pool_lane_matrix(10, 16).astype(_BF16),         # (160, 80)    bf16
        taps(p["w3"], 5),                                # (5, 80, 120) bf16
        p["b3"][None, :].astype(_F32),                   # (1, 120)     f32
        p["fw1"].astype(_BF16),                          # (120, 84)    bf16
        p["fb1"][None, :].astype(_F32),                  # (1, 84)      f32
        fw2_pad,                                         # (84, 128)    bf16
        fb2_pad,                                         # (1, 128)     f32
    )


def _resident_spec(a):
    nd = a.ndim
    return pl.BlockSpec(a.shape, lambda i, _nd=nd: (0,) * _nd)


# ---------------------------------------------------------------------------
# Public forward (NCHW input, matches torch LeNet5.forward semantics).
# ---------------------------------------------------------------------------
@functools.partial(jax.jit, static_argnums=(2, 3))
def _forward_impl(x_nchw, prep, bt, nb):
    b = x_nchw.shape[0]
    bp = bt * nb
    x = x_nchw[:, 0, :, :].astype(_BF16)                  # (B, 32, 32)
    if bp != b:
        x = jnp.concatenate([x, jnp.zeros((bp - b, 32, 32), _BF16)], axis=0)
    # (nb, bt, 8, 4, 32) -> (nb, 4 residues, 8*bt [row-major, image-minor], 32)
    xp = x.reshape(nb, bt, 8, 4, 32).transpose(0, 3, 2, 1, 4)
    xp = xp.reshape(nb, 4, 8 * bt, 32)

    out = pl.pallas_call(
        functools.partial(_lenet5_kernel, bt=bt),
        out_shape=jax.ShapeDtypeStruct((nb, bt, 128), _F32),
        grid=(nb,),
        in_specs=[pl.BlockSpec((1, 4, 8 * bt, 32), lambda i: (i, 0, 0, 0))]
                 + [_resident_spec(w) for w in prep],
        out_specs=pl.BlockSpec((1, bt, 128), lambda i: (i, 0, 0)),
        compiler_params=pltpu.CompilerParams(
            dimension_semantics=("parallel",),
            # >= v5e's 16 MiB default; intermediates at bt=128 are ~15-20 MB,
            # well under v7x's 64 MiB physical VMEM per TensorCore.
            vmem_limit_bytes=48 * 1024 * 1024,
            # Let XLA fuse the residue-plane reshape/transpose producer into
            # the kernel's input instead of materializing an extra HBM pass.
            allow_input_fusion=[True] + [False] * len(prep),
        ),
    )(xp, *prep)
    return out.reshape(bp, 128)[:b, :10]


def lenet5_forward(x_nchw, prepared, bt_max=128):
    b, c, h, w = x_nchw.shape
    assert (c, h, w) == (1, 32, 32), "classic LeNet5 expects 1x32x32 inputs"
    # >= 2 grid steps whenever possible so the parallel batch axis shards
    # across both TensorCores on v7x; keep bt a multiple of 8 (sublane align).
    bt = min(bt_max, max(8, -(-b // 2)))
    bt = -(-bt // 8) * 8
    nb = -(-b // bt)
    return _forward_impl(x_nchw, prepared, bt, nb)


# ---------------------------------------------------------------------------
# Parameters (deterministic init; shapes from the nn.Module __init__).
# conv weights stored as (K, K, Cin, Cout); linear weights as (in, out).
# ---------------------------------------------------------------------------
def init_params(key):
    ks = jax.random.split(key, 10)

    def u(k, shape, fan_in):
        lim = 1.0 / jnp.sqrt(float(fan_in))
        return jax.random.uniform(k, shape, _F32, -lim, lim)

    return {
        "w1": u(ks[0], (5, 5, 1, 6), 25), "b1": u(ks[1], (6,), 25),
        "w2": u(ks[2], (5, 5, 6, 16), 150), "b2": u(ks[3], (16,), 150),
        "w3": u(ks[4], (5, 5, 16, 120), 400), "b3": u(ks[5], (120,), 400),
        "fw1": u(ks[6], (120, 84), 120), "fb1": u(ks[7], (84,), 120),
        "fw2": u(ks[8], (84, 10), 84), "fb2": u(ks[9], (10,), 84),
    }


# ---------------------------------------------------------------------------
# Pure-JAX f32 reference (sanity check only).
# ---------------------------------------------------------------------------
def lenet5_reference(x_nchw, p):
    x = jnp.transpose(x_nchw, (0, 2, 3, 1)).astype(_F32)
    hi = jax.lax.Precision.HIGHEST

    def conv_tanh(v, w, bias):
        y = jax.lax.conv_general_dilated(
            v, w, (1, 1), "VALID",
            dimension_numbers=("NHWC", "HWIO", "NHWC"), precision=hi)
        return jnp.tanh(y + bias.reshape(1, 1, 1, -1))

    def pool(v):
        b, h, w, c = v.shape
        return v.reshape(b, h // 2, 2, w // 2, 2, c).mean(axis=(2, 4))

    y = pool(conv_tanh(x, p["w1"], p["b1"]))
    y = pool(conv_tanh(y, p["w2"], p["b2"]))
    y = conv_tanh(y, p["w3"], p["b3"]).reshape(x.shape[0], -1)
    y = jnp.tanh(jnp.dot(y, p["fw1"], precision=hi) + p["fb1"][None, :])
    return jnp.dot(y, p["fw2"], precision=hi) + p["fb2"][None, :]


if __name__ == "__main__":
    key = jax.random.PRNGKey(0)
    k_x, k_p = jax.random.split(key)
    # Classic LeNet5 geometry: 32x32 single-channel input (conv3 needs a 5x5 map).
    x = jax.random.normal(k_x, (2, 1, 32, 32), dtype=jnp.float32)
    params = init_params(k_p)

    prepared = prepare_params(params)          # hoisted: built once per params
    out = jax.block_until_ready(lenet5_forward(x, prepared))
    ref = jax.block_until_ready(lenet5_reference(x, params))

    assert out.shape == (2, 10), out.shape
    err = float(jnp.max(jnp.abs(out - ref)))
    # bf16 MXU operands (f32 accumulation): typical |err| vs the f32 reference
    # is ~1e-2 on O(0.3) logits; 5e-2 bounds the tail while catching real bugs.
    assert err < 5e-2, f"max |err| = {err}"
    print("KERNEL_OK")
</pallas_src>

<mosaic_0001>
module attributes {stable_mosaic.version = 11 : i64} {
  func.func @_lenet5_kernel(%arg0: i32, %arg1: memref<1x4x64x32xbf16, #tpu.memory_space<vmem>>, %arg2: memref<32x840xbf16, #tpu.memory_space<vmem>>, %arg3: memref<1x168xf32, #tpu.memory_space<vmem>>, %arg4: memref<168x84xbf16, #tpu.memory_space<vmem>>, %arg5: memref<84x800xbf16, #tpu.memory_space<vmem>>, %arg6: memref<1x160xf32, #tpu.memory_space<vmem>>, %arg7: memref<160x80xbf16, #tpu.memory_space<vmem>>, %arg8: memref<5x80x120xbf16, #tpu.memory_space<vmem>>, %arg9: memref<1x120xf32, #tpu.memory_space<vmem>>, %arg10: memref<120x84xbf16, #tpu.memory_space<vmem>>, %arg11: memref<1x84xf32, #tpu.memory_space<vmem>>, %arg12: memref<84x128xbf16, #tpu.memory_space<vmem>>, %arg13: memref<1x128xf32, #tpu.memory_space<vmem>>, %arg14: memref<1x8x128xf32, #tpu.memory_space<vmem>>) attributes {dimension_semantics = [#tpu.dimension_semantics<parallel>], iteration_bounds = array<i64: 1>, scalar_prefetch = 0 : i64, scratch_operands = 0 : i64, tpu.core_type = #tpu.core_type<tc>, window_params = [{transform_indices = @transform_0, window_bounds = array<i64: 1, 4, 64, 32>}, {pipeline_mode = #tpu.pipeline_mode<synchronous>, transform_indices = @transform_1, window_bounds = array<i64: 32, 840>}, {pipeline_mode = #tpu.pipeline_mode<synchronous>, transform_indices = @transform_2, window_bounds = array<i64: 1, 168>}, {pipeline_mode = #tpu.pipeline_mode<synchronous>, transform_indices = @transform_3, window_bounds = array<i64: 168, 84>}, {pipeline_mode = #tpu.pipeline_mode<synchronous>, transform_indices = @transform_4, window_bounds = array<i64: 84, 800>}, {pipeline_mode = #tpu.pipeline_mode<synchronous>, transform_indices = @transform_5, window_bounds = array<i64: 1, 160>}, {pipeline_mode = #tpu.pipeline_mode<synchronous>, transform_indices = @transform_6, window_bounds = array<i64: 160, 80>}, {pipeline_mode = #tpu.pipeline_mode<synchronous>, transform_indices = @transform_7, window_bounds = array<i64: 5, 80, 120>}, {pipeline_mode = #tpu.pipeline_mode<synchronous>, transform_indices = @transform_8, window_bounds = array<i64: 1, 120>}, {pipeline_mode = #tpu.pipeline_mode<synchronous>, transform_indices = @transform_9, window_bounds = array<i64: 120, 84>}, {pipeline_mode = #tpu.pipeline_mode<synchronous>, transform_indices = @transform_10, window_bounds = array<i64: 1, 84>}, {pipeline_mode = #tpu.pipeline_mode<synchronous>, transform_indices = @transform_11, window_bounds = array<i64: 84, 128>}, {pipeline_mode = #tpu.pipeline_mode<synchronous>, transform_indices = @transform_12, window_bounds = array<i64: 1, 128>}, {transform_indices = @transform_13, window_bounds = array<i64: 1, 8, 128>}]} {
    %c0 = arith.constant 0 : index
    %c0_0 = arith.constant 0 : index
    %0 = vector.load %arg3[%c0, %c0_0] : memref<1x168xf32, #tpu.memory_space<vmem>>, vector<1x168xf32>
    %c0_1 = arith.constant 0 : index
    %c0_2 = arith.constant 0 : index
    %1 = vector.load %arg3[%c0_1, %c0_2] : memref<1x168xf32, #tpu.memory_space<vmem>>, vector<1x168xf32>
    %c0_3 = arith.constant 0 : index
    %c0_4 = arith.constant 0 : index
    %2 = vector.load %arg3[%c0_3, %c0_4] : memref<1x168xf32, #tpu.memory_space<vmem>>, vector<1x168xf32>
    %c0_5 = arith.constant 0 : index
    %c0_6 = arith.constant 0 : index
    %3 = vector.load %arg3[%c0_5, %c0_6] : memref<1x168xf32, #tpu.memory_space<vmem>>, vector<1x168xf32>
    %c0_7 = arith.constant 0 : index
    %c0_8 = arith.constant 0 : index
    %c0_9 = arith.constant 0 : index
    %c0_10 = arith.constant 0 : index
    %4 = vector.load %arg1[%c0_7, %c0_8, %c0_9, %c0_10] : memref<1x4x64x32xbf16, #tpu.memory_space<vmem>>, vector<1x1x64x32xbf16>
    %5 = vector.shape_cast %4 : vector<1x1x64x32xbf16> to vector<64x32xbf16>
    %c0_11 = arith.constant 0 : index
    %c0_12 = arith.constant 0 : index
    %6 = vector.load %arg2[%c0_11, %c0_12] : memref<32x840xbf16, #tpu.memory_space<vmem>>, vector<32x840xbf16>
    %cst = arith.constant dense<0.000000e+00> : vector<64x840xf32>
    %7 = tpu.matmul %5, %6, %cst {dimension_numbers = #tpu.dot_dimension_numbers<[1], [0], [0], [1], [0, 0, 1, 1], [], []>} : vector<64x32xbf16>, vector<32x840xbf16>, vector<64x840xf32> -> vector<64x840xf32>
    %8 = vector.extract_strided_slice %7 {offsets = [0, 0], sizes = [56, 168], strides = [1, 1]} : vector<64x840xf32> to vector<56x168xf32>
    %9 = vector.broadcast %0 : vector<1x168xf32> to vector<56x168xf32>
    %10 = arith.addf %9, %8 : vector<56x168xf32>
    %11 = vector.extract_strided_slice %7 {offsets = [8, 672], sizes = [56, 168], strides = [1, 1]} : vector<64x840xf32> to vector<56x168xf32>
    %12 = arith.addf %10, %11 : vector<56x168xf32>
    %13 = vector.extract_strided_slice %7 {offsets = [8, 504], sizes = [56, 168], strides = [1, 1]} : vector<64x840xf32> to vector<56x168xf32>
    %14 = vector.broadcast %1 : vector<1x168xf32> to vector<56x168xf32>
    %15 = arith.addf %14, %13 : vector<56x168xf32>
    %16 = vector.extract_strided_slice %7 {offsets = [8, 336], sizes = [56, 168], strides = [1, 1]} : vector<64x840xf32> to vector<56x168xf32>
    %17 = vector.broadcast %2 : vector<1x168xf32> to vector<56x168xf32>
    %18 = arith.addf %17, %16 : vector<56x168xf32>
    %19 = vector.extract_strided_slice %7 {offsets = [8, 168], sizes = [56, 168], strides = [1, 1]} : vector<64x840xf32> to vector<56x168xf32>
    %20 = vector.broadcast %3 : vector<1x168xf32> to vector<56x168xf32>
    %21 = arith.addf %20, %19 : vector<56x168xf32>
    %c0_13 = arith.constant 0 : index
    %c1 = arith.constant 1 : index
    %c0_14 = arith.constant 0 : index
    %c0_15 = arith.constant 0 : index
    %22 = vector.load %arg1[%c0_13, %c1, %c0_14, %c0_15] : memref<1x4x64x32xbf16, #tpu.memory_space<vmem>>, vector<1x1x64x32xbf16>
    %23 = vector.shape_cast %22 : vector<1x1x64x32xbf16> to vector<64x32xbf16>
    %c0_16 = arith.constant 0 : index
    %c0_17 = arith.constant 0 : index
    %24 = vector.load %arg2[%c0_16, %c0_17] : memref<32x840xbf16, #tpu.memory_space<vmem>>, vector<32x840xbf16>
    %cst_18 = arith.constant dense<0.000000e+00> : vector<64x840xf32>
    %25 = tpu.matmul %23, %24, %cst_18 {dimension_numbers = #tpu.dot_dimension_numbers<[1], [0], [0], [1], [0, 0, 1, 1], [], []>} : vector<64x32xbf16>, vector<32x840xbf16>, vector<64x840xf32> -> vector<64x840xf32>
    %26 = vector.extract_strided_slice %25 {offsets = [0, 168], sizes = [56, 168], strides = [1, 1]} : vector<64x840xf32> to vector<56x168xf32>
    %27 = arith.addf %12, %26 : vector<56x168xf32>
    %28 = vector.extract_strided_slice %25 {offsets = [0, 0], sizes = [56, 168], strides = [1, 1]} : vector<64x840xf32> to vector<56x168xf32>
    %29 = arith.addf %15, %28 : vector<56x168xf32>
    %30 = vector.extract_strided_slice %25 {offsets = [8, 672], sizes = [56, 168], strides = [1, 1]} : vector<64x840xf32> to vector<56x168xf32>
    %31 = arith.addf %29, %30 : vector<56x168xf32>
    %32 = vector.extract_strided_slice %25 {offsets = [8, 504], sizes = [56, 168], strides = [1, 1]} : vector<64x840xf32> to vector<56x168xf32>
    %33 = arith.addf %18, %32 : vector<56x168xf32>
    %34 = vector.extract_strided_slice %25 {offsets = [8, 336], sizes = [56, 168], strides = [1, 1]} : vector<64x840xf32> to vector<56x168xf32>
    %35 = arith.addf %21, %34 : vector<56x168xf32>
    %c0_19 = arith.constant 0 : index
    %c2 = arith.constant 2 : index
    %c0_20 = arith.constant 0 : index
    %c0_21 = arith.constant 0 : index
    %36 = vector.load %arg1[%c0_19, %c2, %c0_20, %c0_21] : memref<1x4x64x32xbf16, #tpu.memory_space<vmem>>, vector<1x1x64x32xbf16>
    %37 = vector.shape_cast %36 : vector<1x1x64x32xbf16> to vector<64x32xbf16>
    %c0_22 = arith.constant 0 : index
    %c0_23 = arith.constant 0 : index
    %38 = vector.load %arg2[%c0_22, %c0_23] : memref<32x840xbf16, #tpu.memory_space<vmem>>, vector<32x840xbf16>
    %cst_24 = arith.constant dense<0.000000e+00> : vector<64x840xf32>
    %39 = tpu.matmul %37, %38, %cst_24 {dimension_numbers = #tpu.dot_dimension_numbers<[1], [0], [0], [1], [0, 0, 1, 1], [], []>} : vector<64x32xbf16>, vector<32x840xbf16>, vector<64x840xf32> -> vector<64x840xf32>
    %40 = vector.extract_strided_slice %39 {offsets = [0, 336], sizes = [56, 168], strides = [1, 1]} : vector<64x840xf32> to vector<56x168xf32>
    %41 = arith.addf %27, %40 : vector<56x168xf32>
    %42 = vector.extract_strided_slice %39 {offsets = [0, 168], sizes = [56, 168], strides = [1, 1]} : vector<64x840xf32> to vector<56x168xf32>
    %43 = arith.addf %31, %42 : vector<56x168xf32>
    %44 = vector.extract_strided_slice %39 {offsets = [0, 0], sizes = [56, 168], strides = [1, 1]} : vector<64x840xf32> to vector<56x168xf32>
    %45 = arith.addf %33, %44 : vector<56x168xf32>
    %46 = vector.extract_strided_slice %39 {offsets = [8, 672], sizes = [56, 168], strides = [1, 1]} : vector<64x840xf32> to vector<56x168xf32>
    %47 = arith.addf %45, %46 : vector<56x168xf32>
    %48 = vector.extract_strided_slice %39 {offsets = [8, 504], sizes = [56, 168], strides = [1, 1]} : vector<64x840xf32> to vector<56x168xf32>
    %49 = arith.addf %35, %48 : vector<56x168xf32>
    %c0_25 = arith.constant 0 : index
    %c3 = arith.constant 3 : index
    %c0_26 = arith.constant 0 : index
    %c0_27 = arith.constant 0 : index
    %50 = vector.load %arg1[%c0_25, %c3, %c0_26, %c0_27] : memref<1x4x64x32xbf16, #tpu.memory_space<vmem>>, vector<1x1x64x32xbf16>
    %51 = vector.shape_cast %50 : vector<1x1x64x32xbf16> to vector<64x32xbf16>
    %c0_28 = arith.constant 0 : index
    %c0_29 = arith.constant 0 : index
    %52 = vector.load %arg2[%c0_28, %c0_29] : memref<32x840xbf16, #tpu.memory_space<vmem>>, vector<32x840xbf16>
    %cst_30 = arith.constant dense<0.000000e+00> : vector<64x840xf32>
    %53 = tpu.matmul %51, %52, %cst_30 {dimension_numbers = #tpu.dot_dimension_numbers<[1], [0], [0], [1], [0, 0, 1, 1], [], []>} : vector<64x32xbf16>, vector<32x840xbf16>, vector<64x840xf32> -> vector<64x840xf32>
    %54 = vector.extract_strided_slice %53 {offsets = [0, 504], sizes = [56, 168], strides = [1, 1]} : vector<64x840xf32> to vector<56x168xf32>
    %55 = arith.addf %41, %54 : vector<56x168xf32>
    %56 = vector.extract_strided_slice %53 {offsets = [0, 336], sizes = [56, 168], strides = [1, 1]} : vector<64x840xf32> to vector<56x168xf32>
    %57 = arith.addf %43, %56 : vector<56x168xf32>
    %58 = vector.extract_strided_slice %53 {offsets = [0, 168], sizes = [56, 168], strides = [1, 1]} : vector<64x840xf32> to vector<56x168xf32>
    %59 = arith.addf %47, %58 : vector<56x168xf32>
    %60 = vector.extract_strided_slice %53 {offsets = [0, 0], sizes = [56, 168], strides = [1, 1]} : vector<64x840xf32> to vector<56x168xf32>
    %61 = arith.addf %49, %60 : vector<56x168xf32>
    %62 = vector.extract_strided_slice %53 {offsets = [8, 672], sizes = [56, 168], strides = [1, 1]} : vector<64x840xf32> to vector<56x168xf32>
    %63 = arith.addf %61, %62 : vector<56x168xf32>
    %64 = math.tanh %55 : vector<56x168xf32>
    %65 = arith.truncf %64 : vector<56x168xf32> to vector<56x168xbf16>
    %66 = math.tanh %57 : vector<56x168xf32>
    %67 = arith.truncf %66 : vector<56x168xf32> to vector<56x168xbf16>
    %68 = math.tanh %59 : vector<56x168xf32>
    %69 = arith.truncf %68 : vector<56x168xf32> to vector<56x168xbf16>
    %70 = math.tanh %63 : vector<56x168xf32>
    %71 = arith.truncf %70 : vector<56x168xf32> to vector<56x168xbf16>
    %72 = arith.addf %65, %67 : vector<56x168xbf16>
    %c0_31 = arith.constant 0 : index
    %c0_32 = arith.constant 0 : index
    %73 = vector.load %arg4[%c0_31, %c0_32] : memref<168x84xbf16, #tpu.memory_space<vmem>>, vector<168x84xbf16>
    %cst_33 = arith.constant dense<0.000000e+00> : vector<56x84xf32>
    %74 = tpu.matmul %72, %73, %cst_33 {dimension_numbers = #tpu.dot_dimension_numbers<[1], [0], [0], [1], [0, 0, 1, 1], [], []>} : vector<56x168xbf16>, vector<168x84xbf16>, vector<56x84xf32> -> vector<56x84xf32>
    %75 = arith.truncf %74 : vector<56x84xf32> to vector<56x84xbf16>
    %76 = arith.addf %69, %71 : vector<56x168xbf16>
    %c0_34 = arith.constant 0 : index
    %c0_35 = arith.constant 0 : index
    %77 = vector.load %arg4[%c0_34, %c0_35] : memref<168x84xbf16, #tpu.memory_space<vmem>>, vector<168x84xbf16>
    %cst_36 = arith.constant dense<0.000000e+00> : vector<56x84xf32>
    %78 = tpu.matmul %76, %77, %cst_36 {dimension_numbers = #tpu.dot_dimension_numbers<[1], [0], [0], [1], [0, 0, 1, 1], [], []>} : vector<56x168xbf16>, vector<168x84xbf16>, vector<56x84xf32> -> vector<56x84xf32>
    %79 = arith.truncf %78 : vector<56x84xf32> to vector<56x84xbf16>
    %c0_37 = arith.constant 0 : index
    %c0_38 = arith.constant 0 : index
    %80 = vector.load %arg5[%c0_37, %c0_38] : memref<84x800xbf16, #tpu.memory_space<vmem>>, vector<84x800xbf16>
    %cst_39 = arith.constant dense<0.000000e+00> : vector<56x800xf32>
    %81 = tpu.matmul %75, %80, %cst_39 {dimension_numbers = #tpu.dot_dimension_numbers<[1], [0], [0], [1], [0, 0, 1, 1], [], []>} : vector<56x84xbf16>, vector<84x800xbf16>, vector<56x800xf32> -> vector<56x800xf32>
    %c0_40 = arith.constant 0 : index
    %c0_41 = arith.constant 0 : index
    %82 = vector.load %arg5[%c0_40, %c0_41] : memref<84x800xbf16, #tpu.memory_space<vmem>>, vector<84x800xbf16>
    %cst_42 = arith.constant dense<0.000000e+00> : vector<56x800xf32>
    %83 = tpu.matmul %79, %82, %cst_42 {dimension_numbers = #tpu.dot_dimension_numbers<[1], [0], [0], [1], [0, 0, 1, 1], [], []>} : vector<56x84xbf16>, vector<84x800xbf16>, vector<56x800xf32> -> vector<56x800xf32>
    %c0_43 = arith.constant 0 : index
    %c0_44 = arith.constant 0 : index
    %84 = vector.load %arg6[%c0_43, %c0_44] : memref<1x160xf32, #tpu.memory_space<vmem>>, vector<1x160xf32>
    %c0_45 = arith.constant 0 : index
    %c0_46 = arith.constant 0 : index
    %85 = vector.load %arg6[%c0_45, %c0_46] : memref<1x160xf32, #tpu.memory_space<vmem>>, vector<1x160xf32>
    %86 = vector.extract_strided_slice %81 {offsets = [0, 0], sizes = [40, 160], strides = [1, 1]} : vector<56x800xf32> to vector<40x160xf32>
    %87 = vector.broadcast %84 : vector<1x160xf32> to vector<40x160xf32>
    %88 = arith.addf %87, %86 : vector<40x160xf32>
    %89 = vector.extract_strided_slice %83 {offsets = [0, 0], sizes = [40, 160], strides = [1, 1]} : vector<56x800xf32> to vector<40x160xf32>
    %90 = vector.broadcast %85 : vector<1x160xf32> to vector<40x160xf32>
    %91 = arith.addf %90, %89 : vector<40x160xf32>
    %92 = vector.extract_strided_slice %83 {offsets = [0, 160], sizes = [40, 160], strides = [1, 1]} : vector<56x800xf32> to vector<40x160xf32>
    %93 = arith.addf %88, %92 : vector<40x160xf32>
    %94 = vector.extract_strided_slice %81 {offsets = [8, 160], sizes = [40, 160], strides = [1, 1]} : vector<56x800xf32> to vector<40x160xf32>
    %95 = arith.addf %91, %94 : vector<40x160xf32>
    %96 = vector.extract_strided_slice %81 {offsets = [8, 320], sizes = [40, 160], strides = [1, 1]} : vector<56x800xf32> to vector<40x160xf32>
    %97 = arith.addf %93, %96 : vector<40x160xf32>
    %98 = vector.extract_strided_slice %83 {offsets = [8, 320], sizes = [40, 160], strides = [1, 1]} : vector<56x800xf32> to vector<40x160xf32>
    %99 = arith.addf %95, %98 : vector<40x160xf32>
    %100 = vector.extract_strided_slice %83 {offsets = [8, 480], sizes = [40, 160], strides = [1, 1]} : vector<56x800xf32> to vector<40x160xf32>
    %101 = arith.addf %97, %100 : vector<40x160xf32>
    %102 = vector.extract_strided_slice %81 {offsets = [16, 480], sizes = [40, 160], strides = [1, 1]} : vector<56x800xf32> to vector<40x160xf32>
    %103 = arith.addf %99, %102 : vector<40x160xf32>
    %104 = vector.extract_strided_slice %81 {offsets = [16, 640], sizes = [40, 160], strides = [1, 1]} : vector<56x800xf32> to vector<40x160xf32>
    %105 = arith.addf %101, %104 : vector<40x160xf32>
    %106 = vector.extract_strided_slice %83 {offsets = [16, 640], sizes = [40, 160], strides = [1, 1]} : vector<56x800xf32> to vector<40x160xf32>
    %107 = arith.addf %103, %106 : vector<40x160xf32>
    %108 = math.tanh %105 : vector<40x160xf32>
    %109 = arith.truncf %108 : vector<40x160xf32> to vector<40x160xbf16>
    %110 = math.tanh %107 : vector<40x160xf32>
    %111 = arith.truncf %110 : vector<40x160xf32> to vector<40x160xbf16>
    %112 = arith.addf %109, %111 : vector<40x160xbf16>
    %c0_47 = arith.constant 0 : index
    %c0_48 = arith.constant 0 : index
    %113 = vector.load %arg7[%c0_47, %c0_48] : memref<160x80xbf16, #tpu.memory_space<vmem>>, vector<160x80xbf16>
    %cst_49 = arith.constant dense<0.000000e+00> : vector<40x80xf32>
    %114 = tpu.matmul %112, %113, %cst_49 {dimension_numbers = #tpu.dot_dimension_numbers<[1], [0], [0], [1], [0, 0, 1, 1], [], []>} : vector<40x160xbf16>, vector<160x80xbf16>, vector<40x80xf32> -> vector<40x80xf32>
    %115 = arith.truncf %114 : vector<40x80xf32> to vector<40x80xbf16>
    %c0_50 = arith.constant 0 : index
    %c0_51 = arith.constant 0 : index
    %116 = vector.load %arg9[%c0_50, %c0_51] : memref<1x120xf32, #tpu.memory_space<vmem>>, vector<1x120xf32>
    %117 = vector.extract_strided_slice %115 {offsets = [0, 0], sizes = [8, 80], strides = [1, 1]} : vector<40x80xbf16> to vector<8x80xbf16>
    %c0_52 = arith.constant 0 : index
    %c0_53 = arith.constant 0 : index
    %c0_54 = arith.constant 0 : index
    %118 = vector.load %arg8[%c0_52, %c0_53, %c0_54] : memref<5x80x120xbf16, #tpu.memory_space<vmem>>, vector<1x80x120xbf16>
    %119 = vector.shape_cast %118 : vector<1x80x120xbf16> to vector<80x120xbf16>
    %cst_55 = arith.constant dense<0.000000e+00> : vector<8x120xf32>
    %120 = tpu.matmul %117, %119, %cst_55 {dimension_numbers = #tpu.dot_dimension_numbers<[1], [0], [0], [1], [0, 0, 1, 1], [], []>} : vector<8x80xbf16>, vector<80x120xbf16>, vector<8x120xf32> -> vector<8x120xf32>
    %121 = vector.broadcast %116 : vector<1x120xf32> to vector<8x120xf32>
    %122 = arith.addf %121, %120 : vector<8x120xf32>
    %123 = vector.extract_strided_slice %115 {offsets = [8, 0], sizes = [8, 80], strides = [1, 1]} : vector<40x80xbf16> to vector<8x80xbf16>
    %c1_56 = arith.constant 1 : index
    %c0_57 = arith.constant 0 : index
    %c0_58 = arith.constant 0 : index
    %124 = vector.load %arg8[%c1_56, %c0_57, %c0_58] : memref<5x80x120xbf16, #tpu.memory_space<vmem>>, vector<1x80x120xbf16>
    %125 = vector.shape_cast %124 : vector<1x80x120xbf16> to vector<80x120xbf16>
    %cst_59 = arith.constant dense<0.000000e+00> : vector<8x120xf32>
    %126 = tpu.matmul %123, %125, %cst_59 {dimension_numbers = #tpu.dot_dimension_numbers<[1], [0], [0], [1], [0, 0, 1, 1], [], []>} : vector<8x80xbf16>, vector<80x120xbf16>, vector<8x120xf32> -> vector<8x120xf32>
    %127 = arith.addf %122, %126 : vector<8x120xf32>
    %128 = vector.extract_strided_slice %115 {offsets = [16, 0], sizes = [8, 80], strides = [1, 1]} : vector<40x80xbf16> to vector<8x80xbf16>
    %c2_60 = arith.constant 2 : index
    %c0_61 = arith.constant 0 : index
    %c0_62 = arith.constant 0 : index
    %129 = vector.load %arg8[%c2_60, %c0_61, %c0_62] : memref<5x80x120xbf16, #tpu.memory_space<vmem>>, vector<1x80x120xbf16>
    %130 = vector.shape_cast %129 : vector<1x80x120xbf16> to vector<80x120xbf16>
    %cst_63 = arith.constant dense<0.000000e+00> : vector<8x120xf32>
    %131 = tpu.matmul %128, %130, %cst_63 {dimension_numbers = #tpu.dot_dimension_numbers<[1], [0], [0], [1], [0, 0, 1, 1], [], []>} : vector<8x80xbf16>, vector<80x120xbf16>, vector<8x120xf32> -> vector<8x120xf32>
    %132 = arith.addf %127, %131 : vector<8x120xf32>
    %133 = vector.extract_strided_slice %115 {offsets = [24, 0], sizes = [8, 80], strides = [1, 1]} : vector<40x80xbf16> to vector<8x80xbf16>
    %c3_64 = arith.constant 3 : index
    %c0_65 = arith.constant 0 : index
    %c0_66 = arith.constant 0 : index
    %134 = vector.load %arg8[%c3_64, %c0_65, %c0_66] : memref<5x80x120xbf16, #tpu.memory_space<vmem>>, vector<1x80x120xbf16>
    %135 = vector.shape_cast %134 : vector<1x80x120xbf16> to vector<80x120xbf16>
    %cst_67 = arith.constant dense<0.000000e+00> : vector<8x120xf32>
    %136 = tpu.matmul %133, %135, %cst_67 {dimension_numbers = #tpu.dot_dimension_numbers<[1], [0], [0], [1], [0, 0, 1, 1], [], []>} : vector<8x80xbf16>, vector<80x120xbf16>, vector<8x120xf32> -> vector<8x120xf32>
    %137 = arith.addf %132, %136 : vector<8x120xf32>
    %138 = vector.extract_strided_slice %115 {offsets = [32, 0], sizes = [8, 80], strides = [1, 1]} : vector<40x80xbf16> to vector<8x80xbf16>
    %c4 = arith.constant 4 : index
    %c0_68 = arith.constant 0 : index
    %c0_69 = arith.constant 0 : index
    %139 = vector.load %arg8[%c4, %c0_68, %c0_69] : memref<5x80x120xbf16, #tpu.memory_space<vmem>>, vector<1x80x120xbf16>
    %140 = vector.shape_cast %139 : vector<1x80x120xbf16> to vector<80x120xbf16>
    %cst_70 = arith.constant dense<0.000000e+00> : vector<8x120xf32>
    %141 = tpu.matmul %138, %140, %cst_70 {dimension_numbers = #tpu.dot_dimension_numbers<[1], [0], [0], [1], [0, 0, 1, 1], [], []>} : vector<8x80xbf16>, vector<80x120xbf16>, vector<8x120xf32> -> vector<8x120xf32>
    %142 = arith.addf %137, %141 : vector<8x120xf32>
    %143 = math.tanh %142 : vector<8x120xf32>
    %144 = arith.truncf %143 : vector<8x120xf32> to vector<8x120xbf16>
    %c0_71 = arith.constant 0 : index
    %c0_72 = arith.constant 0 : index
    %145 = vector.load %arg10[%c0_71, %c0_72] : memref<120x84xbf16, #tpu.memory_space<vmem>>, vector<120x84xbf16>
    %cst_73 = arith.constant dense<0.000000e+00> : vector<8x84xf32>
    %146 = tpu.matmul %144, %145, %cst_73 {dimension_numbers = #tpu.dot_dimension_numbers<[1], [0], [0], [1], [0, 0, 1, 1], [], []>} : vector<8x120xbf16>, vector<120x84xbf16>, vector<8x84xf32> -> vector<8x84xf32>
    %c0_74 = arith.constant 0 : index
    %c0_75 = arith.constant 0 : index
    %147 = vector.load %arg11[%c0_74, %c0_75] : memref<1x84xf32, #tpu.memory_space<vmem>>, vector<1x84xf32>
    %148 = vector.broadcast %147 : vector<1x84xf32> to vector<8x84xf32>
    %149 = arith.addf %146, %148 : vector<8x84xf32>
    %150 = math.tanh %149 : vector<8x84xf32>
    %151 = arith.truncf %150 : vector<8x84xf32> to vector<8x84xbf16>
    %c0_76 = arith.constant 0 : index
    %c0_77 = arith.constant 0 : index
    %152 = vector.load %arg12[%c0_76, %c0_77] : memref<84x128xbf16, #tpu.memory_space<vmem>>, vector<84x128xbf16>
    %cst_78 = arith.constant dense<0.000000e+00> : vector<8x128xf32>
    %153 = tpu.matmul %151, %152, %cst_78 {dimension_numbers = #tpu.dot_dimension_numbers<[1], [0], [0], [1], [0, 0, 1, 1], [], []>} : vector<8x84xbf16>, vector<84x128xbf16>, vector<8x128xf32> -> vector<8x128xf32>
    %c0_79 = arith.constant 0 : index
    %c0_80 = arith.constant 0 : index
    %154 = vector.load %arg13[%c0_79, %c0_80] : memref<1x128xf32, #tpu.memory_space<vmem>>, vector<1x128xf32>
    %155 = vector.broadcast %154 : vector<1x128xf32> to vector<8x128xf32>
    %156 = arith.addf %153, %155 : vector<8x128xf32>
    %c0_81 = arith.constant 0 : index
    %c0_82 = arith.constant 0 : index
    %c0_83 = arith.constant 0 : index
    %157 = vector.load %arg14[%c0_81, %c0_82, %c0_83] : memref<1x8x128xf32, #tpu.memory_space<vmem>>, vector<1x8x128xf32>
    %158 = vector.shape_cast %157 : vector<1x8x128xf32> to vector<8x128xf32>
    %159 = vector.shape_cast %156 : vector<8x128xf32> to vector<1x8x128xf32>
    tpu.vector_store %arg14[%c0_81, %c0_82, %c0_83], %159 {strides = array<i32>} : memref<1x8x128xf32, #tpu.memory_space<vmem>>, vector<1x8x128xf32>,
    return
  }
  func.func @transform_0(%arg0: i32) -> (i32, i32, i32, i32) {
    %c0_i32 = arith.constant 0 : i32
    %c0_i32_0 = arith.constant 0 : i32
    %c0_i32_1 = arith.constant 0 : i32
    %c0_i32_2 = arith.constant 0 : i32
    return %arg0, %c0_i32, %c0_i32_0, %c0_i32_1 : i32, i32, i32, i32
  }
  func.func @transform_1(%arg0: i32) -> (i32, i32) {
    %c0_i32 = arith.constant 0 : i32
    %c0_i32_0 = arith.constant 0 : i32
    %c0_i32_1 = arith.constant 0 : i32
    return %c0_i32, %c0_i32_0 : i32, i32
  }
  func.func @transform_2(%arg0: i32) -> (i32, i32) {
    %c0_i32 = arith.constant 0 : i32
    %c0_i32_0 = arith.constant 0 : i32
    %c0_i32_1 = arith.constant 0 : i32
    return %c0_i32, %c0_i32_0 : i32, i32
  }
  func.func @transform_3(%arg0: i32) -> (i32, i32) {
    %c0_i32 = arith.constant 0 : i32
    %c0_i32_0 = arith.constant 0 : i32
    %c0_i32_1 = arith.constant 0 : i32
    return %c0_i32, %c0_i32_0 : i32, i32
  }
  func.func @transform_4(%arg0: i32) -> (i32, i32) {
    %c0_i32 = arith.constant 0 : i32
    %c0_i32_0 = arith.constant 0 : i32
    %c0_i32_1 = arith.constant 0 : i32
    return %c0_i32, %c0_i32_0 : i32, i32
  }
  func.func @transform_5(%arg0: i32) -> (i32, i32) {
    %c0_i32 = arith.constant 0 : i32
    %c0_i32_0 = arith.constant 0 : i32
    %c0_i32_1 = arith.constant 0 : i32
    return %c0_i32, %c0_i32_0 : i32, i32
  }
  func.func @transform_6(%arg0: i32) -> (i32, i32) {
    %c0_i32 = arith.constant 0 : i32
    %c0_i32_0 = arith.constant 0 : i32
    %c0_i32_1 = arith.constant 0 : i32
    return %c0_i32, %c0_i32_0 : i32, i32
  }
  func.func @transform_7(%arg0: i32) -> (i32, i32, i32) {
    %c0_i32 = arith.constant 0 : i32
    %c0_i32_0 = arith.constant 0 : i32
    %c0_i32_1 = arith.constant 0 : i32
    %c0_i32_2 = arith.constant 0 : i32
    return %c0_i32, %c0_i32_0, %c0_i32_1 : i32, i32, i32
  }
  func.func @transform_8(%arg0: i32) -> (i32, i32) {
    %c0_i32 = arith.constant 0 : i32
    %c0_i32_0 = arith.constant 0 : i32
    %c0_i32_1 = arith.constant 0 : i32
    return %c0_i32, %c0_i32_0 : i32, i32
  }
  func.func @transform_9(%arg0: i32) -> (i32, i32) {
    %c0_i32 = arith.constant 0 : i32
    %c0_i32_0 = arith.constant 0 : i32
    %c0_i32_1 = arith.constant 0 : i32
    return %c0_i32, %c0_i32_0 : i32, i32
  }
  func.func @transform_10(%arg0: i32) -> (i32, i32) {
    %c0_i32 = arith.constant 0 : i32
    %c0_i32_0 = arith.constant 0 : i32
    %c0_i32_1 = arith.constant 0 : i32
    return %c0_i32, %c0_i32_0 : i32, i32
  }
  func.func @transform_11(%arg0: i32) -> (i32, i32) {
    %c0_i32 = arith.constant 0 : i32
    %c0_i32_0 = arith.constant 0 : i32
    %c0_i32_1 = arith.constant 0 : i32
    return %c0_i32, %c0_i32_0 : i32, i32
  }
  func.func @transform_12(%arg0: i32) -> (i32, i32) {
    %c0_i32 = arith.constant 0 : i32
    %c0_i32_0 = arith.constant 0 : i32
    %c0_i32_1 = arith.constant 0 : i32
    return %c0_i32, %c0_i32_0 : i32, i32
  }
  func.func @transform_13(%arg0: i32) -> (i32, i32, i32) {
    %c0_i32 = arith.constant 0 : i32
    %c0_i32_0 = arith.constant 0 : i32
    %c0_i32_1 = arith.constant 0 : i32
    return %arg0, %c0_i32, %c0_i32_0 : i32, i32, i32
  }
}

</mosaic_0001>

<llo_original>
// kernel: _forward_impl.2
$region0: #{_forward_impl.2}
  #allocation0 [shape = 'u32[]', space=smem, size = 0x4, offset = 0x4, fixed_abs, tag = 'smem constant byte address 0x4 - core index']
  #allocation1 [shape = 'u32[144,128]{1,0:T(1,128)}', space=vmem, size = 0x12000, scoped, tag = 'internal scratch']
  %s0 = inlined_call_operand.vmem [shape: bf16[32,840], index: 0, kind: input, shape index: {}]
  %s1 = inlined_call_operand.vmem [shape: f32[1,168], index: 1, kind: input, shape index: {}]
  %s2 = inlined_call_operand.hbm [shape: bf16[168,84], index: 2, kind: input, shape index: {}]
  %s3 = inlined_call_operand.vmem [shape: bf16[84,800], index: 3, kind: input, shape index: {}]
  %s4 = inlined_call_operand.vmem [shape: f32[1,160], index: 4, kind: input, shape index: {}]
  %s5 = inlined_call_operand.hbm [shape: bf16[160,80], index: 5, kind: input, shape index: {}]
  %s6 = inlined_call_operand.vmem [shape: bf16[5,80,120], index: 6, kind: input, shape index: {}]
  %s7 = inlined_call_operand.hbm [shape: f32[1,120], index: 7, kind: input, shape index: {}]
  %s8 = inlined_call_operand.vmem [shape: bf16[120,84], index: 8, kind: input, shape index: {}]
  %s9 = inlined_call_operand.hbm [shape: f32[1,84], index: 9, kind: input, shape index: {}]
  %s10 = inlined_call_operand.hbm [shape: bf16[84,128], index: 10, kind: input, shape index: {}]
  %s11 = inlined_call_operand.vmem [shape: f32[1,128], index: 11, kind: input, shape index: {}]
  %s12 = inlined_call_operand.vmem [shape: bf16[1,8,8,4,32], index: 12, kind: input, shape index: {}]
  %s13 = inlined_call_operand.vmem [shape: f32[1,8,128], index: 13, kind: output, shape index: {}]
  %s14 = sld [smem:[#allocation0]]
  $region82: #{_forward_impl.2} parent=0
    _
  %s16 = ssub.s32 1, %s14
  %s17 = scalar_select 0, %s16, %s14
  $region1: #{_forward_impl.2} parent=0
    #allocation2 [shape = 'u8[43008]{0}', space=vmem, size = 0xa800, scoped, tag = 'input window, operand 3, single buffered']
    #allocation3 [shape = 's32[1]{0}', space=sflag, size = 0x4, scoped, tag = 'scoped memory for _forward_impl.2']
    #allocation4 [shape = 'u8[40960]{0}', space=vmem, size = 0xa000, scoped, tag = 'input window, operand 6, single buffered']
    #allocation5 [shape = 's32[1]{0}', space=sflag, size = 0x4, scoped, tag = 'scoped memory for _forward_impl.2']
    #allocation6 [shape = 'u8[512]{0}', space=vmem, size = 0x400, scoped, tag = 'input window, operand 8, single buffered']
    #allocation7 [shape = 'u8[512]{0}', space=vmem, size = 0x400, scoped, tag = 'input window, operand 10, single buffered']
    #allocation8 [shape = 's32[1]{0}', space=sflag, size = 0x4, scoped, tag = 'scoped memory for _forward_impl.2']
    #allocation9 [shape = 'u8[22528]{0}', space=vmem, size = 0x5800, scoped, tag = 'input window, operand 11, single buffered']
    #allocation10 [shape = 'u8[65536]{0}', space=vmem, size = 0x10000, dematerialized = true, scoped, tag = 'FusionAdapter Buffer %fusion.1 = bf16[1,4,64,32]{3,2,1,0:T(8,128)(2,1)} fusion(%param_12.1), kind=kLoop, calls=%fused_computation.1.clone, metadata={op_name="jit(_forward_impl)/reshape" stack_frame_id=12}']
    %18 = vsyncpa [#allocation3], 0
    %19 = vsyncpa [#allocation5], 0
    %20 = vsyncpa [#allocation8], 0
    // Predicated region
    $region2: #{_forward_impl.2} parent=1 // pred_check
      _
    $region3: #{_forward_impl.2} parent=1 // pred_check_branch
      %22 = sbr.rel (0) target = $region5
    $region4: #{_forward_impl.2} parent=1 // pred_region
      _
    $region5: #{_forward_impl.2} parent=1 // pred_fallthru
      _
    // Predicated region
    $region6: #{_forward_impl.2} parent=1 // pred_check
      _
    $region7: #{_forward_impl.2} parent=1 // pred_check_branch
      %24 = sbr.rel (0) target = $region9
    $region8: #{_forward_impl.2} parent=1 // pred_region
      _
    $region9: #{_forward_impl.2} parent=1 // pred_fallthru
      _
    // Predicated region
    $region10: #{_forward_impl.2} parent=1 // pred_check
      _
    $region11: #{_forward_impl.2} parent=1 // pred_check_branch
      %26 = sbr.rel (0) target = $region13
    $region12: #{_forward_impl.2} parent=1 // pred_region
      _
    $region13: #{_forward_impl.2} parent=1 // pred_fallthru
      _
    // Predicated region
    $region14: #{_forward_impl.2} parent=1 // pred_check
      _
    $region15: #{_forward_impl.2} parent=1 // pred_check_branch
      %28 = sbr.rel (0) target = $region17
    $region16: #{_forward_impl.2} parent=1 // pred_region
      %s30 = ssub.s32 1344, 1344
      %31 = vsyncadd [#allocation3], %s30
      %s32 = sshll.u32 [#allocation2], 4
      %s33 = int_to_ptr.vmem [resolvable:$true] %s32
      %38 = dma.hbm_to_vmem [thread:$0]  %s2, 1344, %s33, [#allocation3], 64, 64, 4
    $region17: #{_forward_impl.2} parent=1 // pred_fallthru
      _
    // Predicated region
    $region18: #{_forward_impl.2} parent=1 // pred_check
      _
    $region19: #{_forward_impl.2} parent=1 // pred_check_branch
      %40 = sbr.rel (0) target = $region21
    $region20: #{_forward_impl.2} parent=1 // pred_region
      _
    $region21: #{_forward_impl.2} parent=1 // pred_fallthru
      _
    // Predicated region
    $region22: #{_forward_impl.2} parent=1 // pred_check
      _
    $region23: #{_forward_impl.2} parent=1 // pred_check_branch
      %42 = sbr.rel (0) target = $region25
    $region24: #{_forward_impl.2} parent=1 // pred_region
      _
    $region25: #{_forward_impl.2} parent=1 // pred_fallthru
      _
    // Predicated region
    $region26: #{_forward_impl.2} parent=1 // pred_check
      _
    $region27: #{_forward_impl.2} parent=1 // pred_check_branch
      %44 = sbr.rel (0) target = $region29
    $region28: #{_forward_impl.2} parent=1 // pred_region
      %s46 = ssub.s32 1280, 1280
      %47 = vsyncadd [#allocation5], %s46
      %s48 = sshll.u32 [#allocation4], 4
      %s49 = int_to_ptr.vmem [resolvable:$true] %s48
      %54 = dma.hbm_to_vmem [thread:$0]  %s5, 1280, %s49, [#allocation5], 64, 64, 4
    $region29: #{_forward_impl.2} parent=1 // pred_fallthru
      _
    // Predicated region
    $region30: #{_forward_impl.2} parent=1 // pred_check
      _
    $region31: #{_forward_impl.2} parent=1 // pred_check_branch
      %56 = sbr.rel (0) target = $region33
    $region32: #{_forward_impl.2} parent=1 // pred_region
      _
    $region33: #{_forward_impl.2} parent=1 // pred_fallthru
      _
    // Predicated region
    $region34: #{_forward_impl.2} parent=1 // pred_check
      _
    $region35: #{_forward_impl.2} parent=1 // pred_check_branch
      %58 = sbr.rel (0) target = $region37
    $region36: #{_forward_impl.2} parent=1 // pred_region
      %s60 = ssub.s32 16, 16
      %61 = vsyncadd [#allocation5], %s60
      %s63 = sshll.u32 [#allocation6], 4
      %s64 = int_to_ptr.vmem [resolvable:$true] %s63
      %66 = dma.hbm_to_vmem [thread:$0]  %s7, 16, %s64, [#allocation5]
    $region37: #{_forward_impl.2} parent=1 // pred_fallthru
      _
    // Predicated region
    $region38: #{_forward_impl.2} parent=1 // pred_check
      _
    $region39: #{_forward_impl.2} parent=1 // pred_check_branch
      %68 = sbr.rel (0) target = $region41
    $region40: #{_forward_impl.2} parent=1 // pred_region
      _
    $region41: #{_forward_impl.2} parent=1 // pred_fallthru
      _
    // Predicated region
    $region42: #{_forward_impl.2} parent=1 // pred_check
      _
    $region43: #{_forward_impl.2} parent=1 // pred_check_branch
      %70 = sbr.rel (0) target = $region45
    $region44: #{_forward_impl.2} parent=1 // pred_region
      %s72 = ssub.s32 16, 16
      %73 = vsyncadd [#allocation8], %s72
      %s75 = sshll.u32 [#allocation7], 4
      %s76 = int_to_ptr.vmem [resolvable:$true] %s75
      %78 = dma.hbm_to_vmem [thread:$0]  %s9, 16, %s76, [#allocation8]
    $region45: #{_forward_impl.2} parent=1 // pred_fallthru
      _
    // Predicated region
    $region46: #{_forward_impl.2} parent=1 // pred_check
      _
    $region47: #{_forward_impl.2} parent=1 // pred_check_branch
      %80 = sbr.rel (0) target = $region49
    $region48: #{_forward_impl.2} parent=1 // pred_region
      %s82 = ssub.s32 704, 704
      %83 = vsyncadd [#allocation8], %s82
      %s84 = sshll.u32 [#allocation9], 4
      %s85 = int_to_ptr.vmem [resolvable:$true] %s84
      %90 = dma.hbm_to_vmem [thread:$0]  %s10, 704, %s85, [#allocation8], 64, 64, 4
    $region49: #{_forward_impl.2} parent=1 // pred_fallthru
      _
    // Predicated region
    $region50: #{_forward_impl.2} parent=1 // pred_check
      _
    $region51: #{_forward_impl.2} parent=1 // pred_check_branch
      %92 = sbr.rel (0) target = $region53
    $region52: #{_forward_impl.2} parent=1 // pred_region
      _
    $region53: #{_forward_impl.2} parent=1 // pred_fallthru
      _
    // Predicated region
    $region54: #{_forward_impl.2} parent=1 // pred_check
      _
    $region55: #{_forward_impl.2} parent=1 // pred_check_branch
      %94 = sbr.rel (0) target = $region57
    $region56: #{_forward_impl.2} parent=1 // pred_region
      %95 = dma.done [#allocation3], 1344
    $region57: #{_forward_impl.2} parent=1 // pred_fallthru
      _
    // Predicated region
    $region58: #{_forward_impl.2} parent=1 // pred_check
      _
    $region59: #{_forward_impl.2} parent=1 // pred_check_branch
      %97 = sbr.rel (0) target = $region61
    $region60: #{_forward_impl.2} parent=1 // pred_region
      %98 = dma.done [#allocation5], 1280
    $region61: #{_forward_impl.2} parent=1 // pred_fallthru
      _
    // Predicated region
    $region62: #{_forward_impl.2} parent=1 // pred_check
      _
    $region63: #{_forward_impl.2} parent=1 // pred_check_branch
      %100 = sbr.rel (0) target = $region65
    $region64: #{_forward_impl.2} parent=1 // pred_region
      %101 = dma.done [#allocation5], 16
    $region65: #{_forward_impl.2} parent=1 // pred_fallthru
      _
    // Predicated region
    $region66: #{_forward_impl.2} parent=1 // pred_check
      _
    $region67: #{_forward_impl.2} parent=1 // pred_check_branch
      %103 = sbr.rel (0) target = $region69
    $region68: #{_forward_impl.2} parent=1 // pred_region
      %104 = dma.done [#allocation8], 16
    $region69: #{_forward_impl.2} parent=1 // pred_fallthru
      _
    // Predicated region
    $region70: #{_forward_impl.2} parent=1 // pred_check
      _
    $region71: #{_forward_impl.2} parent=1 // pred_check_branch
      %106 = sbr.rel (0) target = $region73
    $region72: #{_forward_impl.2} parent=1 // pred_region
      %107 = dma.done [#allocation8], 704
    $region73: #{_forward_impl.2} parent=1 // pred_fallthru
      _
    %v108 = vld [vmem:[%s12] sm:$0xf]
    %v109 = vunpack.c.l.bf16 %v108
    %v110 = vunpack.c.h.bf16 %v108
    %v111 = vpack.c.bf16 0.0, %v109
    %113 = vst [vmem:[#allocation10] sm:$0xf] %v111
    %s114 = scalar_lea.vmem %s12, 4
    %v115 = vld [vmem:[%s114] sm:$0xf]
    %v116 = vunpack.c.l.bf16 %v115
    %v117 = vunpack.c.h.bf16 %v115
    %s118 = scalar_lea.vmem [#allocation10], 4
    %v119 = vpack.c.bf16 0.0, %v116
    %121 = vst [vmem:[%s118] sm:$0xf] %v119
    %s122 = scalar_lea.vmem %s12, 8
    %v123 = vld [vmem:[%s122] sm:$0xf]
    %v124 = vunpack.c.l.bf16 %v123
    %v125 = vunpack.c.h.bf16 %v123
    %s126 = scalar_lea.vmem [#allocation10], 8
    %v127 = vpack.c.bf16 0.0, %v124
    %129 = vst [vmem:[%s126] sm:$0xf] %v127
    %s130 = scalar_lea.vmem %s12, 12
    %v131 = vld [vmem:[%s130] sm:$0xf]
    %v132 = vunpack.c.l.bf16 %v131
    %v133 = vunpack.c.h.bf16 %v131
    %s134 = scalar_lea.vmem [#allocation10], 12
    %v135 = vpack.c.bf16 0.0, %v132
    %137 = vst [vmem:[%s134] sm:$0xf] %v135
    %s138 = scalar_lea.vmem %s12, 16
    %v139 = vld [vmem:[%s138] sm:$0xf]
    %v140 = vunpack.c.l.bf16 %v139
    %v141 = vunpack.c.h.bf16 %v139
    %s142 = scalar_lea.vmem [#allocation10], 16
    %v143 = vpack.c.bf16 0.0, %v140
    %145 = vst [vmem:[%s142] sm:$0xf] %v143
    %s146 = scalar_lea.vmem %s12, 20
    %v147 = vld [vmem:[%s146] sm:$0xf]
    %v148 = vunpack.c.l.bf16 %v147
    %v149 = vunpack.c.h.bf16 %v147
    %s150 = scalar_lea.vmem [#allocation10], 20
    %v151 = vpack.c.bf16 0.0, %v148
    %153 = vst [vmem:[%s150] sm:$0xf] %v151
    %s154 = scalar_lea.vmem %s12, 24
    %v155 = vld [vmem:[%s154] sm:$0xf]
    %v156 = vunpack.c.l.bf16 %v155
    %v157 = vunpack.c.h.bf16 %v155
    %s158 = scalar_lea.vmem [#allocation10], 24
    %v159 = vpack.c.bf16 0.0, %v156
    %161 = vst [vmem:[%s158] sm:$0xf] %v159
    %s162 = scalar_lea.vmem %s12, 28
    %v163 = vld [vmem:[%s162] sm:$0xf]
    %v164 = vunpack.c.l.bf16 %v163
    %v165 = vunpack.c.h.bf16 %v163
    %s166 = scalar_lea.vmem [#allocation10], 28
    %v167 = vpack.c.bf16 0.0, %v164
    %169 = vst [vmem:[%s166] sm:$0xf] %v167
    %s170 = scalar_lea.vmem %s12, 32
    %v171 = vld [vmem:[%s170] sm:$0xf]
    %v172 = vunpack.c.l.bf16 %v171
    %v173 = vunpack.c.h.bf16 %v171
    %s174 = scalar_lea.vmem [#allocation10], 32
    %v175 = vpack.c.bf16 0.0, %v172
    %177 = vst [vmem:[%s174] sm:$0xf] %v175
    %s178 = scalar_lea.vmem %s12, 36
    %v179 = vld [vmem:[%s178] sm:$0xf]
    %v180 = vunpack.c.l.bf16 %v179
    %v181 = vunpack.c.h.bf16 %v179
    %s182 = scalar_lea.vmem [#allocation10], 36
    %v183 = vpack.c.bf16 0.0, %v180
    %185 = vst [vmem:[%s182] sm:$0xf] %v183
    %s186 = scalar_lea.vmem %s12, 40
    %v187 = vld [vmem:[%s186] sm:$0xf]
    %v188 = vunpack.c.l.bf16 %v187
    %v189 = vunpack.c.h.bf16 %v187
    %s190 = scalar_lea.vmem [#allocation10], 40
    %v191 = vpack.c.bf16 0.0, %v188
    %193 = vst [vmem:[%s190] sm:$0xf] %v191
    %s194 = scalar_lea.vmem %s12, 44
    %v195 = vld [vmem:[%s194] sm:$0xf]
    %v196 = vunpack.c.l.bf16 %v195
    %v197 = vunpack.c.h.bf16 %v195
    %s198 = scalar_lea.vmem [#allocation10], 44
    %v199 = vpack.c.bf16 0.0, %v196
    %201 = vst [vmem:[%s198] sm:$0xf] %v199
    %s202 = scalar_lea.vmem %s12, 48
    %v203 = vld [vmem:[%s202] sm:$0xf]
    %v204 = vunpack.c.l.bf16 %v203
    %v205 = vunpack.c.h.bf16 %v203
    %s206 = scalar_lea.vmem [#allocation10], 48
    %v207 = vpack.c.bf16 0.0, %v204
    %209 = vst [vmem:[%s206] sm:$0xf] %v207
    %s210 = scalar_lea.vmem %s12, 52
    %v211 = vld [vmem:[%s210] sm:$0xf]
    %v212 = vunpack.c.l.bf16 %v211
    %v213 = vunpack.c.h.bf16 %v211
    %s214 = scalar_lea.vmem [#allocation10], 52
    %v215 = vpack.c.bf16 0.0, %v212
    %217 = vst [vmem:[%s214] sm:$0xf] %v215
    %s218 = scalar_lea.vmem %s12, 56
    %v219 = vld [vmem:[%s218] sm:$0xf]
    %v220 = vunpack.c.l.bf16 %v219
    %v221 = vunpack.c.h.bf16 %v219
    %s222 = scalar_lea.vmem [#allocation10], 56
    %v223 = vpack.c.bf16 0.0, %v220
    %225 = vst [vmem:[%s222] sm:$0xf] %v223
    %s226 = scalar_lea.vmem %s12, 60
    %v227 = vld [vmem:[%s226] sm:$0xf]
    %v228 = vunpack.c.l.bf16 %v227
    %v229 = vunpack.c.h.bf16 %v227
    %s230 = scalar_lea.vmem [#allocation10], 60
    %v231 = vpack.c.bf16 0.0, %v228
    %233 = vst [vmem:[%s230] sm:$0xf] %v231
    %s234 = scalar_lea.vmem %s12, 64
    %v235 = vld [vmem:[%s234] sm:$0xf]
    %v236 = vunpack.c.l.bf16 %v235
    %v237 = vunpack.c.h.bf16 %v235
    %s238 = scalar_lea.vmem [#allocation10], 64
    %v239 = vpack.c.bf16 0.0, %v236
    %241 = vst [vmem:[%s238] sm:$0xf] %v239
    %s242 = scalar_lea.vmem %s12, 68
    %v243 = vld [vmem:[%s242] sm:$0xf]
    %v244 = vunpack.c.l.bf16 %v243
    %v245 = vunpack.c.h.bf16 %v243
    %s246 = scalar_lea.vmem [#allocation10], 68
    %v247 = vpack.c.bf16 0.0, %v244
    %249 = vst [vmem:[%s246] sm:$0xf] %v247
    %s250 = scalar_lea.vmem %s12, 72
    %v251 = vld [vmem:[%s250] sm:$0xf]
    %v252 = vunpack.c.l.bf16 %v251
    %v253 = vunpack.c.h.bf16 %v251
    %s254 = scalar_lea.vmem [#allocation10], 72
    %v255 = vpack.c.bf16 0.0, %v252
    %257 = vst [vmem:[%s254] sm:$0xf] %v255
    %s258 = scalar_lea.vmem %s12, 76
    %v259 = vld [vmem:[%s258] sm:$0xf]
    %v260 = vunpack.c.l.bf16 %v259
    %v261 = vunpack.c.h.bf16 %v259
    %s262 = scalar_lea.vmem [#allocation10], 76
    %v263 = vpack.c.bf16 0.0, %v260
    %265 = vst [vmem:[%s262] sm:$0xf] %v263
    %s266 = scalar_lea.vmem %s12, 80
    %v267 = vld [vmem:[%s266] sm:$0xf]
    %v268 = vunpack.c.l.bf16 %v267
    %v269 = vunpack.c.h.bf16 %v267
    %s270 = scalar_lea.vmem [#allocation10], 80
    %v271 = vpack.c.bf16 0.0, %v268
    %273 = vst [vmem:[%s270] sm:$0xf] %v271
    %s274 = scalar_lea.vmem %s12, 84
    %v275 = vld [vmem:[%s274] sm:$0xf]
    %v276 = vunpack.c.l.bf16 %v275
    %v277 = vunpack.c.h.bf16 %v275
    %s278 = scalar_lea.vmem [#allocation10], 84
    %v279 = vpack.c.bf16 0.0, %v276
    %281 = vst [vmem:[%s278] sm:$0xf] %v279
    %s282 = scalar_lea.vmem %s12, 88
    %v283 = vld [vmem:[%s282] sm:$0xf]
    %v284 = vunpack.c.l.bf16 %v283
    %v285 = vunpack.c.h.bf16 %v283
    %s286 = scalar_lea.vmem [#allocation10], 88
    %v287 = vpack.c.bf16 0.0, %v284
    %289 = vst [vmem:[%s286] sm:$0xf] %v287
    %s290 = scalar_lea.vmem %s12, 92
    %v291 = vld [vmem:[%s290] sm:$0xf]
    %v292 = vunpack.c.l.bf16 %v291
    %v293 = vunpack.c.h.bf16 %v291
    %s294 = scalar_lea.vmem [#allocation10], 92
    %v295 = vpack.c.bf16 0.0, %v292
    %297 = vst [vmem:[%s294] sm:$0xf] %v295
    %s298 = scalar_lea.vmem %s12, 96
    %v299 = vld [vmem:[%s298] sm:$0xf]
    %v300 = vunpack.c.l.bf16 %v299
    %v301 = vunpack.c.h.bf16 %v299
    %s302 = scalar_lea.vmem [#allocation10], 96
    %v303 = vpack.c.bf16 0.0, %v300
    %305 = vst [vmem:[%s302] sm:$0xf] %v303
    %s306 = scalar_lea.vmem %s12, 100
    %v307 = vld [vmem:[%s306] sm:$0xf]
    %v308 = vunpack.c.l.bf16 %v307
    %v309 = vunpack.c.h.bf16 %v307
    %s310 = scalar_lea.vmem [#allocation10], 100
    %v311 = vpack.c.bf16 0.0, %v308
    %313 = vst [vmem:[%s310] sm:$0xf] %v311
    %s314 = scalar_lea.vmem %s12, 104
    %v315 = vld [vmem:[%s314] sm:$0xf]
    %v316 = vunpack.c.l.bf16 %v315
    %v317 = vunpack.c.h.bf16 %v315
    %s318 = scalar_lea.vmem [#allocation10], 104
    %v319 = vpack.c.bf16 0.0, %v316
    %321 = vst [vmem:[%s318] sm:$0xf] %v319
    %s322 = scalar_lea.vmem %s12, 108
    %v323 = vld [vmem:[%s322] sm:$0xf]
    %v324 = vunpack.c.l.bf16 %v323
    %v325 = vunpack.c.h.bf16 %v323
    %s326 = scalar_lea.vmem [#allocation10], 108
    %v327 = vpack.c.bf16 0.0, %v324
    %329 = vst [vmem:[%s326] sm:$0xf] %v327
    %s330 = scalar_lea.vmem %s12, 112
    %v331 = vld [vmem:[%s330] sm:$0xf]
    %v332 = vunpack.c.l.bf16 %v331
    %v333 = vunpack.c.h.bf16 %v331
    %s334 = scalar_lea.vmem [#allocation10], 112
    %v335 = vpack.c.bf16 0.0, %v332
    %337 = vst [vmem:[%s334] sm:$0xf] %v335
    %s338 = scalar_lea.vmem %s12, 116
    %v339 = vld [vmem:[%s338] sm:$0xf]
    %v340 = vunpack.c.l.bf16 %v339
    %v341 = vunpack.c.h.bf16 %v339
    %s342 = scalar_lea.vmem [#allocation10], 116
    %v343 = vpack.c.bf16 0.0, %v340
    %345 = vst [vmem:[%s342] sm:$0xf] %v343
    %s346 = scalar_lea.vmem %s12, 120
    %v347 = vld [vmem:[%s346] sm:$0xf]
    %v348 = vunpack.c.l.bf16 %v347
    %v349 = vunpack.c.h.bf16 %v347
    %s350 = scalar_lea.vmem [#allocation10], 120
    %v351 = vpack.c.bf16 0.0, %v348
    %353 = vst [vmem:[%s350] sm:$0xf] %v351
    %s354 = scalar_lea.vmem %s12, 124
    %v355 = vld [vmem:[%s354] sm:$0xf]
    %v356 = vunpack.c.l.bf16 %v355
    %v357 = vunpack.c.h.bf16 %v355
    %s358 = scalar_lea.vmem [#allocation10], 124
    %v359 = vpack.c.bf16 0.0, %v356
    %361 = vst [vmem:[%s358] sm:$0xf] %v359
    %v363 = vld [vmem:[%s1] sm:$0x3]
    %v364 = vld [vmem:[#allocation10] sm:$0xf]
    %v365 = vld [vmem:[#allocation10 + $0x4] sm:$0xf]
    %v366 = vld [vmem:[#allocation10 + $0x8] sm:$0xf]
    %v367 = vld [vmem:[#allocation10 + $0xc] sm:$0xf]
    %v368 = vld [vmem:[#allocation10 + $0x10] sm:$0xf]
    %v369 = vld [vmem:[#allocation10 + $0x14] sm:$0xf]
    %v370 = vld [vmem:[#allocation10 + $0x18] sm:$0xf]
    %v371 = vld [vmem:[#allocation10 + $0x1c] sm:$0xf]
    %v372 = vld [vmem:[%s0] sm:$0xff]
    %v373 = vld [vmem:[%s0 + $0x8] sm:$0xff]
    %v374 = vld [vmem:[%s0 + $0x10] sm:$0xff]
    %v375 = vld [vmem:[%s0 + $0x18] sm:$0xf]
    %v376 = vld [vmem:[%s0 + $0x1c] sm:$0xff]
    %v377 = vld [vmem:[%s0 + $0x24] sm:$0xff]
    %v378 = vld [vmem:[%s0 + $0x2c] sm:$0xff]
    %v379 = vld [vmem:[%s0 + $0x34] sm:$0xf]
    %v380 = vld [vmem:[%s0 + $0x38] sm:$0xff]
    %v381 = vld [vmem:[%s0 + $0x40] sm:$0xff]
    %v382 = vld [vmem:[%s0 + $0x48] sm:$0xff]
    %v383 = vld [vmem:[%s0 + $0x50] sm:$0xf]
    %v384 = vld [vmem:[%s0 + $0x54] sm:$0xff]
    %v385 = vld [vmem:[%s0 + $0x5c] sm:$0xff]
    %v386 = vld [vmem:[%s0 + $0x64] sm:$0xff]
    %v387 = vld [vmem:[%s0 + $0x6c] sm:$0xf]
    %v396 = vunpack.c.l.b16 %v364
    %v397 = vunpack.c.l.b16 %v365
    %v398 = vunpack.c.l.b16 %v366
    %v399 = vunpack.c.l.b16 %v367
    %v400 = vunpack.c.l.b16 %v368
    %v401 = vunpack.c.l.b16 %v369
    %v402 = vunpack.c.l.b16 %v370
    %v403 = vunpack.c.l.b16 %v371
    %v404 = vpack.c.b16 %v397, %v396
    %v405 = vpack.c.b16 %v399, %v398
    %v406 = vpack.c.b16 %v401, %v400
    %v407 = vpack.c.b16 %v403, %v402
    %v424 = vunpack.c.l.b16 %v372
    %v425 = vunpack.c.h.b16 %v372
    %v426 = vunpack.c.l.b16 %v373
    %v427 = vunpack.c.h.b16 %v373
    %v428 = vunpack.c.l.b16 %v374
    %v429 = vunpack.c.h.b16 %v374
    %v430 = vunpack.c.l.b16 %v375
    %v431 = vunpack.c.l.b16 %v376
    %v432 = vunpack.c.h.b16 %v376
    %v433 = vunpack.c.l.b16 %v377
    %v434 = vunpack.c.h.b16 %v377
    %v435 = vunpack.c.l.b16 %v378
    %v436 = vunpack.c.h.b16 %v378
    %v437 = vunpack.c.l.b16 %v379
    %v438 = vunpack.c.l.b16 %v380
    %v439 = vunpack.c.h.b16 %v380
    %v440 = vunpack.c.l.b16 %v381
    %v441 = vunpack.c.h.b16 %v381
    %v442 = vunpack.c.l.b16 %v382
    %v443 = vunpack.c.h.b16 %v382
    %v444 = vunpack.c.l.b16 %v383
    %v445 = vunpack.c.l.b16 %v384
    %v446 = vunpack.c.h.b16 %v384
    %v447 = vunpack.c.l.b16 %v385
    %v448 = vunpack.c.h.b16 %v385
    %v449 = vunpack.c.l.b16 %v386
    %v450 = vunpack.c.h.b16 %v386
    %v451 = vunpack.c.l.b16 %v387
    %v452 = vpack.c.b16 %v431, %v424
    %v453 = vpack.c.b16 %v432, %v425
    %v454 = vpack.c.b16 %v433, %v426
    %v455 = vpack.c.b16 %v434, %v427
    %v456 = vpack.c.b16 %v435, %v428
    %v457 = vpack.c.b16 %v436, %v429
    %v458 = vpack.c.b16 %v437, %v430
    %v459 = vpack.c.b16 %v445, %v438
    %v460 = vpack.c.b16 %v446, %v439
    %v461 = vpack.c.b16 %v447, %v440
    %v462 = vpack.c.b16 %v448, %v441
    %v463 = vpack.c.b16 %v449, %v442
    %v464 = vpack.c.b16 %v450, %v443
    %v465 = vpack.c.b16 %v451, %v444
    %vm480 = vcmask 261120
    %v482 = vsel %vm480, %v404, 0
    %v485 = vsel %vm480, %v405, 0
    %v488 = vsel %vm480, %v406, 0
    %v491 = vsel %vm480, %v407, 0
    %493 = vmatprep.subr.bf16.mxu0 %v453
    %494 = vmatpush1.bf16.msra.mxu0 %v452
    %495 = vmatprep.subr.bf16.mxu0 %v460
    %496 = vmatpush1.bf16.msra.mxu0 %v459
    %497 = vmatprep.subr.bf16.mxu0 0
    %498 = vmatpush1.bf16.msra.mxu0 0
    %499 = vmatprep.subr.bf16.mxu0 0
    %500 = vmatpush1.bf16.msra.mxu0 0
    %501 = vmatprep.subr.bf16.mxu0 0
    %502 = vmatpush1.bf16.msra.mxu0 0
    %503 = vmatprep.subr.bf16.mxu0 0
    %504 = vmatpush1.bf16.msra.mxu0 0
    %505 = vmatprep.subr.bf16.mxu0 0
    %506 = vmatpush1.bf16.msra.mxu0 0
    %507 = vmatprep.subr.bf16.mxu0 0
    %508 = vmatpush1.bf16.msra.mxu0 0
    %509 = vmatprep.subr.bf16.mxu0 0
    %510 = vmatpush1.bf16.msra.mxu0 0
    %511 = vmatprep.subr.bf16.mxu0 0
    %512 = vmatpush1.bf16.msra.mxu0 0
    %513 = vmatprep.subr.bf16.mxu0 0
    %514 = vmatpush1.bf16.msra.mxu0 0
    %515 = vmatprep.subr.bf16.mxu0 0
    %516 = vmatpush1.bf16.msra.mxu0 0
    %517 = vmatprep.subr.bf16.mxu0 0
    %518 = vmatpush1.bf16.msra.mxu0 0
    %519 = vmatprep.subr.bf16.mxu0 0
    %520 = vmatpush1.bf16.msra.mxu0 0
    %521 = vmatprep.subr.bf16.mxu0 0
    %522 = vmatpush1.bf16.msra.mxu0 0
    %523 = vmatprep.subr.bf16.mxu0 0
    %524 = vmatpush1.bf16.msra.mxu0 0
    %525 = vmatprep.mubr.bf16.mxu0 0
    %526 = vmatmul.mubr.bf16.gmra.mrb[0].mxu0 %v482
    %v527 = vpop.f32.mrb[0].mxu0
    %v528 = vadd.f32 0.0, %v527
    %v529 = vpop.f32.mrb[0].mxu0
    %v530 = vadd.f32 0.0, %v529
    %v531 = vpop.f32.mrb[0].mxu0
    %v532 = vadd.f32 0.0, %v531
    %v533 = vpop.f32.mrb[0].mxu0
    %v534 = vadd.f32 0.0, %v533
    %535 = vmatprep.mubr.bf16.mxu0 0
    %536 = vmatmul.mubr.bf16.gmra.mrb[0].mxu0 %v485
    %v537 = vpop.f32.mrb[0].mxu0
    %v538 = vadd.f32 0.0, %v537
    %v539 = vpop.f32.mrb[0].mxu0
    %v540 = vadd.f32 0.0, %v539
    %v541 = vpop.f32.mrb[0].mxu0
    %v542 = vadd.f32 0.0, %v541
    %v543 = vpop.f32.mrb[0].mxu0
    %v544 = vadd.f32 0.0, %v543
    %545 = vmatprep.mubr.bf16.mxu0 0
    %546 = vmatmul.mubr.bf16.gmra.mrb[0].mxu0 %v488
    %v547 = vpop.f32.mrb[0].mxu0
    %v548 = vadd.f32 0.0, %v547
    %v549 = vpop.f32.mrb[0].mxu0
    %v550 = vadd.f32 0.0, %v549
    %v551 = vpop.f32.mrb[0].mxu0
    %v552 = vadd.f32 0.0, %v551
    %v553 = vpop.f32.mrb[0].mxu0
    %v554 = vadd.f32 0.0, %v553
    %555 = vmatprep.mubr.bf16.mxu0 0
    %556 = vmatmul.mubr.bf16.gmra.mrb[0].mxu0 %v491
    %v557 = vpop.f32.mrb[0].mxu0
    %v558 = vadd.f32 0.0, %v557
    %v559 = vpop.f32.mrb[0].mxu0
    %v560 = vadd.f32 0.0, %v559
    %v561 = vpop.f32.mrb[0].mxu0
    %v562 = vpop.f32.mrb[0].mxu0
    %v563 = vadd.f32 0.0, %v562
    %564 = vdwg.mxu0
    %565 = vmatprep.subr.bf16.mxu0 %v455
    %566 = vmatpush1.bf16.msra.mxu0 %v454
    %567 = vmatprep.subr.bf16.mxu0 %v462
    %568 = vmatpush1.bf16.msra.mxu0 %v461
    %569 = vmatprep.subr.bf16.mxu0 0
    %570 = vmatpush1.bf16.msra.mxu0 0
    %571 = vmatprep.subr.bf16.mxu0 0
    %572 = vmatpush1.bf16.msra.mxu0 0
    %573 = vmatprep.subr.bf16.mxu0 0
    %574 = vmatpush1.bf16.msra.mxu0 0
    %575 = vmatprep.subr.bf16.mxu0 0
    %576 = vmatpush1.bf16.msra.mxu0 0
    %577 = vmatprep.subr.bf16.mxu0 0
    %578 = vmatpush1.bf16.msra.mxu0 0
    %579 = vmatprep.subr.bf16.mxu0 0
    %580 = vmatpush1.bf16.msra.mxu0 0
    %581 = vmatprep.subr.bf16.mxu0 0
    %582 = vmatpush1.bf16.msra.mxu0 0
    %583 = vmatprep.subr.bf16.mxu0 0
    %584 = vmatpush1.bf16.msra.mxu0 0
    %585 = vmatprep.subr.bf16.mxu0 0
    %586 = vmatpush1.bf16.msra.mxu0 0
    %587 = vmatprep.subr.bf16.mxu0 0
    %588 = vmatpush1.bf16.msra.mxu0 0
    %589 = vmatprep.subr.bf16.mxu0 0
    %590 = vmatpush1.bf16.msra.mxu0 0
    %591 = vmatprep.subr.bf16.mxu0 0
    %592 = vmatpush1.bf16.msra.mxu0 0
    %593 = vmatprep.subr.bf16.mxu0 0
    %594 = vmatpush1.bf16.msra.mxu0 0
    %595 = vmatprep.subr.bf16.mxu0 0
    %596 = vmatpush1.bf16.msra.mxu0 0
    %597 = vmatprep.mubr.bf16.mxu0 0
    %598 = vmatmul.mubr.bf16.gmra.mrb[0].mxu0 %v482
    %v599 = vpop.f32.mrb[0].mxu0
    %v600 = vpop.f32.mrb[0].mxu0
    %v601 = vpop.f32.mrb[0].mxu0
    %v602 = vadd.f32 0.0, %v601
    %v603 = vpop.f32.mrb[0].mxu0
    %v604 = vadd.f32 0.0, %v603
    %605 = vmatprep.mubr.bf16.mxu0 0
    %606 = vmatmul.mubr.bf16.gmra.mrb[0].mxu0 %v485
    %v607 = vpop.f32.mrb[0].mxu0
    %v608 = vadd.f32 0.0, %v607
    %v609 = vpop.f32.mrb[0].mxu0
    %v610 = vadd.f32 0.0, %v609
    %v611 = vpop.f32.mrb[0].mxu0
    %v612 = vadd.f32 0.0, %v611
    %v613 = vpop.f32.mrb[0].mxu0
    %v614 = vadd.f32 0.0, %v613
    %615 = vmatprep.mubr.bf16.mxu0 0
    %616 = vmatmul.mubr.bf16.gmra.mrb[0].mxu0 %v488
    %v617 = vpop.f32.mrb[0].mxu0
    %v618 = vadd.f32 0.0, %v617
    %v619 = vpop.f32.mrb[0].mxu0
    %v620 = vadd.f32 0.0, %v619
    %v621 = vpop.f32.mrb[0].mxu0
    %v622 = vadd.f32 0.0, %v621
    %v623 = vpop.f32.mrb[0].mxu0
    %v624 = vadd.f32 0.0, %v623
    %625 = vmatprep.mubr.bf16.mxu0 0
    %626 = vmatmul.mubr.bf16.gmra.mrb[0].mxu0 %v491
    %v627 = vpop.f32.mrb[0].mxu0
    %v628 = vadd.f32 0.0, %v627
    %v629 = vpop.f32.mrb[0].mxu0
    %v630 = vadd.f32 0.0, %v629
    %v631 = vpop.f32.mrb[0].mxu0
    %v632 = vadd.f32 0.0, %v631
    %v633 = vpop.f32.mrb[0].mxu0
    %v634 = vadd.f32 0.0, %v633
    %635 = vdwg.mxu0
    %636 = vmatprep.subr.bf16.mxu0 %v457
    %637 = vmatpush1.bf16.msra.mxu0 %v456
    %638 = vmatprep.subr.bf16.mxu0 %v464
    %639 = vmatpush1.bf16.msra.mxu0 %v463
    %640 = vmatprep.subr.bf16.mxu0 0
    %641 = vmatpush1.bf16.msra.mxu0 0
    %642 = vmatprep.subr.bf16.mxu0 0
    %643 = vmatpush1.bf16.msra.mxu0 0
    %644 = vmatprep.subr.bf16.mxu0 0
    %645 = vmatpush1.bf16.msra.mxu0 0
    %646 = vmatprep.subr.bf16.mxu0 0
    %647 = vmatpush1.bf16.msra.mxu0 0
    %648 = vmatprep.subr.bf16.mxu0 0
    %649 = vmatpush1.bf16.msra.mxu0 0
    %650 = vmatprep.subr.bf16.mxu0 0
    %651 = vmatpush1.bf16.msra.mxu0 0
    %652 = vmatprep.subr.bf16.mxu0 0
    %653 = vmatpush1.bf16.msra.mxu0 0
    %654 = vmatprep.subr.bf16.mxu0 0
    %655 = vmatpush1.bf16.msra.mxu0 0
    %656 = vmatprep.subr.bf16.mxu0 0
    %657 = vmatpush1.bf16.msra.mxu0 0
    %658 = vmatprep.subr.bf16.mxu0 0
    %659 = vmatpush1.bf16.msra.mxu0 0
    %660 = vmatprep.subr.bf16.mxu0 0
    %661 = vmatpush1.bf16.msra.mxu0 0
    %662 = vmatprep.subr.bf16.mxu0 0
    %663 = vmatpush1.bf16.msra.mxu0 0
    %664 = vmatprep.subr.bf16.mxu0 0
    %665 = vmatpush1.bf16.msra.mxu0 0
    %666 = vmatprep.subr.bf16.mxu0 0
    %667 = vmatpush1.bf16.msra.mxu0 0
    %668 = vmatprep.mubr.bf16.mxu0 0
    %669 = vmatmul.mubr.bf16.gmra.mrb[0].mxu0 %v482
    %v670 = vpop.f32.mrb[0].mxu0
    %v671 = vpop.f32.mrb[0].mxu0
    %v672 = vpop.f32.mrb[0].mxu0
    %v673 = vadd.f32 0.0, %v672
    %v674 = vpop.f32.mrb[0].mxu0
    %v675 = vadd.f32 0.0, %v674
    %676 = vmatprep.mubr.bf16.mxu0 0
    %677 = vmatmul.mubr.bf16.gmra.mrb[0].mxu0 %v485
    %v678 = vpop.f32.mrb[0].mxu0
    %v679 = vadd.f32 0.0, %v678
    %v680 = vpop.f32.mrb[0].mxu0
    %v681 = vadd.f32 0.0, %v680
    %v682 = vpop.f32.mrb[0].mxu0
    %v683 = vadd.f32 0.0, %v682
    %v684 = vpop.f32.mrb[0].mxu0
    %v685 = vadd.f32 0.0, %v684
    %686 = vmatprep.mubr.bf16.mxu0 0
    %687 = vmatmul.mubr.bf16.gmra.mrb[0].mxu0 %v488
    %v688 = vpop.f32.mrb[0].mxu0
    %v689 = vadd.f32 0.0, %v688
    %v690 = vpop.f32.mrb[0].mxu0
    %v691 = vadd.f32 0.0, %v690
    %v692 = vpop.f32.mrb[0].mxu0
    %v693 = vadd.f32 0.0, %v692
    %v694 = vpop.f32.mrb[0].mxu0
    %v695 = vadd.f32 0.0, %v694
    %696 = vmatprep.mubr.bf16.mxu0 0
    %697 = vmatmul.mubr.bf16.gmra.mrb[0].mxu0 %v491
    %v698 = vpop.f32.mrb[0].mxu0
    %v699 = vadd.f32 0.0, %v698
    %v700 = vpop.f32.mrb[0].mxu0
    %v701 = vadd.f32 0.0, %v700
    %v702 = vpop.f32.mrb[0].mxu0
    %v703 = vadd.f32 0.0, %v702
    %v704 = vpop.f32.mrb[0].mxu0
    %v705 = vadd.f32 0.0, %v704
    %706 = vdwg.mxu0
    %707 = vmatprep.subr.bf16.mxu0 0
    %708 = vmatpush1.bf16.msra.mxu0 %v458
    %709 = vmatprep.subr.bf16.mxu0 0
    %710 = vmatpush1.bf16.msra.mxu0 %v465
    %711 = vmatprep.subr.bf16.mxu0 0
    %712 = vmatpush1.bf16.msra.mxu0 0
    %713 = vmatprep.subr.bf16.mxu0 0
    %714 = vmatpush1.bf16.msra.mxu0 0
    %715 = vmatprep.subr.bf16.mxu0 0
    %716 = vmatpush1.bf16.msra.mxu0 0
    %717 = vmatprep.subr.bf16.mxu0 0
    %718 = vmatpush1.bf16.msra.mxu0 0
    %719 = vmatprep.subr.bf16.mxu0 0
    %720 = vmatpush1.bf16.msra.mxu0 0
    %721 = vmatprep.subr.bf16.mxu0 0
    %722 = vmatpush1.bf16.msra.mxu0 0
    %723 = vmatprep.subr.bf16.mxu0 0
    %724 = vmatpush1.bf16.msra.mxu0 0
    %725 = vmatprep.subr.bf16.mxu0 0
    %726 = vmatpush1.bf16.msra.mxu0 0
    %727 = vmatprep.subr.bf16.mxu0 0
    %728 = vmatpush1.bf16.msra.mxu0 0
    %729 = vmatprep.subr.bf16.mxu0 0
    %730 = vmatpush1.bf16.msra.mxu0 0
    %731 = vmatprep.subr.bf16.mxu0 0
    %732 = vmatpush1.bf16.msra.mxu0 0
    %733 = vmatprep.subr.bf16.mxu0 0
    %734 = vmatpush1.bf16.msra.mxu0 0
    %735 = vmatprep.subr.bf16.mxu0 0
    %736 = vmatpush1.bf16.msra.mxu0 0
    %737 = vmatprep.subr.bf16.mxu0 0
    %738 = vmatpush1.bf16.msra.mxu0 0
    %739 = vmatprep.mubr.bf16.mxu0 0
    %740 = vmatmul.mubr.bf16.gmra.mrb[0].mxu0 %v482
    %v741 = vpop.f32.mrb[0].mxu0
    %v742 = vpop.f32.mrb[0].mxu0
    %v743 = vpop.f32.mrb[0].mxu0
    %v744 = vadd.f32 0.0, %v743
    %v745 = vpop.f32.mrb[0].mxu0
    %746 = vmatprep.mubr.bf16.mxu0 0
    %747 = vmatmul.mubr.bf16.gmra.mrb[0].mxu0 %v485
    %v748 = vpop.f32.mrb[0].mxu0
    %v749 = vadd.f32 0.0, %v748
    %v750 = vpop.f32.mrb[0].mxu0
    %v751 = vpop.f32.mrb[0].mxu0
    %v752 = vadd.f32 0.0, %v751
    %v753 = vpop.f32.mrb[0].mxu0
    %754 = vmatprep.mubr.bf16.mxu0 0
    %755 = vmatmul.mubr.bf16.gmra.mrb[0].mxu0 %v488
    %v756 = vpop.f32.mrb[0].mxu0
    %v757 = vadd.f32 0.0, %v756
    %v758 = vpop.f32.mrb[0].mxu0
    %v759 = vpop.f32.mrb[0].mxu0
    %v760 = vadd.f32 0.0, %v759
    %v761 = vpop.f32.mrb[0].mxu0
    %762 = vmatprep.mubr.bf16.mxu0 0
    %763 = vmatmul.mubr.bf16.gmra.mrb[0].mxu0 %v491
    %v764 = vpop.f32.mrb[0].mxu0
    %v765 = vadd.f32 0.0, %v764
    %v766 = vpop.f32.mrb[0].mxu0
    %v767 = vpop.f32.mrb[0].mxu0
    %v768 = vadd.f32 0.0, %v767
    %v769 = vpop.f32.mrb[0].mxu0
    %770 = vdwg.mxu0
    %v772 = vlaneseq
    %v773 = vshrl.u32 %v772, 7
    %v774 = vsub.s32 0, %v773
    %v775 = vrot.slane %v363, %v774
    %v776 = vlaneseq
    %v777 = vshrl.u32 %v776, 7
    %v778 = vsub.s32 1, %v777
    %v779 = vrot.slane %v363, %v778
    %v782 = vadd.f32 %v775, %v528
    %v783 = vadd.f32 %v779, %v530
    %v784 = vadd.f32 %v775, %v532
    %v785 = vadd.f32 %v779, %v534
    %v786 = vadd.f32 %v775, %v538
    %v787 = vadd.f32 %v779, %v540
    %v788 = vadd.f32 %v775, %v542
    %v789 = vadd.f32 %v779, %v544
    %v790 = vadd.f32 %v775, %v548
    %v791 = vadd.f32 %v779, %v550
    %v792 = vadd.f32 %v775, %v552
    %v793 = vadd.f32 %v779, %v554
    %v794 = vadd.f32 %v775, %v558
    %v795 = vadd.f32 %v779, %v560
    %810 = vrot.lane.b32.xlu0 %v675, 96
    %v811 = vpop.permute.xlu0 %810
    %812 = vrot.lane.b32.xlu0 %v744, 96
    %v813 = vpop.permute.xlu0 %812
    %814 = vrot.lane.b32.xlu0 %v681, 96
    %v815 = vpop.permute.xlu0 %814
    %816 = vrot.lane.b32.xlu0 %v749, 96
    %v817 = vpop.permute.xlu0 %816
    %818 = vrot.lane.b32.xlu0 %v685, 96
    %v819 = vpop.permute.xlu0 %818
    %820 = vrot.lane.b32.xlu0 %v752, 96
    %v821 = vpop.permute.xlu0 %820
    %822 = vrot.lane.b32.xlu0 %v691, 96
    %v823 = vpop.permute.xlu0 %822
    %824 = vrot.lane.b32.xlu0 %v757, 96
    %v825 = vpop.permute.xlu0 %824
    %826 = vrot.lane.b32.xlu0 %v695, 96
    %v827 = vpop.permute.xlu0 %826
    %828 = vrot.lane.b32.xlu0 %v760, 96
    %v829 = vpop.permute.xlu0 %828
    %830 = vrot.lane.b32.xlu0 %v701, 96
    %v831 = vpop.permute.xlu0 %830
    %832 = vrot.lane.b32.xlu0 %v765, 96
    %v833 = vpop.permute.xlu0 %832
    %834 = vrot.lane.b32.xlu0 %v705, 96
    %v835 = vpop.permute.xlu0 %834
    %836 = vrot.lane.b32.xlu0 %v768, 96
    %v837 = vpop.permute.xlu0 %836
    %vm838 = vcmask 785408
    %v839 = vsel %vm838, %v811, %v813
    %v840 = vsel %vm838, %v815, %v817
    %v841 = vsel %vm838, %v819, %v821
    %v842 = vsel %vm838, %v823, %v825
    %v843 = vsel %vm838, %v827, %v829
    %v844 = vsel %vm838, %v831, %v833
    %v845 = vsel %vm838, %v835, %v837
    %v860 = vadd.f32 %v782, %v839
    %v861 = vadd.f32 %v783, %v813
    %v862 = vadd.f32 %v784, %v840
    %v863 = vadd.f32 %v785, %v817
    %v864 = vadd.f32 %v786, %v841
    %v865 = vadd.f32 %v787, %v821
    %v866 = vadd.f32 %v788, %v842
    %v867 = vadd.f32 %v789, %v825
    %v868 = vadd.f32 %v790, %v843
    %v869 = vadd.f32 %v791, %v829
    %v870 = vadd.f32 %v792, %v844
    %v871 = vadd.f32 %v793, %v833
    %v872 = vadd.f32 %v794, %v845
    %v873 = vadd.f32 %v795, %v837
    %888 = vrot.lane.b32.xlu0 %v604, 8
    %v889 = vpop.permute.xlu0 %888
    %890 = vrot.lane.b32.xlu0 %v673, 8
    %v891 = vpop.permute.xlu0 %890
    %892 = vrot.lane.b32.xlu0 %v675, 8
    %v893 = vpop.permute.xlu0 %892
    %894 = vrot.lane.b32.xlu0 %v610, 8
    %v895 = vpop.permute.xlu0 %894
    %896 = vrot.lane.b32.xlu0 %v679, 8
    %v897 = vpop.permute.xlu0 %896
    %898 = vrot.lane.b32.xlu0 %v681, 8
    %v899 = vpop.permute.xlu0 %898
    %900 = vrot.lane.b32.xlu0 %v614, 8
    %v901 = vpop.permute.xlu0 %900
    %902 = vrot.lane.b32.xlu0 %v683, 8
    %v903 = vpop.permute.xlu0 %902
    %904 = vrot.lane.b32.xlu0 %v685, 8
    %v905 = vpop.permute.xlu0 %904
    %906 = vrot.lane.b32.xlu0 %v620, 8
    %v907 = vpop.permute.xlu0 %906
    %908 = vrot.lane.b32.xlu0 %v689, 8
    %v909 = vpop.permute.xlu0 %908
    %910 = vrot.lane.b32.xlu0 %v691, 8
    %v911 = vpop.permute.xlu0 %910
    %912 = vrot.lane.b32.xlu0 %v624, 8
    %v913 = vpop.permute.xlu0 %912
    %914 = vrot.lane.b32.xlu0 %v693, 8
    %v915 = vpop.permute.xlu0 %914
    %916 = vrot.lane.b32.xlu0 %v695, 8
    %v917 = vpop.permute.xlu0 %916
    %918 = vrot.lane.b32.xlu0 %v630, 8
    %v919 = vpop.permute.xlu0 %918
    %920 = vrot.lane.b32.xlu0 %v699, 8
    %v921 = vpop.permute.xlu0 %920
    %922 = vrot.lane.b32.xlu0 %v701, 8
    %v923 = vpop.permute.xlu0 %922
    %924 = vrot.lane.b32.xlu0 %v634, 8
    %v925 = vpop.permute.xlu0 %924
    %926 = vrot.lane.b32.xlu0 %v703, 8
    %v927 = vpop.permute.xlu0 %926
    %928 = vrot.lane.b32.xlu0 %v705, 8
    %v929 = vpop.permute.xlu0 %928
    %vm930 = vcmask 64512
    %v931 = vsel %vm930, %v889, %v891
    %v932 = vsel %vm930, %v891, %v893
    %v933 = vsel %vm930, %v895, %v897
    %v934 = vsel %vm930, %v897, %v899
    %v935 = vsel %vm930, %v901, %v903
    %v936 = vsel %vm930, %v903, %v905
    %v937 = vsel %vm930, %v907, %v909
    %v938 = vsel %vm930, %v909, %v911
    %v939 = vsel %vm930, %v913, %v915
    %v940 = vsel %vm930, %v915, %v917
    %v941 = vsel %vm930, %v919, %v921
    %v942 = vsel %vm930, %v921, %v923
    %v943 = vsel %vm930, %v925, %v927
    %v944 = vsel %vm930, %v927, %v929
    %v959 = vadd.f32 %v775, %v931
    %v960 = vadd.f32 %v779, %v932
    %v961 = vadd.f32 %v775, %v933
    %v962 = vadd.f32 %v779, %v934
    %v963 = vadd.f32 %v775, %v935
    %v964 = vadd.f32 %v779, %v936
    %v965 = vadd.f32 %v775, %v937
    %v966 = vadd.f32 %v779, %v938
    %v967 = vadd.f32 %v775, %v939
    %v968 = vadd.f32 %v779, %v940
    %v969 = vadd.f32 %v775, %v941
    %v970 = vadd.f32 %v779, %v942
    %v971 = vadd.f32 %v775, %v943
    %v972 = vadd.f32 %v779, %v944
    %980 = vrot.lane.b32.xlu0 %v602, 48
    %v981 = vpop.permute.xlu0 %980
    %982 = vrot.lane.b32.xlu0 %v604, 48
    %v983 = vpop.permute.xlu0 %982
    %984 = vrot.lane.b32.xlu0 %v608, 48
    %v985 = vpop.permute.xlu0 %984
    %986 = vrot.lane.b32.xlu0 %v610, 48
    %v987 = vpop.permute.xlu0 %986
    %988 = vrot.lane.b32.xlu0 %v612, 48
    %v989 = vpop.permute.xlu0 %988
    %990 = vrot.lane.b32.xlu0 %v614, 48
    %v991 = vpop.permute.xlu0 %990
    %992 = vrot.lane.b32.xlu0 %v618, 48
    %v993 = vpop.permute.xlu0 %992
    %994 = vrot.lane.b32.xlu0 %v620, 48
    %v995 = vpop.permute.xlu0 %994
    %996 = vrot.lane.b32.xlu0 %v622, 48
    %v997 = vpop.permute.xlu0 %996
    %998 = vrot.lane.b32.xlu0 %v624, 48
    %v999 = vpop.permute.xlu0 %998
    %1000 = vrot.lane.b32.xlu0 %v628, 48
    %v1001 = vpop.permute.xlu0 %1000
    %1002 = vrot.lane.b32.xlu0 %v630, 48
    %v1003 = vpop.permute.xlu0 %1002
    %1004 = vrot.lane.b32.xlu0 %v632, 48
    %v1005 = vpop.permute.xlu0 %1004
    %1006 = vrot.lane.b32.xlu0 %v634, 48
    %v1007 = vpop.permute.xlu0 %1006
    %vm1008 = vcmask 392192
    %v1009 = vsel %vm1008, %v981, %v983
    %v1010 = vsel %vm1008, %v985, %v987
    %v1011 = vsel %vm1008, %v989, %v991
    %v1012 = vsel %vm1008, %v993, %v995
    %v1013 = vsel %vm1008, %v997, %v999
    %v1014 = vsel %vm1008, %v1001, %v1003
    %v1015 = vsel %vm1008, %v1005, %v1007
    %v1030 = vadd.f32 %v775, %v1009
    %v1031 = vadd.f32 %v779, %v983
    %v1032 = vadd.f32 %v775, %v1010
    %v1033 = vadd.f32 %v779, %v987
    %v1034 = vadd.f32 %v775, %v1011
    %v1035 = vadd.f32 %v779, %v991
    %v1036 = vadd.f32 %v775, %v1012
    %v1037 = vadd.f32 %v779, %v995
    %v1038 = vadd.f32 %v775, %v1013
    %v1039 = vadd.f32 %v779, %v999
    %v1040 = vadd.f32 %v775, %v1014
    %v1041 = vadd.f32 %v779, %v1003
    %v1042 = vadd.f32 %v775, %v1015
    %v1043 = vadd.f32 %v779, %v1007
    %1051 = vrot.lane.b32.xlu0 %v534, 88
    %v1052 = vpop.permute.xlu0 %1051
    %1053 = vrot.lane.b32.xlu0 %v602, 88
    %v1054 = vpop.permute.xlu0 %1053
    %1055 = vrot.lane.b32.xlu0 %v540, 88
    %v1056 = vpop.permute.xlu0 %1055
    %1057 = vrot.lane.b32.xlu0 %v608, 88
    %v1058 = vpop.permute.xlu0 %1057
    %1059 = vrot.lane.b32.xlu0 %v544, 88
    %v1060 = vpop.permute.xlu0 %1059
    %1061 = vrot.lane.b32.xlu0 %v612, 88
    %v1062 = vpop.permute.xlu0 %1061
    %1063 = vrot.lane.b32.xlu0 %v550, 88
    %v1064 = vpop.permute.xlu0 %1063
    %1065 = vrot.lane.b32.xlu0 %v618, 88
    %v1066 = vpop.permute.xlu0 %1065
    %1067 = vrot.lane.b32.xlu0 %v554, 88
    %v1068 = vpop.permute.xlu0 %1067
    %1069 = vrot.lane.b32.xlu0 %v622, 88
    %v1070 = vpop.permute.xlu0 %1069
    %1071 = vrot.lane.b32.xlu0 %v560, 88
    %v1072 = vpop.permute.xlu0 %1071
    %1073 = vrot.lane.b32.xlu0 %v628, 88
    %v1074 = vpop.permute.xlu0 %1073
    %1075 = vrot.lane.b32.xlu0 %v563, 88
    %v1076 = vpop.permute.xlu0 %1075
    %1077 = vrot.lane.b32.xlu0 %v632, 88
    %v1078 = vpop.permute.xlu0 %1077
    %vm1079 = vcmask 719872
    %v1080 = vsel %vm1079, %v1052, %v1054
    %v1081 = vsel %vm1079, %v1056, %v1058
    %v1082 = vsel %vm1079, %v1060, %v1062
    %v1083 = vsel %vm1079, %v1064, %v1066
    %v1084 = vsel %vm1079, %v1068, %v1070
    %v1085 = vsel %vm1079, %v1072, %v1074
    %v1086 = vsel %vm1079, %v1076, %v1078
    %v1101 = vadd.f32 %v775, %v1080
    %v1102 = vadd.f32 %v779, %v1054
    %v1103 = vadd.f32 %v775, %v1081
    %v1104 = vadd.f32 %v779, %v1058
    %v1105 = vadd.f32 %v775, %v1082
    %v1106 = vadd.f32 %v779, %v1062
    %v1107 = vadd.f32 %v775, %v1083
    %v1108 = vadd.f32 %v779, %v1066
    %v1109 = vadd.f32 %v775, %v1084
    %v1110 = vadd.f32 %v779, %v1070
    %v1111 = vadd.f32 %v775, %v1085
    %v1112 = vadd.f32 %v779, %v1074
    %v1113 = vadd.f32 %v775, %v1086
    %v1114 = vadd.f32 %v779, %v1078
    %s1115 = scalar_lea.vmem [#allocation10], 32
    %v1116 = vld [vmem:[%s1115] sm:$0xf]
    %v1117 = vld [vmem:[%s1115 + $0x4] sm:$0xf]
    %v1118 = vld [vmem:[%s1115 + $0x8] sm:$0xf]
    %v1119 = vld [vmem:[%s1115 + $0xc] sm:$0xf]
    %v1120 = vld [vmem:[%s1115 + $0x10] sm:$0xf]
    %v1121 = vld [vmem:[%s1115 + $0x14] sm:$0xf]
    %v1122 = vld [vmem:[%s1115 + $0x18] sm:$0xf]
    %v1123 = vld [vmem:[%s1115 + $0x1c] sm:$0xf]
    %v1132 = vunpack.c.l.b16 %v1116
    %v1133 = vunpack.c.l.b16 %v1117
    %v1134 = vunpack.c.l.b16 %v1118
    %v1135 = vunpack.c.l.b16 %v1119
    %v1136 = vunpack.c.l.b16 %v1120
    %v1137 = vunpack.c.l.b16 %v1121
    %v1138 = vunpack.c.l.b16 %v1122
    %v1139 = vunpack.c.l.b16 %v1123
    %v1140 = vpack.c.b16 %v1133, %v1132
    %v1141 = vpack.c.b16 %v1135, %v1134
    %v1142 = vpack.c.b16 %v1137, %v1136
    %v1143 = vpack.c.b16 %v1139, %v1138
    %v1145 = vsel %vm480, %v1140, 0
    %v1148 = vsel %vm480, %v1141, 0
    %v1151 = vsel %vm480, %v1142, 0
    %v1154 = vsel %vm480, %v1143, 0
    %1156 = vmatprep.subr.bf16.mxu0 %v453
    %1157 = vmatpush1.bf16.msra.mxu0 %v452
    %1158 = vmatprep.subr.bf16.mxu0 %v460
    %1159 = vmatpush1.bf16.msra.mxu0 %v459
    %1160 = vmatprep.subr.bf16.mxu0 0
    %1161 = vmatpush1.bf16.msra.mxu0 0
    %1162 = vmatprep.subr.bf16.mxu0 0
    %1163 = vmatpush1.bf16.msra.mxu0 0
    %1164 = vmatprep.subr.bf16.mxu0 0
    %1165 = vmatpush1.bf16.msra.mxu0 0
    %1166 = vmatprep.subr.bf16.mxu0 0
    %1167 = vmatpush1.bf16.msra.mxu0 0
    %1168 = vmatprep.subr.bf16.mxu0 0
    %1169 = vmatpush1.bf16.msra.mxu0 0
    %1170 = vmatprep.subr.bf16.mxu0 0
    %1171 = vmatpush1.bf16.msra.mxu0 0
    %1172 = vmatprep.subr.bf16.mxu0 0
    %1173 = vmatpush1.bf16.msra.mxu0 0
    %1174 = vmatprep.subr.bf16.mxu0 0
    %1175 = vmatpush1.bf16.msra.mxu0 0
    %1176 = vmatprep.subr.bf16.mxu0 0
    %1177 = vmatpush1.bf16.msra.mxu0 0
    %1178 = vmatprep.subr.bf16.mxu0 0
    %1179 = vmatpush1.bf16.msra.mxu0 0
    %1180 = vmatprep.subr.bf16.mxu0 0
    %1181 = vmatpush1.bf16.msra.mxu0 0
    %1182 = vmatprep.subr.bf16.mxu0 0
    %1183 = vmatpush1.bf16.msra.mxu0 0
    %1184 = vmatprep.subr.bf16.mxu0 0
    %1185 = vmatpush1.bf16.msra.mxu0 0
    %1186 = vmatprep.subr.bf16.mxu0 0
    %1187 = vmatpush1.bf16.msra.mxu0 0
    %1188 = vmatprep.mubr.bf16.mxu0 0
    %1189 = vmatmul.mubr.bf16.gmra.mrb[0].mxu0 %v1145
    %v1190 = vpop.f32.mrb[0].mxu0
    %v1191 = vadd.f32 0.0, %v1190
    %v1192 = vpop.f32.mrb[0].mxu0
    %v1193 = vadd.f32 0.0, %v1192
    %v1194 = vpop.f32.mrb[0].mxu0
    %v1195 = vadd.f32 0.0, %v1194
    %v1196 = vpop.f32.mrb[0].mxu0
    %v1197 = vadd.f32 0.0, %v1196
    %1198 = vmatprep.mubr.bf16.mxu0 0
    %1199 = vmatmul.mubr.bf16.gmra.mrb[0].mxu0 %v1148
    %v1200 = vpop.f32.mrb[0].mxu0
    %v1201 = vadd.f32 0.0, %v1200
    %v1202 = vpop.f32.mrb[0].mxu0
    %v1203 = vadd.f32 0.0, %v1202
    %v1204 = vpop.f32.mrb[0].mxu0
    %v1205 = vadd.f32 0.0, %v1204
    %v1206 = vpop.f32.mrb[0].mxu0
    %v1207 = vadd.f32 0.0, %v1206
    %1208 = vmatprep.mubr.bf16.mxu0 0
    %1209 = vmatmul.mubr.bf16.gmra.mrb[0].mxu0 %v1151
    %v1210 = vpop.f32.mrb[0].mxu0
    %v1211 = vadd.f32 0.0, %v1210
    %v1212 = vpop.f32.mrb[0].mxu0
    %v1213 = vadd.f32 0.0, %v1212
    %v1214 = vpop.f32.mrb[0].mxu0
    %v1215 = vadd.f32 0.0, %v1214
    %v1216 = vpop.f32.mrb[0].mxu0
    %v1217 = vadd.f32 0.0, %v1216
    %1218 = vmatprep.mubr.bf16.mxu0 0
    %1219 = vmatmul.mubr.bf16.gmra.mrb[0].mxu0 %v1154
    %v1220 = vpop.f32.mrb[0].mxu0
    %v1221 = vadd.f32 0.0, %v1220
    %v1222 = vpop.f32.mrb[0].mxu0
    %v1223 = vadd.f32 0.0, %v1222
    %v1224 = vpop.f32.mrb[0].mxu0
    %v1225 = vpop.f32.mrb[0].mxu0
    %1226 = vdwg.mxu0
    %1227 = vmatprep.subr.bf16.mxu0 %v455
    %1228 = vmatpush1.bf16.msra.mxu0 %v454
    %1229 = vmatprep.subr.bf16.mxu0 %v462
    %1230 = vmatpush1.bf16.msra.mxu0 %v461
    %1231 = vmatprep.subr.bf16.mxu0 0
    %1232 = vmatpush1.bf16.msra.mxu0 0
    %1233 = vmatprep.subr.bf16.mxu0 0
    %1234 = vmatpush1.bf16.msra.mxu0 0
    %1235 = vmatprep.subr.bf16.mxu0 0
    %1236 = vmatpush1.bf16.msra.mxu0 0
    %1237 = vmatprep.subr.bf16.mxu0 0
    %1238 = vmatpush1.bf16.msra.mxu0 0
    %1239 = vmatprep.subr.bf16.mxu0 0
    %1240 = vmatpush1.bf16.msra.mxu0 0
    %1241 = vmatprep.subr.bf16.mxu0 0
    %1242 = vmatpush1.bf16.msra.mxu0 0
    %1243 = vmatprep.subr.bf16.mxu0 0
    %1244 = vmatpush1.bf16.msra.mxu0 0
    %1245 = vmatprep.subr.bf16.mxu0 0
    %1246 = vmatpush1.bf16.msra.mxu0 0
    %1247 = vmatprep.subr.bf16.mxu0 0
    %1248 = vmatpush1.bf16.msra.mxu0 0
    %1249 = vmatprep.subr.bf16.mxu0 0
    %1250 = vmatpush1.bf16.msra.mxu0 0
    %1251 = vmatprep.subr.bf16.mxu0 0
    %1252 = vmatpush1.bf16.msra.mxu0 0
    %1253 = vmatprep.subr.bf16.mxu0 0
    %1254 = vmatpush1.bf16.msra.mxu0 0
    %1255 = vmatprep.subr.bf16.mxu0 0
    %1256 = vmatpush1.bf16.msra.mxu0 0
    %1257 = vmatprep.subr.bf16.mxu0 0
    %1258 = vmatpush1.bf16.msra.mxu0 0
    %1259 = vmatprep.mubr.bf16.mxu0 0
    %1260 = vmatmul.mubr.bf16.gmra.mrb[0].mxu0 %v1145
    %v1261 = vpop.f32.mrb[0].mxu0
    %v1262 = vadd.f32 0.0, %v1261
    %v1263 = vpop.f32.mrb[0].mxu0
    %v1264 = vpop.f32.mrb[0].mxu0
    %v1265 = vadd.f32 0.0, %v1264
    %v1266 = vpop.f32.mrb[0].mxu0
    %v1267 = vadd.f32 0.0, %v1266
    %1268 = vmatprep.mubr.bf16.mxu0 0
    %1269 = vmatmul.mubr.bf16.gmra.mrb[0].mxu0 %v1148
    %v1270 = vpop.f32.mrb[0].mxu0
    %v1271 = vadd.f32 0.0, %v1270
    %v1272 = vpop.f32.mrb[0].mxu0
    %v1273 = vadd.f32 0.0, %v1272
    %v1274 = vpop.f32.mrb[0].mxu0
    %v1275 = vadd.f32 0.0, %v1274
    %v1276 = vpop.f32.mrb[0].mxu0
    %v1277 = vadd.f32 0.0, %v1276
    %1278 = vmatprep.mubr.bf16.mxu0 0
    %1279 = vmatmul.mubr.bf16.gmra.mrb[0].mxu0 %v1151
    %v1280 = vpop.f32.mrb[0].mxu0
    %v1281 = vadd.f32 0.0, %v1280
    %v1282 = vpop.f32.mrb[0].mxu0
    %v1283 = vadd.f32 0.0, %v1282
    %v1284 = vpop.f32.mrb[0].mxu0
    %v1285 = vadd.f32 0.0, %v1284
    %v1286 = vpop.f32.mrb[0].mxu0
    %v1287 = vadd.f32 0.0, %v1286
    %1288 = vmatprep.mubr.bf16.mxu0 0
    %1289 = vmatmul.mubr.bf16.gmra.mrb[0].mxu0 %v1154
    %v1290 = vpop.f32.mrb[0].mxu0
    %v1291 = vadd.f32 0.0, %v1290
    %v1292 = vpop.f32.mrb[0].mxu0
    %v1293 = vadd.f32 0.0, %v1292
    %v1294 = vpop.f32.mrb[0].mxu0
    %v1295 = vadd.f32 0.0, %v1294
    %v1296 = vpop.f32.mrb[0].mxu0
    %v1297 = vadd.f32 0.0, %v1296
    %1298 = vdwg.mxu0
    %1299 = vmatprep.subr.bf16.mxu0 %v457
    %1300 = vmatpush1.bf16.msra.mxu0 %v456
    %1301 = vmatprep.subr.bf16.mxu0 %v464
    %1302 = vmatpush1.bf16.msra.mxu0 %v463
    %1303 = vmatprep.subr.bf16.mxu0 0
    %1304 = vmatpush1.bf16.msra.mxu0 0
    %1305 = vmatprep.subr.bf16.mxu0 0
    %1306 = vmatpush1.bf16.msra.mxu0 0
    %1307 = vmatprep.subr.bf16.mxu0 0
    %1308 = vmatpush1.bf16.msra.mxu0 0
    %1309 = vmatprep.subr.bf16.mxu0 0
    %1310 = vmatpush1.bf16.msra.mxu0 0
    %1311 = vmatprep.subr.bf16.mxu0 0
    %1312 = vmatpush1.bf16.msra.mxu0 0
    %1313 = vmatprep.subr.bf16.mxu0 0
    %1314 = vmatpush1.bf16.msra.mxu0 0
    %1315 = vmatprep.subr.bf16.mxu0 0
    %1316 = vmatpush1.bf16.msra.mxu0 0
    %1317 = vmatprep.subr.bf16.mxu0 0
    %1318 = vmatpush1.bf16.msra.mxu0 0
    %1319 = vmatprep.subr.bf16.mxu0 0
    %1320 = vmatpush1.bf16.msra.mxu0 0
    %1321 = vmatprep.subr.bf16.mxu0 0
    %1322 = vmatpush1.bf16.msra.mxu0 0
    %1323 = vmatprep.subr.bf16.mxu0 0
    %1324 = vmatpush1.bf16.msra.mxu0 0
    %1325 = vmatprep.subr.bf16.mxu0 0
    %1326 = vmatpush1.bf16.msra.mxu0 0
    %1327 = vmatprep.subr.bf16.mxu0 0
    %1328 = vmatpush1.bf16.msra.mxu0 0
    %1329 = vmatprep.subr.bf16.mxu0 0
    %1330 = vmatpush1.bf16.msra.mxu0 0
    %1331 = vmatprep.mubr.bf16.mxu0 0
    %1332 = vmatmul.mubr.bf16.gmra.mrb[0].mxu0 %v1145
    %v1333 = vpop.f32.mrb[0].mxu0
    %v1334 = vpop.f32.mrb[0].mxu0
    %v1335 = vpop.f32.mrb[0].mxu0
    %v1336 = vadd.f32 0.0, %v1335
    %v1337 = vpop.f32.mrb[0].mxu0
    %v1338 = vadd.f32 0.0, %v1337
    %1339 = vmatprep.mubr.bf16.mxu0 0
    %1340 = vmatmul.mubr.bf16.gmra.mrb[0].mxu0 %v1148
    %v1341 = vpop.f32.mrb[0].mxu0
    %v1342 = vadd.f32 0.0, %v1341
    %v1343 = vpop.f32.mrb[0].mxu0
    %v1344 = vadd.f32 0.0, %v1343
    %v1345 = vpop.f32.mrb[0].mxu0
    %v1346 = vadd.f32 0.0, %v1345
    %v1347 = vpop.f32.mrb[0].mxu0
    %v1348 = vadd.f32 0.0, %v1347
    %1349 = vmatprep.mubr.bf16.mxu0 0
    %1350 = vmatmul.mubr.bf16.gmra.mrb[0].mxu0 %v1151
    %v1351 = vpop.f32.mrb[0].mxu0
    %v1352 = vadd.f32 0.0, %v1351
    %v1353 = vpop.f32.mrb[0].mxu0
    %v1354 = vadd.f32 0.0, %v1353
    %v1355 = vpop.f32.mrb[0].mxu0
    %v1356 = vadd.f32 0.0, %v1355
    %v1357 = vpop.f32.mrb[0].mxu0
    %v1358 = vadd.f32 0.0, %v1357
    %1359 = vmatprep.mubr.bf16.mxu0 0
    %1360 = vmatmul.mubr.bf16.gmra.mrb[0].mxu0 %v1154
    %v1361 = vpop.f32.mrb[0].mxu0
    %v1362 = vadd.f32 0.0, %v1361
    %v1363 = vpop.f32.mrb[0].mxu0
    %v1364 = vadd.f32 0.0, %v1363
    %v1365 = vpop.f32.mrb[0].mxu0
    %v1366 = vadd.f32 0.0, %v1365
    %v1367 = vpop.f32.mrb[0].mxu0
    %v1368 = vadd.f32 0.0, %v1367
    %1369 = vdwg.mxu0
    %1370 = vmatprep.subr.bf16.mxu0 0
    %1371 = vmatpush1.bf16.msra.mxu0 %v458
    %1372 = vmatprep.subr.bf16.mxu0 0
    %1373 = vmatpush1.bf16.msra.mxu0 %v465
    %1374 = vmatprep.subr.bf16.mxu0 0
    %1375 = vmatpush1.bf16.msra.mxu0 0
    %1376 = vmatprep.subr.bf16.mxu0 0
    %1377 = vmatpush1.bf16.msra.mxu0 0
    %1378 = vmatprep.subr.bf16.mxu0 0
    %1379 = vmatpush1.bf16.msra.mxu0 0
    %1380 = vmatprep.subr.bf16.mxu0 0
    %1381 = vmatpush1.bf16.msra.mxu0 0
    %1382 = vmatprep.subr.bf16.mxu0 0
    %1383 = vmatpush1.bf16.msra.mxu0 0
    %1384 = vmatprep.subr.bf16.mxu0 0
    %1385 = vmatpush1.bf16.msra.mxu0 0
    %1386 = vmatprep.subr.bf16.mxu0 0
    %1387 = vmatpush1.bf16.msra.mxu0 0
    %1388 = vmatprep.subr.bf16.mxu0 0
    %1389 = vmatpush1.bf16.msra.mxu0 0
    %1390 = vmatprep.subr.bf16.mxu0 0
    %1391 = vmatpush1.bf16.msra.mxu0 0
    %1392 = vmatprep.subr.bf16.mxu0 0
    %1393 = vmatpush1.bf16.msra.mxu0 0
    %1394 = vmatprep.subr.bf16.mxu0 0
    %1395 = vmatpush1.bf16.msra.mxu0 0
    %1396 = vmatprep.subr.bf16.mxu0 0
    %1397 = vmatpush1.bf16.msra.mxu0 0
    %1398 = vmatprep.subr.bf16.mxu0 0
    %1399 = vmatpush1.bf16.msra.mxu0 0
    %1400 = vmatprep.subr.bf16.mxu0 0
    %1401 = vmatpush1.bf16.msra.mxu0 0
    %1402 = vmatprep.mubr.bf16.mxu0 0
    %1403 = vmatmul.mubr.bf16.gmra.mrb[0].mxu0 %v1145
    %v1404 = vpop.f32.mrb[0].mxu0
    %v1405 = vpop.f32.mrb[0].mxu0
    %v1406 = vpop.f32.mrb[0].mxu0
    %v1407 = vadd.f32 0.0, %v1406
    %v1408 = vpop.f32.mrb[0].mxu0
    %1409 = vmatprep.mubr.bf16.mxu0 0
    %1410 = vmatmul.mubr.bf16.gmra.mrb[0].mxu0 %v1148
    %v1411 = vpop.f32.mrb[0].mxu0
    %v1412 = vadd.f32 0.0, %v1411
    %v1413 = vpop.f32.mrb[0].mxu0
    %v1414 = vpop.f32.mrb[0].mxu0
    %v1415 = vadd.f32 0.0, %v1414
    %v1416 = vpop.f32.mrb[0].mxu0
    %1417 = vmatprep.mubr.bf16.mxu0 0
    %1418 = vmatmul.mubr.bf16.gmra.mrb[0].mxu0 %v1151
    %v1419 = vpop.f32.mrb[0].mxu0
    %v1420 = vadd.f32 0.0, %v1419
    %v1421 = vpop.f32.mrb[0].mxu0
    %v1422 = vpop.f32.mrb[0].mxu0
    %v1423 = vadd.f32 0.0, %v1422
    %v1424 = vpop.f32.mrb[0].mxu0
    %1425 = vmatprep.mubr.bf16.mxu0 0
    %1426 = vmatmul.mubr.bf16.gmra.mrb[0].mxu0 %v1154
    %v1427 = vpop.f32.mrb[0].mxu0
    %v1428 = vadd.f32 0.0, %v1427
    %v1429 = vpop.f32.mrb[0].mxu0
    %v1430 = vpop.f32.mrb[0].mxu0
    %v1431 = vadd.f32 0.0, %v1430
    %v1432 = vpop.f32.mrb[0].mxu0
    %1433 = vdwg.mxu0
    %1448 = vrot.lane.b32.xlu0 %v1193, 88
    %v1449 = vpop.permute.xlu0 %1448
    %1450 = vrot.lane.b32.xlu0 %v1262, 88
    %v1451 = vpop.permute.xlu0 %1450
    %1452 = vrot.lane.b32.xlu0 %v1197, 88
    %v1453 = vpop.permute.xlu0 %1452
    %1454 = vrot.lane.b32.xlu0 %v1265, 88
    %v1455 = vpop.permute.xlu0 %1454
    %1456 = vrot.lane.b32.xlu0 %v1203, 88
    %v1457 = vpop.permute.xlu0 %1456
    %1458 = vrot.lane.b32.xlu0 %v1271, 88
    %v1459 = vpop.permute.xlu0 %1458
    %1460 = vrot.lane.b32.xlu0 %v1207, 88
    %v1461 = vpop.permute.xlu0 %1460
    %1462 = vrot.lane.b32.xlu0 %v1275, 88
    %v1463 = vpop.permute.xlu0 %1462
    %1464 = vrot.lane.b32.xlu0 %v1213, 88
    %v1465 = vpop.permute.xlu0 %1464
    %1466 = vrot.lane.b32.xlu0 %v1281, 88
    %v1467 = vpop.permute.xlu0 %1466
    %1468 = vrot.lane.b32.xlu0 %v1217, 88
    %v1469 = vpop.permute.xlu0 %1468
    %1470 = vrot.lane.b32.xlu0 %v1285, 88
    %v1471 = vpop.permute.xlu0 %1470
    %1472 = vrot.lane.b32.xlu0 %v1223, 88
    %v1473 = vpop.permute.xlu0 %1472
    %1474 = vrot.lane.b32.xlu0 %v1291, 88
    %v1475 = vpop.permute.xlu0 %1474
    %v1476 = vsel %vm1079, %v1449, %v1451
    %v1477 = vsel %vm1079, %v1453, %v1455
    %v1478 = vsel %vm1079, %v1457, %v1459
    %v1479 = vsel %vm1079, %v1461, %v1463
    %v1480 = vsel %vm1079, %v1465, %v1467
    %v1481 = vsel %vm1079, %v1469, %v1471
    %v1482 = vsel %vm1079, %v1473, %v1475
    %v1497 = vadd.f32 %v860, %v1476
    %v1498 = vadd.f32 %v861, %v1451
    %v1499 = vadd.f32 %v862, %v1477
    %v1500 = vadd.f32 %v863, %v1455
    %v1501 = vadd.f32 %v864, %v1478
    %v1502 = vadd.f32 %v865, %v1459
    %v1503 = vadd.f32 %v866, %v1479
    %v1504 = vadd.f32 %v867, %v1463
    %v1505 = vadd.f32 %v868, %v1480
    %v1506 = vadd.f32 %v869, %v1467
    %v1507 = vadd.f32 %v870, %v1481
    %v1508 = vadd.f32 %v871, %v1471
    %v1509 = vadd.f32 %v872, %v1482
    %v1510 = vadd.f32 %v873, %v1475
    %v1511 = vadd.f32 %v959, %v1191
    %v1512 = vadd.f32 %v960, %v1193
    %v1513 = vadd.f32 %v961, %v1195
    %v1514 = vadd.f32 %v962, %v1197
    %v1515 = vadd.f32 %v963, %v1201
    %v1516 = vadd.f32 %v964, %v1203
    %v1517 = vadd.f32 %v965, %v1205
    %v1518 = vadd.f32 %v966, %v1207
    %v1519 = vadd.f32 %v967, %v1211
    %v1520 = vadd.f32 %v968, %v1213
    %v1521 = vadd.f32 %v969, %v1215
    %v1522 = vadd.f32 %v970, %v1217
    %v1523 = vadd.f32 %v971, %v1221
    %v1524 = vadd.f32 %v972, %v1223
    %1539 = vrot.lane.b32.xlu0 %v1338, 96
    %v1540 = vpop.permute.xlu0 %1539
    %1541 = vrot.lane.b32.xlu0 %v1407, 96
    %v1542 = vpop.permute.xlu0 %1541
    %1543 = vrot.lane.b32.xlu0 %v1344, 96
    %v1544 = vpop.permute.xlu0 %1543
    %1545 = vrot.lane.b32.xlu0 %v1412, 96
    %v1546 = vpop.permute.xlu0 %1545
    %1547 = vrot.lane.b32.xlu0 %v1348, 96
    %v1548 = vpop.permute.xlu0 %1547
    %1549 = vrot.lane.b32.xlu0 %v1415, 96
    %v1550 = vpop.permute.xlu0 %1549
    %1551 = vrot.lane.b32.xlu0 %v1354, 96
    %v1552 = vpop.permute.xlu0 %1551
    %1553 = vrot.lane.b32.xlu0 %v1420, 96
    %v1554 = vpop.permute.xlu0 %1553
    %1555 = vrot.lane.b32.xlu0 %v1358, 96
    %v1556 = vpop.permute.xlu0 %1555
    %1557 = vrot.lane.b32.xlu0 %v1423, 96
    %v1558 = vpop.permute.xlu0 %1557
    %1559 = vrot.lane.b32.xlu0 %v1364, 96
    %v1560 = vpop.permute.xlu0 %1559
    %1561 = vrot.lane.b32.xlu0 %v1428, 96
    %v1562 = vpop.permute.xlu0 %1561
    %1563 = vrot.lane.b32.xlu0 %v1368, 96
    %v1564 = vpop.permute.xlu0 %1563
    %1565 = vrot.lane.b32.xlu0 %v1431, 96
    %v1566 = vpop.permute.xlu0 %1565
    %v1567 = vsel %vm838, %v1540, %v1542
    %v1568 = vsel %vm838, %v1544, %v1546
    %v1569 = vsel %vm838, %v1548, %v1550
    %v1570 = vsel %vm838, %v1552, %v1554
    %v1571 = vsel %vm838, %v1556, %v1558
    %v1572 = vsel %vm838, %v1560, %v1562
    %v1573 = vsel %vm838, %v1564, %v1566
    %v1588 = vadd.f32 %v1511, %v1567
    %v1589 = vadd.f32 %v1512, %v1542
    %v1590 = vadd.f32 %v1513, %v1568
    %v1591 = vadd.f32 %v1514, %v1546
    %v1592 = vadd.f32 %v1515, %v1569
    %v1593 = vadd.f32 %v1516, %v1550
    %v1594 = vadd.f32 %v1517, %v1570
    %v1595 = vadd.f32 %v1518, %v1554
    %v1596 = vadd.f32 %v1519, %v1571
    %v1597 = vadd.f32 %v1520, %v1558
    %v1598 = vadd.f32 %v1521, %v1572
    %v1599 = vadd.f32 %v1522, %v1562
    %v1600 = vadd.f32 %v1523, %v1573
    %v1601 = vadd.f32 %v1524, %v1566
    %1616 = vrot.lane.b32.xlu0 %v1267, 8
    %v1617 = vpop.permute.xlu0 %1616
    %1618 = vrot.lane.b32.xlu0 %v1336, 8
    %v1619 = vpop.permute.xlu0 %1618
    %1620 = vrot.lane.b32.xlu0 %v1338, 8
    %v1621 = vpop.permute.xlu0 %1620
    %1622 = vrot.lane.b32.xlu0 %v1273, 8
    %v1623 = vpop.permute.xlu0 %1622
    %1624 = vrot.lane.b32.xlu0 %v1342, 8
    %v1625 = vpop.permute.xlu0 %1624
    %1626 = vrot.lane.b32.xlu0 %v1344, 8
    %v1627 = vpop.permute.xlu0 %1626
    %1628 = vrot.lane.b32.xlu0 %v1277, 8
    %v1629 = vpop.permute.xlu0 %1628
    %1630 = vrot.lane.b32.xlu0 %v1346, 8
    %v1631 = vpop.permute.xlu0 %1630
    %1632 = vrot.lane.b32.xlu0 %v1348, 8
    %v1633 = vpop.permute.xlu0 %1632
    %1634 = vrot.lane.b32.xlu0 %v1283, 8
    %v1635 = vpop.permute.xlu0 %1634
    %1636 = vrot.lane.b32.xlu0 %v1352, 8
    %v1637 = vpop.permute.xlu0 %1636
    %1638 = vrot.lane.b32.xlu0 %v1354, 8
    %v1639 = vpop.permute.xlu0 %1638
    %1640 = vrot.lane.b32.xlu0 %v1287, 8
    %v1641 = vpop.permute.xlu0 %1640
    %1642 = vrot.lane.b32.xlu0 %v1356, 8
    %v1643 = vpop.permute.xlu0 %1642
    %1644 = vrot.lane.b32.xlu0 %v1358, 8
    %v1645 = vpop.permute.xlu0 %1644
    %1646 = vrot.lane.b32.xlu0 %v1293, 8
    %v1647 = vpop.permute.xlu0 %1646
    %1648 = vrot.lane.b32.xlu0 %v1362, 8
    %v1649 = vpop.permute.xlu0 %1648
    %1650 = vrot.lane.b32.xlu0 %v1364, 8
    %v1651 = vpop.permute.xlu0 %1650
    %1652 = vrot.lane.b32.xlu0 %v1297, 8
    %v1653 = vpop.permute.xlu0 %1652
    %1654 = vrot.lane.b32.xlu0 %v1366, 8
    %v1655 = vpop.permute.xlu0 %1654
    %1656 = vrot.lane.b32.xlu0 %v1368, 8
    %v1657 = vpop.permute.xlu0 %1656
    %v1658 = vsel %vm930, %v1617, %v1619
    %v1659 = vsel %vm930, %v1619, %v1621
    %v1660 = vsel %vm930, %v1623, %v1625
    %v1661 = vsel %vm930, %v1625, %v1627
    %v1662 = vsel %vm930, %v1629, %v1631
    %v1663 = vsel %vm930, %v1631, %v1633
    %v1664 = vsel %vm930, %v1635, %v1637
    %v1665 = vsel %vm930, %v1637, %v1639
    %v1666 = vsel %vm930, %v1641, %v1643
    %v1667 = vsel %vm930, %v1643, %v1645
    %v1668 = vsel %vm930, %v1647, %v1649
    %v1669 = vsel %vm930, %v1649, %v1651
    %v1670 = vsel %vm930, %v1653, %v1655
    %v1671 = vsel %vm930, %v1655, %v1657
    %v1686 = vadd.f32 %v1030, %v1658
    %v1687 = vadd.f32 %v1031, %v1659
    %v1688 = vadd.f32 %v1032, %v1660
    %v1689 = vadd.f32 %v1033, %v1661
    %v1690 = vadd.f32 %v1034, %v1662
    %v1691 = vadd.f32 %v1035, %v1663
    %v1692 = vadd.f32 %v1036, %v1664
    %v1693 = vadd.f32 %v1037, %v1665
    %v1694 = vadd.f32 %v1038, %v1666
    %v1695 = vadd.f32 %v1039, %v1667
    %v1696 = vadd.f32 %v1040, %v1668
    %v1697 = vadd.f32 %v1041, %v1669
    %v1698 = vadd.f32 %v1042, %v1670
    %v1699 = vadd.f32 %v1043, %v1671
    %1701 = vrot.lane.b32.xlu0 %v1265, 48
    %v1702 = vpop.permute.xlu0 %1701
    %1703 = vrot.lane.b32.xlu0 %v1267, 48
    %v1704 = vpop.permute.xlu0 %1703
    %1705 = vrot.lane.b32.xlu0 %v1271, 48
    %v1706 = vpop.permute.xlu0 %1705
    %1707 = vrot.lane.b32.xlu0 %v1273, 48
    %v1708 = vpop.permute.xlu0 %1707
    %1709 = vrot.lane.b32.xlu0 %v1275, 48
    %v1710 = vpop.permute.xlu0 %1709
    %1711 = vrot.lane.b32.xlu0 %v1277, 48
    %v1712 = vpop.permute.xlu0 %1711
    %1713 = vrot.lane.b32.xlu0 %v1281, 48
    %v1714 = vpop.permute.xlu0 %1713
    %1715 = vrot.lane.b32.xlu0 %v1283, 48
    %v1716 = vpop.permute.xlu0 %1715
    %1717 = vrot.lane.b32.xlu0 %v1285, 48
    %v1718 = vpop.permute.xlu0 %1717
    %1719 = vrot.lane.b32.xlu0 %v1287, 48
    %v1720 = vpop.permute.xlu0 %1719
    %1721 = vrot.lane.b32.xlu0 %v1291, 48
    %v1722 = vpop.permute.xlu0 %1721
    %1723 = vrot.lane.b32.xlu0 %v1293, 48
    %v1724 = vpop.permute.xlu0 %1723
    %1725 = vrot.lane.b32.xlu0 %v1295, 48
    %v1726 = vpop.permute.xlu0 %1725
    %1727 = vrot.lane.b32.xlu0 %v1297, 48
    %v1728 = vpop.permute.xlu0 %1727
    %v1729 = vsel %vm1008, %v1702, %v1704
    %v1730 = vsel %vm1008, %v1706, %v1708
    %v1731 = vsel %vm1008, %v1710, %v1712
    %v1732 = vsel %vm1008, %v1714, %v1716
    %v1733 = vsel %vm1008, %v1718, %v1720
    %v1734 = vsel %vm1008, %v1722, %v1724
    %v1735 = vsel %vm1008, %v1726, %v1728
    %v1750 = vadd.f32 %v1101, %v1729
    %v1751 = vadd.f32 %v1102, %v1704
    %v1752 = vadd.f32 %v1103, %v1730
    %v1753 = vadd.f32 %v1104, %v1708
    %v1754 = vadd.f32 %v1105, %v1731
    %v1755 = vadd.f32 %v1106, %v1712
    %v1756 = vadd.f32 %v1107, %v1732
    %v1757 = vadd.f32 %v1108, %v1716
    %v1758 = vadd.f32 %v1109, %v1733
    %v1759 = vadd.f32 %v1110, %v1720
    %v1760 = vadd.f32 %v1111, %v1734
    %v1761 = vadd.f32 %v1112, %v1724
    %v1762 = vadd.f32 %v1113, %v1735
    %v1763 = vadd.f32 %v1114, %v1728
    %s1764 = scalar_lea.vmem [#allocation10], 64
    %v1765 = vld [vmem:[%s1764] sm:$0xf]
    %v1766 = vld [vmem:[%s1764 + $0x4] sm:$0xf]
    %v1767 = vld [vmem:[%s1764 + $0x8] sm:$0xf]
    %v1768 = vld [vmem:[%s1764 + $0xc] sm:$0xf]
    %v1769 = vld [vmem:[%s1764 + $0x10] sm:$0xf]
    %v1770 = vld [vmem:[%s1764 + $0x14] sm:$0xf]
    %v1771 = vld [vmem:[%s1764 + $0x18] sm:$0xf]
    %v1772 = vld [vmem:[%s1764 + $0x1c] sm:$0xf]
    %v1781 = vunpack.c.l.b16 %v1765
    %v1782 = vunpack.c.l.b16 %v1766
    %v1783 = vunpack.c.l.b16 %v1767
    %v1784 = vunpack.c.l.b16 %v1768
    %v1785 = vunpack.c.l.b16 %v1769
    %v1786 = vunpack.c.l.b16 %v1770
    %v1787 = vunpack.c.l.b16 %v1771
    %v1788 = vunpack.c.l.b16 %v1772
    %v1789 = vpack.c.b16 %v1782, %v1781
    %v1790 = vpack.c.b16 %v1784, %v1783
    %v1791 = vpack.c.b16 %v1786, %v1785
    %v1792 = vpack.c.b16 %v1788, %v1787
    %v1794 = vsel %vm480, %v1789, 0
    %v1797 = vsel %vm480, %v1790, 0
    %v1800 = vsel %vm480, %v1791, 0
    %v1803 = vsel %vm480, %v1792, 0
    %1805 = vmatprep.subr.bf16.mxu0 %v453
    %1806 = vmatpush1.bf16.msra.mxu0 %v452
    %1807 = vmatprep.subr.bf16.mxu0 %v460
    %1808 = vmatpush1.bf16.msra.mxu0 %v459
    %1809 = vmatprep.subr.bf16.mxu0 0
    %1810 = vmatpush1.bf16.msra.mxu0 0
    %1811 = vmatprep.subr.bf16.mxu0 0
    %1812 = vmatpush1.bf16.msra.mxu0 0
    %1813 = vmatprep.subr.bf16.mxu0 0
    %1814 = vmatpush1.bf16.msra.mxu0 0
    %1815 = vmatprep.subr.bf16.mxu0 0
    %1816 = vmatpush1.bf16.msra.mxu0 0
    %1817 = vmatprep.subr.bf16.mxu0 0
    %1818 = vmatpush1.bf16.msra.mxu0 0
    %1819 = vmatprep.subr.bf16.mxu0 0
    %1820 = vmatpush1.bf16.msra.mxu0 0
    %1821 = vmatprep.subr.bf16.mxu0 0
    %1822 = vmatpush1.bf16.msra.mxu0 0
    %1823 = vmatprep.subr.bf16.mxu0 0
    %1824 = vmatpush1.bf16.msra.mxu0 0
    %1825 = vmatprep.subr.bf16.mxu0 0
    %1826 = vmatpush1.bf16.msra.mxu0 0
    %1827 = vmatprep.subr.bf16.mxu0 0
    %1828 = vmatpush1.bf16.msra.mxu0 0
    %1829 = vmatprep.subr.bf16.mxu0 0
    %1830 = vmatpush1.bf16.msra.mxu0 0
    %1831 = vmatprep.subr.bf16.mxu0 0
    %1832 = vmatpush1.bf16.msra.mxu0 0
    %1833 = vmatprep.subr.bf16.mxu0 0
    %1834 = vmatpush1.bf16.msra.mxu0 0
    %1835 = vmatprep.subr.bf16.mxu0 0
    %1836 = vmatpush1.bf16.msra.mxu0 0
    %1837 = vmatprep.mubr.bf16.mxu0 0
    %1838 = vmatmul.mubr.bf16.gmra.mrb[0].mxu0 %v1794
    %v1839 = vpop.f32.mrb[0].mxu0
    %v1840 = vadd.f32 0.0, %v1839
    %v1841 = vpop.f32.mrb[0].mxu0
    %v1842 = vadd.f32 0.0, %v1841
    %v1843 = vpop.f32.mrb[0].mxu0
    %v1844 = vadd.f32 0.0, %v1843
    %v1845 = vpop.f32.mrb[0].mxu0
    %v1846 = vadd.f32 0.0, %v1845
    %1847 = vmatprep.mubr.bf16.mxu0 0
    %1848 = vmatmul.mubr.bf16.gmra.mrb[0].mxu0 %v1797
    %v1849 = vpop.f32.mrb[0].mxu0
    %v1850 = vadd.f32 0.0, %v1849
    %v1851 = vpop.f32.mrb[0].mxu0
    %v1852 = vadd.f32 0.0, %v1851
    %v1853 = vpop.f32.mrb[0].mxu0
    %v1854 = vadd.f32 0.0, %v1853
    %v1855 = vpop.f32.mrb[0].mxu0
    %v1856 = vadd.f32 0.0, %v1855
    %1857 = vmatprep.mubr.bf16.mxu0 0
    %1858 = vmatmul.mubr.bf16.gmra.mrb[0].mxu0 %v1800
    %v1859 = vpop.f32.mrb[0].mxu0
    %v1860 = vadd.f32 0.0, %v1859
    %v1861 = vpop.f32.mrb[0].mxu0
    %v1862 = vadd.f32 0.0, %v1861
    %v1863 = vpop.f32.mrb[0].mxu0
    %v1864 = vadd.f32 0.0, %v1863
    %v1865 = vpop.f32.mrb[0].mxu0
    %v1866 = vadd.f32 0.0, %v1865
    %1867 = vmatprep.mubr.bf16.mxu0 0
    %1868 = vmatmul.mubr.bf16.gmra.mrb[0].mxu0 %v1803
    %v1869 = vpop.f32.mrb[0].mxu0
    %v1870 = vadd.f32 0.0, %v1869
    %v1871 = vpop.f32.mrb[0].mxu0
    %v1872 = vadd.f32 0.0, %v1871
    %v1873 = vpop.f32.mrb[0].mxu0
    %v1874 = vpop.f32.mrb[0].mxu0
    %1875 = vdwg.mxu0
    %1876 = vmatprep.subr.bf16.mxu0 %v455
    %1877 = vmatpush1.bf16.msra.mxu0 %v454
    %1878 = vmatprep.subr.bf16.mxu0 %v462
    %1879 = vmatpush1.bf16.msra.mxu0 %v461
    %1880 = vmatprep.subr.bf16.mxu0 0
    %1881 = vmatpush1.bf16.msra.mxu0 0
    %1882 = vmatprep.subr.bf16.mxu0 0
    %1883 = vmatpush1.bf16.msra.mxu0 0
    %1884 = vmatprep.subr.bf16.mxu0 0
    %1885 = vmatpush1.bf16.msra.mxu0 0
    %1886 = vmatprep.subr.bf16.mxu0 0
    %1887 = vmatpush1.bf16.msra.mxu0 0
    %1888 = vmatprep.subr.bf16.mxu0 0
    %1889 = vmatpush1.bf16.msra.mxu0 0
    %1890 = vmatprep.subr.bf16.mxu0 0
    %1891 = vmatpush1.bf16.msra.mxu0 0
    %1892 = vmatprep.subr.bf16.mxu0 0
    %1893 = vmatpush1.bf16.msra.mxu0 0
    %1894 = vmatprep.subr.bf16.mxu0 0
    %1895 = vmatpush1.bf16.msra.mxu0 0
    %1896 = vmatprep.subr.bf16.mxu0 0
    %1897 = vmatpush1.bf16.msra.mxu0 0
    %1898 = vmatprep.subr.bf16.mxu0 0
    %1899 = vmatpush1.bf16.msra.mxu0 0
    %1900 = vmatprep.subr.bf16.mxu0 0
    %1901 = vmatpush1.bf16.msra.mxu0 0
    %1902 = vmatprep.subr.bf16.mxu0 0
    %1903 = vmatpush1.bf16.msra.mxu0 0
    %1904 = vmatprep.subr.bf16.mxu0 0
    %1905 = vmatpush1.bf16.msra.mxu0 0
    %1906 = vmatprep.subr.bf16.mxu0 0
    %1907 = vmatpush1.bf16.msra.mxu0 0
    %1908 = vmatprep.mubr.bf16.mxu0 0
    %1909 = vmatmul.mubr.bf16.gmra.mrb[0].mxu0 %v1794
    %v1910 = vpop.f32.mrb[0].mxu0
    %v1911 = vadd.f32 0.0, %v1910
    %v1912 = vpop.f32.mrb[0].mxu0
    %v1913 = vadd.f32 0.0, %v1912
    %v1914 = vpop.f32.mrb[0].mxu0
    %v1915 = vadd.f32 0.0, %v1914
    %v1916 = vpop.f32.mrb[0].mxu0
    %v1917 = vadd.f32 0.0, %v1916
    %1918 = vmatprep.mubr.bf16.mxu0 0
    %1919 = vmatmul.mubr.bf16.gmra.mrb[0].mxu0 %v1797
    %v1920 = vpop.f32.mrb[0].mxu0
    %v1921 = vadd.f32 0.0, %v1920
    %v1922 = vpop.f32.mrb[0].mxu0
    %v1923 = vadd.f32 0.0, %v1922
    %v1924 = vpop.f32.mrb[0].mxu0
    %v1925 = vadd.f32 0.0, %v1924
    %v1926 = vpop.f32.mrb[0].mxu0
    %v1927 = vadd.f32 0.0, %v1926
    %1928 = vmatprep.mubr.bf16.mxu0 0
    %1929 = vmatmul.mubr.bf16.gmra.mrb[0].mxu0 %v1800
    %v1930 = vpop.f32.mrb[0].mxu0
    %v1931 = vadd.f32 0.0, %v1930
    %v1932 = vpop.f32.mrb[0].mxu0
    %v1933 = vadd.f32 0.0, %v1932
    %v1934 = vpop.f32.mrb[0].mxu0
    %v1935 = vadd.f32 0.0, %v1934
    %v1936 = vpop.f32.mrb[0].mxu0
    %v1937 = vadd.f32 0.0, %v1936
    %1938 = vmatprep.mubr.bf16.mxu0 0
    %1939 = vmatmul.mubr.bf16.gmra.mrb[0].mxu0 %v1803
    %v1940 = vpop.f32.mrb[0].mxu0
    %v1941 = vadd.f32 0.0, %v1940
    %v1942 = vpop.f32.mrb[0].mxu0
    %v1943 = vadd.f32 0.0, %v1942
    %v1944 = vpop.f32.mrb[0].mxu0
    %v1945 = vpop.f32.mrb[0].mxu0
    %v1946 = vadd.f32 0.0, %v1945
    %1947 = vdwg.mxu0
    %1948 = vmatprep.subr.bf16.mxu0 %v457
    %1949 = vmatpush1.bf16.msra.mxu0 %v456
    %1950 = vmatprep.subr.bf16.mxu0 %v464
    %1951 = vmatpush1.bf16.msra.mxu0 %v463
    %1952 = vmatprep.subr.bf16.mxu0 0
    %1953 = vmatpush1.bf16.msra.mxu0 0
    %1954 = vmatprep.subr.bf16.mxu0 0
    %1955 = vmatpush1.bf16.msra.mxu0 0
    %1956 = vmatprep.subr.bf16.mxu0 0
    %1957 = vmatpush1.bf16.msra.mxu0 0
    %1958 = vmatprep.subr.bf16.mxu0 0
    %1959 = vmatpush1.bf16.msra.mxu0 0
    %1960 = vmatprep.subr.bf16.mxu0 0
    %1961 = vmatpush1.bf16.msra.mxu0 0
    %1962 = vmatprep.subr.bf16.mxu0 0
    %1963 = vmatpush1.bf16.msra.mxu0 0
    %1964 = vmatprep.subr.bf16.mxu0 0
    %1965 = vmatpush1.bf16.msra.mxu0 0
    %1966 = vmatprep.subr.bf16.mxu0 0
    %1967 = vmatpush1.bf16.msra.mxu0 0
    %1968 = vmatprep.subr.bf16.mxu0 0
    %1969 = vmatpush1.bf16.msra.mxu0 0
    %1970 = vmatprep.subr.bf16.mxu0 0
    %1971 = vmatpush1.bf16.msra.mxu0 0
    %1972 = vmatprep.subr.bf16.mxu0 0
    %1973 = vmatpush1.bf16.msra.mxu0 0
    %1974 = vmatprep.subr.bf16.mxu0 0
    %1975 = vmatpush1.bf16.msra.mxu0 0
    %1976 = vmatprep.subr.bf16.mxu0 0
    %1977 = vmatpush1.bf16.msra.mxu0 0
    %1978 = vmatprep.subr.bf16.mxu0 0
    %1979 = vmatpush1.bf16.msra.mxu0 0
    %1980 = vmatprep.mubr.bf16.mxu0 0
    %1981 = vmatmul.mubr.bf16.gmra.mrb[0].mxu0 %v1794
    %v1982 = vpop.f32.mrb[0].mxu0
    %v1983 = vpop.f32.mrb[0].mxu0
    %v1984 = vpop.f32.mrb[0].mxu0
    %v1985 = vadd.f32 0.0, %v1984
    %v1986 = vpop.f32.mrb[0].mxu0
    %v1987 = vadd.f32 0.0, %v1986
    %1988 = vmatprep.mubr.bf16.mxu0 0
    %1989 = vmatmul.mubr.bf16.gmra.mrb[0].mxu0 %v1797
    %v1990 = vpop.f32.mrb[0].mxu0
    %v1991 = vadd.f32 0.0, %v1990
    %v1992 = vpop.f32.mrb[0].mxu0
    %v1993 = vadd.f32 0.0, %v1992
    %v1994 = vpop.f32.mrb[0].mxu0
    %v1995 = vadd.f32 0.0, %v1994
    %v1996 = vpop.f32.mrb[0].mxu0
    %v1997 = vadd.f32 0.0, %v1996
    %1998 = vmatprep.mubr.bf16.mxu0 0
    %1999 = vmatmul.mubr.bf16.gmra.mrb[0].mxu0 %v1800
    %v2000 = vpop.f32.mrb[0].mxu0
    %v2001 = vadd.f32 0.0, %v2000
    %v2002 = vpop.f32.mrb[0].mxu0
    %v2003 = vadd.f32 0.0, %v2002
    %v2004 = vpop.f32.mrb[0].mxu0
    %v2005 = vadd.f32 0.0, %v2004
    %v2006 = vpop.f32.mrb[0].mxu0
    %v2007 = vadd.f32 0.0, %v2006
    %2008 = vmatprep.mubr.bf16.mxu0 0
    %2009 = vmatmul.mubr.bf16.gmra.mrb[0].mxu0 %v1803
    %v2010 = vpop.f32.mrb[0].mxu0
    %v2011 = vadd.f32 0.0, %v2010
    %v2012 = vpop.f32.mrb[0].mxu0
    %v2013 = vadd.f32 0.0, %v2012
    %v2014 = vpop.f32.mrb[0].mxu0
    %v2015 = vadd.f32 0.0, %v2014
    %v2016 = vpop.f32.mrb[0].mxu0
    %v2017 = vadd.f32 0.0, %v2016
    %2018 = vdwg.mxu0
    %2019 = vmatprep.subr.bf16.mxu0 0
    %2020 = vmatpush1.bf16.msra.mxu0 %v458
    %2021 = vmatprep.subr.bf16.mxu0 0
    %2022 = vmatpush1.bf16.msra.mxu0 %v465
    %2023 = vmatprep.subr.bf16.mxu0 0
    %2024 = vmatpush1.bf16.msra.mxu0 0
    %2025 = vmatprep.subr.bf16.mxu0 0
    %2026 = vmatpush1.bf16.msra.mxu0 0
    %2027 = vmatprep.subr.bf16.mxu0 0
    %2028 = vmatpush1.bf16.msra.mxu0 0
    %2029 = vmatprep.subr.bf16.mxu0 0
    %2030 = vmatpush1.bf16.msra.mxu0 0
    %2031 = vmatprep.subr.bf16.mxu0 0
    %2032 = vmatpush1.bf16.msra.mxu0 0
    %2033 = vmatprep.subr.bf16.mxu0 0
    %2034 = vmatpush1.bf16.msra.mxu0 0
    %2035 = vmatprep.subr.bf16.mxu0 0
    %2036 = vmatpush1.bf16.msra.mxu0 0
    %2037 = vmatprep.subr.bf16.mxu0 0
    %2038 = vmatpush1.bf16.msra.mxu0 0
    %2039 = vmatprep.subr.bf16.mxu0 0
    %2040 = vmatpush1.bf16.msra.mxu0 0
    %2041 = vmatprep.subr.bf16.mxu0 0
    %2042 = vmatpush1.bf16.msra.mxu0 0
    %2043 = vmatprep.subr.bf16.mxu0 0
    %2044 = vmatpush1.bf16.msra.mxu0 0
    %2045 = vmatprep.subr.bf16.mxu0 0
    %2046 = vmatpush1.bf16.msra.mxu0 0
    %2047 = vmatprep.subr.bf16.mxu0 0
    %2048 = vmatpush1.bf16.msra.mxu0 0
    %2049 = vmatprep.subr.bf16.mxu0 0
    %2050 = vmatpush1.bf16.msra.mxu0 0
    %2051 = vmatprep.mubr.bf16.mxu0 0
    %2052 = vmatmul.mubr.bf16.gmra.mrb[0].mxu0 %v1794
    %v2053 = vpop.f32.mrb[0].mxu0
    %v2054 = vpop.f32.mrb[0].mxu0
    %v2055 = vpop.f32.mrb[0].mxu0
    %v2056 = vadd.f32 0.0, %v2055
    %v2057 = vpop.f32.mrb[0].mxu0
    %2058 = vmatprep.mubr.bf16.mxu0 0
    %2059 = vmatmul.mubr.bf16.gmra.mrb[0].mxu0 %v1797
    %v2060 = vpop.f32.mrb[0].mxu0
    %v2061 = vadd.f32 0.0, %v2060
    %v2062 = vpop.f32.mrb[0].mxu0
    %v2063 = vpop.f32.mrb[0].mxu0
    %v2064 = vadd.f32 0.0, %v2063
    %v2065 = vpop.f32.mrb[0].mxu0
    %2066 = vmatprep.mubr.bf16.mxu0 0
    %2067 = vmatmul.mubr.bf16.gmra.mrb[0].mxu0 %v1800
    %v2068 = vpop.f32.mrb[0].mxu0
    %v2069 = vadd.f32 0.0, %v2068
    %v2070 = vpop.f32.mrb[0].mxu0
    %v2071 = vpop.f32.mrb[0].mxu0
    %v2072 = vadd.f32 0.0, %v2071
    %v2073 = vpop.f32.mrb[0].mxu0
    %2074 = vmatprep.mubr.bf16.mxu0 0
    %2075 = vmatmul.mubr.bf16.gmra.mrb[0].mxu0 %v1803
    %v2076 = vpop.f32.mrb[0].mxu0
    %v2077 = vadd.f32 0.0, %v2076
    %v2078 = vpop.f32.mrb[0].mxu0
    %v2079 = vpop.f32.mrb[0].mxu0
    %v2080 = vadd.f32 0.0, %v2079
    %v2081 = vpop.f32.mrb[0].mxu0
    %2082 = vdwg.mxu0
    %2097 = vrot.lane.b32.xlu0 %v1911, 48
    %v2098 = vpop.permute.xlu0 %2097
    %2099 = vrot.lane.b32.xlu0 %v1913, 48
    %v2100 = vpop.permute.xlu0 %2099
    %2101 = vrot.lane.b32.xlu0 %v1915, 48
    %v2102 = vpop.permute.xlu0 %2101
    %2103 = vrot.lane.b32.xlu0 %v1917, 48
    %v2104 = vpop.permute.xlu0 %2103
    %2105 = vrot.lane.b32.xlu0 %v1921, 48
    %v2106 = vpop.permute.xlu0 %2105
    %2107 = vrot.lane.b32.xlu0 %v1923, 48
    %v2108 = vpop.permute.xlu0 %2107
    %2109 = vrot.lane.b32.xlu0 %v1925, 48
    %v2110 = vpop.permute.xlu0 %2109
    %2111 = vrot.lane.b32.xlu0 %v1927, 48
    %v2112 = vpop.permute.xlu0 %2111
    %2113 = vrot.lane.b32.xlu0 %v1931, 48
    %v2114 = vpop.permute.xlu0 %2113
    %2115 = vrot.lane.b32.xlu0 %v1933, 48
    %v2116 = vpop.permute.xlu0 %2115
    %2117 = vrot.lane.b32.xlu0 %v1935, 48
    %v2118 = vpop.permute.xlu0 %2117
    %2119 = vrot.lane.b32.xlu0 %v1937, 48
    %v2120 = vpop.permute.xlu0 %2119
    %2121 = vrot.lane.b32.xlu0 %v1941, 48
    %v2122 = vpop.permute.xlu0 %2121
    %2123 = vrot.lane.b32.xlu0 %v1943, 48
    %v2124 = vpop.permute.xlu0 %2123
    %v2125 = vsel %vm1008, %v2098, %v2100
    %v2126 = vsel %vm1008, %v2102, %v2104
    %v2127 = vsel %vm1008, %v2106, %v2108
    %v2128 = vsel %vm1008, %v2110, %v2112
    %v2129 = vsel %vm1008, %v2114, %v2116
    %v2130 = vsel %vm1008, %v2118, %v2120
    %v2131 = vsel %vm1008, %v2122, %v2124
    %v2146 = vadd.f32 %v1497, %v2125
    %v2147 = vadd.f32 %v1498, %v2100
    %v2148 = vadd.f32 %v1499, %v2126
    %v2149 = vadd.f32 %v1500, %v2104
    %v2150 = vadd.f32 %v1501, %v2127
    %v2151 = vadd.f32 %v1502, %v2108
    %v2152 = vadd.f32 %v1503, %v2128
    %v2153 = vadd.f32 %v1504, %v2112
    %v2154 = vadd.f32 %v1505, %v2129
    %v2155 = vadd.f32 %v1506, %v2116
    %v2156 = vadd.f32 %v1507, %v2130
    %v2157 = vadd.f32 %v1508, %v2120
    %v2158 = vadd.f32 %v1509, %v2131
    %v2159 = vadd.f32 %v1510, %v2124
    %2167 = vrot.lane.b32.xlu0 %v1842, 88
    %v2168 = vpop.permute.xlu0 %2167
    %2169 = vrot.lane.b32.xlu0 %v1911, 88
    %v2170 = vpop.permute.xlu0 %2169
    %2171 = vrot.lane.b32.xlu0 %v1846, 88
    %v2172 = vpop.permute.xlu0 %2171
    %2173 = vrot.lane.b32.xlu0 %v1915, 88
    %v2174 = vpop.permute.xlu0 %2173
    %2175 = vrot.lane.b32.xlu0 %v1852, 88
    %v2176 = vpop.permute.xlu0 %2175
    %2177 = vrot.lane.b32.xlu0 %v1921, 88
    %v2178 = vpop.permute.xlu0 %2177
    %2179 = vrot.lane.b32.xlu0 %v1856, 88
    %v2180 = vpop.permute.xlu0 %2179
    %2181 = vrot.lane.b32.xlu0 %v1925, 88
    %v2182 = vpop.permute.xlu0 %2181
    %2183 = vrot.lane.b32.xlu0 %v1862, 88
    %v2184 = vpop.permute.xlu0 %2183
    %2185 = vrot.lane.b32.xlu0 %v1931, 88
    %v2186 = vpop.permute.xlu0 %2185
    %2187 = vrot.lane.b32.xlu0 %v1866, 88
    %v2188 = vpop.permute.xlu0 %2187
    %2189 = vrot.lane.b32.xlu0 %v1935, 88
    %v2190 = vpop.permute.xlu0 %2189
    %2191 = vrot.lane.b32.xlu0 %v1872, 88
    %v2192 = vpop.permute.xlu0 %2191
    %2193 = vrot.lane.b32.xlu0 %v1941, 88
    %v2194 = vpop.permute.xlu0 %2193
    %v2195 = vsel %vm1079, %v2168, %v2170
    %v2196 = vsel %vm1079, %v2172, %v2174
    %v2197 = vsel %vm1079, %v2176, %v2178
    %v2198 = vsel %vm1079, %v2180, %v2182
    %v2199 = vsel %vm1079, %v2184, %v2186
    %v2200 = vsel %vm1079, %v2188, %v2190
    %v2201 = vsel %vm1079, %v2192, %v2194
    %v2216 = vadd.f32 %v1588, %v2195
    %v2217 = vadd.f32 %v1589, %v2170
    %v2218 = vadd.f32 %v1590, %v2196
    %v2219 = vadd.f32 %v1591, %v2174
    %v2220 = vadd.f32 %v1592, %v2197
    %v2221 = vadd.f32 %v1593, %v2178
    %v2222 = vadd.f32 %v1594, %v2198
    %v2223 = vadd.f32 %v1595, %v2182
    %v2224 = vadd.f32 %v1596, %v2199
    %v2225 = vadd.f32 %v1597, %v2186
    %v2226 = vadd.f32 %v1598, %v2200
    %v2227 = vadd.f32 %v1599, %v2190
    %v2228 = vadd.f32 %v1600, %v2201
    %v2229 = vadd.f32 %v1601, %v2194
    %v2230 = vadd.f32 %v1686, %v1840
    %v2231 = vadd.f32 %v1687, %v1842
    %v2232 = vadd.f32 %v1688, %v1844
    %v2233 = vadd.f32 %v1689, %v1846
    %v2234 = vadd.f32 %v1690, %v1850
    %v2235 = vadd.f32 %v1691, %v1852
    %v2236 = vadd.f32 %v1692, %v1854
    %v2237 = vadd.f32 %v1693, %v1856
    %v2238 = vadd.f32 %v1694, %v1860
    %v2239 = vadd.f32 %v1695, %v1862
    %v2240 = vadd.f32 %v1696, %v1864
    %v2241 = vadd.f32 %v1697, %v1866
    %v2242 = vadd.f32 %v1698, %v1870
    %v2243 = vadd.f32 %v1699, %v1872
    %2258 = vrot.lane.b32.xlu0 %v1987, 96
    %v2259 = vpop.permute.xlu0 %2258
    %2260 = vrot.lane.b32.xlu0 %v2056, 96
    %v2261 = vpop.permute.xlu0 %2260
    %2262 = vrot.lane.b32.xlu0 %v1993, 96
    %v2263 = vpop.permute.xlu0 %2262
    %2264 = vrot.lane.b32.xlu0 %v2061, 96
    %v2265 = vpop.permute.xlu0 %2264
    %2266 = vrot.lane.b32.xlu0 %v1997, 96
    %v2267 = vpop.permute.xlu0 %2266
    %2268 = vrot.lane.b32.xlu0 %v2064, 96
    %v2269 = vpop.permute.xlu0 %2268
    %2270 = vrot.lane.b32.xlu0 %v2003, 96
    %v2271 = vpop.permute.xlu0 %2270
    %2272 = vrot.lane.b32.xlu0 %v2069, 96
    %v2273 = vpop.permute.xlu0 %2272
    %2274 = vrot.lane.b32.xlu0 %v2007, 96
    %v2275 = vpop.permute.xlu0 %2274
    %2276 = vrot.lane.b32.xlu0 %v2072, 96
    %v2277 = vpop.permute.xlu0 %2276
    %2278 = vrot.lane.b32.xlu0 %v2013, 96
    %v2279 = vpop.permute.xlu0 %2278
    %2280 = vrot.lane.b32.xlu0 %v2077, 96
    %v2281 = vpop.permute.xlu0 %2280
    %2282 = vrot.lane.b32.xlu0 %v2017, 96
    %v2283 = vpop.permute.xlu0 %2282
    %2284 = vrot.lane.b32.xlu0 %v2080, 96
    %v2285 = vpop.permute.xlu0 %2284
    %v2286 = vsel %vm838, %v2259, %v2261
    %v2287 = vsel %vm838, %v2263, %v2265
    %v2288 = vsel %vm838, %v2267, %v2269
    %v2289 = vsel %vm838, %v2271, %v2273
    %v2290 = vsel %vm838, %v2275, %v2277
    %v2291 = vsel %vm838, %v2279, %v2281
    %v2292 = vsel %vm838, %v2283, %v2285
    %v2307 = vadd.f32 %v2230, %v2286
    %v2308 = vadd.f32 %v2231, %v2261
    %v2309 = vadd.f32 %v2232, %v2287
    %v2310 = vadd.f32 %v2233, %v2265
    %v2311 = vadd.f32 %v2234, %v2288
    %v2312 = vadd.f32 %v2235, %v2269
    %v2313 = vadd.f32 %v2236, %v2289
    %v2314 = vadd.f32 %v2237, %v2273
    %v2315 = vadd.f32 %v2238, %v2290
    %v2316 = vadd.f32 %v2239, %v2277
    %v2317 = vadd.f32 %v2240, %v2291
    %v2318 = vadd.f32 %v2241, %v2281
    %v2319 = vadd.f32 %v2242, %v2292
    %v2320 = vadd.f32 %v2243, %v2285
    %2329 = vrot.lane.b32.xlu0 %v1917, 8
    %v2330 = vpop.permute.xlu0 %2329
    %2331 = vrot.lane.b32.xlu0 %v1985, 8
    %v2332 = vpop.permute.xlu0 %2331
    %2333 = vrot.lane.b32.xlu0 %v1987, 8
    %v2334 = vpop.permute.xlu0 %2333
    %2335 = vrot.lane.b32.xlu0 %v1923, 8
    %v2336 = vpop.permute.xlu0 %2335
    %2337 = vrot.lane.b32.xlu0 %v1991, 8
    %v2338 = vpop.permute.xlu0 %2337
    %2339 = vrot.lane.b32.xlu0 %v1993, 8
    %v2340 = vpop.permute.xlu0 %2339
    %2341 = vrot.lane.b32.xlu0 %v1927, 8
    %v2342 = vpop.permute.xlu0 %2341
    %2343 = vrot.lane.b32.xlu0 %v1995, 8
    %v2344 = vpop.permute.xlu0 %2343
    %2345 = vrot.lane.b32.xlu0 %v1997, 8
    %v2346 = vpop.permute.xlu0 %2345
    %2347 = vrot.lane.b32.xlu0 %v1933, 8
    %v2348 = vpop.permute.xlu0 %2347
    %2349 = vrot.lane.b32.xlu0 %v2001, 8
    %v2350 = vpop.permute.xlu0 %2349
    %2351 = vrot.lane.b32.xlu0 %v2003, 8
    %v2352 = vpop.permute.xlu0 %2351
    %2353 = vrot.lane.b32.xlu0 %v1937, 8
    %v2354 = vpop.permute.xlu0 %2353
    %2355 = vrot.lane.b32.xlu0 %v2005, 8
    %v2356 = vpop.permute.xlu0 %2355
    %2357 = vrot.lane.b32.xlu0 %v2007, 8
    %v2358 = vpop.permute.xlu0 %2357
    %2359 = vrot.lane.b32.xlu0 %v1943, 8
    %v2360 = vpop.permute.xlu0 %2359
    %2361 = vrot.lane.b32.xlu0 %v2011, 8
    %v2362 = vpop.permute.xlu0 %2361
    %2363 = vrot.lane.b32.xlu0 %v2013, 8
    %v2364 = vpop.permute.xlu0 %2363
    %2365 = vrot.lane.b32.xlu0 %v1946, 8
    %v2366 = vpop.permute.xlu0 %2365
    %2367 = vrot.lane.b32.xlu0 %v2015, 8
    %v2368 = vpop.permute.xlu0 %2367
    %2369 = vrot.lane.b32.xlu0 %v2017, 8
    %v2370 = vpop.permute.xlu0 %2369
    %v2371 = vsel %vm930, %v2330, %v2332
    %v2372 = vsel %vm930, %v2332, %v2334
    %v2373 = vsel %vm930, %v2336, %v2338
    %v2374 = vsel %vm930, %v2338, %v2340
    %v2375 = vsel %vm930, %v2342, %v2344
    %v2376 = vsel %vm930, %v2344, %v2346
    %v2377 = vsel %vm930, %v2348, %v2350
    %v2378 = vsel %vm930, %v2350, %v2352
    %v2379 = vsel %vm930, %v2354, %v2356
    %v2380 = vsel %vm930, %v2356, %v2358
    %v2381 = vsel %vm930, %v2360, %v2362
    %v2382 = vsel %vm930, %v2362, %v2364
    %v2383 = vsel %vm930, %v2366, %v2368
    %v2384 = vsel %vm930, %v2368, %v2370
    %v2399 = vadd.f32 %v1750, %v2371
    %v2400 = vadd.f32 %v1751, %v2372
    %v2401 = vadd.f32 %v1752, %v2373
    %v2402 = vadd.f32 %v1753, %v2374
    %v2403 = vadd.f32 %v1754, %v2375
    %v2404 = vadd.f32 %v1755, %v2376
    %v2405 = vadd.f32 %v1756, %v2377
    %v2406 = vadd.f32 %v1757, %v2378
    %v2407 = vadd.f32 %v1758, %v2379
    %v2408 = vadd.f32 %v1759, %v2380
    %v2409 = vadd.f32 %v1760, %v2381
    %v2410 = vadd.f32 %v1761, %v2382
    %v2411 = vadd.f32 %v1762, %v2383
    %v2412 = vadd.f32 %v1763, %v2384
    %s2413 = scalar_lea.vmem [#allocation10], 96
    %v2414 = vld [vmem:[%s2413] sm:$0xf]
    %v2415 = vld [vmem:[%s2413 + $0x4] sm:$0xf]
    %v2416 = vld [vmem:[%s2413 + $0x8] sm:$0xf]
    %v2417 = vld [vmem:[%s2413 + $0xc] sm:$0xf]
    %v2418 = vld [vmem:[%s2413 + $0x10] sm:$0xf]
    %v2419 = vld [vmem:[%s2413 + $0x14] sm:$0xf]
    %v2420 = vld [vmem:[%s2413 + $0x18] sm:$0xf]
    %v2421 = vld [vmem:[%s2413 + $0x1c] sm:$0xf]
    %v2430 = vunpack.c.l.b16 %v2414
    %v2431 = vunpack.c.l.b16 %v2415
    %v2432 = vunpack.c.l.b16 %v2416
    %v2433 = vunpack.c.l.b16 %v2417
    %v2434 = vunpack.c.l.b16 %v2418
    %v2435 = vunpack.c.l.b16 %v2419
    %v2436 = vunpack.c.l.b16 %v2420
    %v2437 = vunpack.c.l.b16 %v2421
    %v2438 = vpack.c.b16 %v2431, %v2430
    %v2439 = vpack.c.b16 %v2433, %v2432
    %v2440 = vpack.c.b16 %v2435, %v2434
    %v2441 = vpack.c.b16 %v2437, %v2436
    %v2443 = vsel %vm480, %v2438, 0
    %v2446 = vsel %vm480, %v2439, 0
    %v2449 = vsel %vm480, %v2440, 0
    %v2452 = vsel %vm480, %v2441, 0
    %2454 = vmatprep.subr.bf16.mxu0 %v453
    %2455 = vmatpush1.bf16.msra.mxu0 %v452
    %2456 = vmatprep.subr.bf16.mxu0 %v460
    %2457 = vmatpush1.bf16.msra.mxu0 %v459
    %2458 = vmatprep.subr.bf16.mxu0 0
    %2459 = vmatpush1.bf16.msra.mxu0 0
    %2460 = vmatprep.subr.bf16.mxu0 0
    %2461 = vmatpush1.bf16.msra.mxu0 0
    %2462 = vmatprep.subr.bf16.mxu0 0
    %2463 = vmatpush1.bf16.msra.mxu0 0
    %2464 = vmatprep.subr.bf16.mxu0 0
    %2465 = vmatpush1.bf16.msra.mxu0 0
    %2466 = vmatprep.subr.bf16.mxu0 0
    %2467 = vmatpush1.bf16.msra.mxu0 0
    %2468 = vmatprep.subr.bf16.mxu0 0
    %2469 = vmatpush1.bf16.msra.mxu0 0
    %2470 = vmatprep.subr.bf16.mxu0 0
    %2471 = vmatpush1.bf16.msra.mxu0 0
    %2472 = vmatprep.subr.bf16.mxu0 0
    %2473 = vmatpush1.bf16.msra.mxu0 0
    %2474 = vmatprep.subr.bf16.mxu0 0
    %2475 = vmatpush1.bf16.msra.mxu0 0
    %2476 = vmatprep.subr.bf16.mxu0 0
    %2477 = vmatpush1.bf16.msra.mxu0 0
    %2478 = vmatprep.subr.bf16.mxu0 0
    %2479 = vmatpush1.bf16.msra.mxu0 0
    %2480 = vmatprep.subr.bf16.mxu0 0
    %2481 = vmatpush1.bf16.msra.mxu0 0
    %2482 = vmatprep.subr.bf16.mxu0 0
    %2483 = vmatpush1.bf16.msra.mxu0 0
    %2484 = vmatprep.subr.bf16.mxu0 0
    %2485 = vmatpush1.bf16.msra.mxu0 0
    %2486 = vmatprep.mubr.bf16.mxu0 0
    %2487 = vmatmul.mubr.bf16.gmra.mrb[0].mxu0 %v2443
    %v2488 = vpop.f32.mrb[0].mxu0
    %v2489 = vadd.f32 0.0, %v2488
    %v2490 = vpop.f32.mrb[0].mxu0
    %v2491 = vadd.f32 0.0, %v2490
    %v2492 = vpop.f32.mrb[0].mxu0
    %v2493 = vadd.f32 0.0, %v2492
    %v2494 = vpop.f32.mrb[0].mxu0
    %v2495 = vadd.f32 0.0, %v2494
    %2496 = vmatprep.mubr.bf16.mxu0 0
    %2497 = vmatmul.mubr.bf16.gmra.mrb[0].mxu0 %v2446
    %v2498 = vpop.f32.mrb[0].mxu0
    %v2499 = vadd.f32 0.0, %v2498
    %v2500 = vpop.f32.mrb[0].mxu0
    %v2501 = vadd.f32 0.0, %v2500
    %v2502 = vpop.f32.mrb[0].mxu0
    %v2503 = vadd.f32 0.0, %v2502
    %v2504 = vpop.f32.mrb[0].mxu0
    %v2505 = vadd.f32 0.0, %v2504
    %2506 = vmatprep.mubr.bf16.mxu0 0
    %2507 = vmatmul.mubr.bf16.gmra.mrb[0].mxu0 %v2449
    %v2508 = vpop.f32.mrb[0].mxu0
    %v2509 = vadd.f32 0.0, %v2508
    %v2510 = vpop.f32.mrb[0].mxu0
    %v2511 = vadd.f32 0.0, %v2510
    %v2512 = vpop.f32.mrb[0].mxu0
    %v2513 = vadd.f32 0.0, %v2512
    %v2514 = vpop.f32.mrb[0].mxu0
    %v2515 = vadd.f32 0.0, %v2514
    %2516 = vmatprep.mubr.bf16.mxu0 0
    %2517 = vmatmul.mubr.bf16.gmra.mrb[0].mxu0 %v2452
    %v2518 = vpop.f32.mrb[0].mxu0
    %v2519 = vadd.f32 0.0, %v2518
    %v2520 = vpop.f32.mrb[0].mxu0
    %v2521 = vadd.f32 0.0, %v2520
    %v2522 = vpop.f32.mrb[0].mxu0
    %v2523 = vpop.f32.mrb[0].mxu0
    %2524 = vdwg.mxu0
    %2525 = vmatprep.subr.bf16.mxu0 %v455
    %2526 = vmatpush1.bf16.msra.mxu0 %v454
    %2527 = vmatprep.subr.bf16.mxu0 %v462
    %2528 = vmatpush1.bf16.msra.mxu0 %v461
    %2529 = vmatprep.subr.bf16.mxu0 0
    %2530 = vmatpush1.bf16.msra.mxu0 0
    %2531 = vmatprep.subr.bf16.mxu0 0
    %2532 = vmatpush1.bf16.msra.mxu0 0
    %2533 = vmatprep.subr.bf16.mxu0 0
    %2534 = vmatpush1.bf16.msra.mxu0 0
    %2535 = vmatprep.subr.bf16.mxu0 0
    %2536 = vmatpush1.bf16.msra.mxu0 0
    %2537 = vmatprep.subr.bf16.mxu0 0
    %2538 = vmatpush1.bf16.msra.mxu0 0
    %2539 = vmatprep.subr.bf16.mxu0 0
    %2540 = vmatpush1.bf16.msra.mxu0 0
    %2541 = vmatprep.subr.bf16.mxu0 0
    %2542 = vmatpush1.bf16.msra.mxu0 0
    %2543 = vmatprep.subr.bf16.mxu0 0
    %2544 = vmatpush1.bf16.msra.mxu0 0
    %2545 = vmatprep.subr.bf16.mxu0 0
    %2546 = vmatpush1.bf16.msra.mxu0 0
    %2547 = vmatprep.subr.bf16.mxu0 0
    %2548 = vmatpush1.bf16.msra.mxu0 0
    %2549 = vmatprep.subr.bf16.mxu0 0
    %2550 = vmatpush1.bf16.msra.mxu0 0
    %2551 = vmatprep.subr.bf16.mxu0 0
    %2552 = vmatpush1.bf16.msra.mxu0 0
    %2553 = vmatprep.subr.bf16.mxu0 0
    %2554 = vmatpush1.bf16.msra.mxu0 0
    %2555 = vmatprep.subr.bf16.mxu0 0
    %2556 = vmatpush1.bf16.msra.mxu0 0
    %2557 = vmatprep.mubr.bf16.mxu0 0
    %2558 = vmatmul.mubr.bf16.gmra.mrb[0].mxu0 %v2443
    %v2559 = vpop.f32.mrb[0].mxu0
    %v2560 = vadd.f32 0.0, %v2559
    %v2561 = vpop.f32.mrb[0].mxu0
    %v2562 = vadd.f32 0.0, %v2561
    %v2563 = vpop.f32.mrb[0].mxu0
    %v2564 = vadd.f32 0.0, %v2563
    %v2565 = vpop.f32.mrb[0].mxu0
    %v2566 = vadd.f32 0.0, %v2565
    %2567 = vmatprep.mubr.bf16.mxu0 0
    %2568 = vmatmul.mubr.bf16.gmra.mrb[0].mxu0 %v2446
    %v2569 = vpop.f32.mrb[0].mxu0
    %v2570 = vadd.f32 0.0, %v2569
    %v2571 = vpop.f32.mrb[0].mxu0
    %v2572 = vadd.f32 0.0, %v2571
    %v2573 = vpop.f32.mrb[0].mxu0
    %v2574 = vadd.f32 0.0, %v2573
    %v2575 = vpop.f32.mrb[0].mxu0
    %v2576 = vadd.f32 0.0, %v2575
    %2577 = vmatprep.mubr.bf16.mxu0 0
    %2578 = vmatmul.mubr.bf16.gmra.mrb[0].mxu0 %v2449
    %v2579 = vpop.f32.mrb[0].mxu0
    %v2580 = vadd.f32 0.0, %v2579
    %v2581 = vpop.f32.mrb[0].mxu0
    %v2582 = vadd.f32 0.0, %v2581
    %v2583 = vpop.f32.mrb[0].mxu0
    %v2584 = vadd.f32 0.0, %v2583
    %v2585 = vpop.f32.mrb[0].mxu0
    %v2586 = vadd.f32 0.0, %v2585
    %2587 = vmatprep.mubr.bf16.mxu0 0
    %2588 = vmatmul.mubr.bf16.gmra.mrb[0].mxu0 %v2452
    %v2589 = vpop.f32.mrb[0].mxu0
    %v2590 = vadd.f32 0.0, %v2589
    %v2591 = vpop.f32.mrb[0].mxu0
    %v2592 = vadd.f32 0.0, %v2591
    %v2593 = vpop.f32.mrb[0].mxu0
    %v2594 = vpop.f32.mrb[0].mxu0
    %2595 = vdwg.mxu0
    %2596 = vmatprep.subr.bf16.mxu0 %v457
    %2597 = vmatpush1.bf16.msra.mxu0 %v456
    %2598 = vmatprep.subr.bf16.mxu0 %v464
    %2599 = vmatpush1.bf16.msra.mxu0 %v463
    %2600 = vmatprep.subr.bf16.mxu0 0
    %2601 = vmatpush1.bf16.msra.mxu0 0
    %2602 = vmatprep.subr.bf16.mxu0 0
    %2603 = vmatpush1.bf16.msra.mxu0 0
    %2604 = vmatprep.subr.bf16.mxu0 0
    %2605 = vmatpush1.bf16.msra.mxu0 0
    %2606 = vmatprep.subr.bf16.mxu0 0
    %2607 = vmatpush1.bf16.msra.mxu0 0
    %2608 = vmatprep.subr.bf16.mxu0 0
    %2609 = vmatpush1.bf16.msra.mxu0 0
    %2610 = vmatprep.subr.bf16.mxu0 0
    %2611 = vmatpush1.bf16.msra.mxu0 0
    %2612 = vmatprep.subr.bf16.mxu0 0
    %2613 = vmatpush1.bf16.msra.mxu0 0
    %2614 = vmatprep.subr.bf16.mxu0 0
    %2615 = vmatpush1.bf16.msra.mxu0 0
    %2616 = vmatprep.subr.bf16.mxu0 0
    %2617 = vmatpush1.bf16.msra.mxu0 0
    %2618 = vmatprep.subr.bf16.mxu0 0
    %2619 = vmatpush1.bf16.msra.mxu0 0
    %2620 = vmatprep.subr.bf16.mxu0 0
    %2621 = vmatpush1.bf16.msra.mxu0 0
    %2622 = vmatprep.subr.bf16.mxu0 0
    %2623 = vmatpush1.bf16.msra.mxu0 0
    %2624 = vmatprep.subr.bf16.mxu0 0
    %2625 = vmatpush1.bf16.msra.mxu0 0
    %2626 = vmatprep.subr.bf16.mxu0 0
    %2627 = vmatpush1.bf16.msra.mxu0 0
    %2628 = vmatprep.mubr.bf16.mxu0 0
    %2629 = vmatmul.mubr.bf16.gmra.mrb[0].mxu0 %v2443
    %v2630 = vpop.f32.mrb[0].mxu0
    %v2631 = vadd.f32 0.0, %v2630
    %v2632 = vpop.f32.mrb[0].mxu0
    %v2633 = vadd.f32 0.0, %v2632
    %v2634 = vpop.f32.mrb[0].mxu0
    %v2635 = vadd.f32 0.0, %v2634
    %v2636 = vpop.f32.mrb[0].mxu0
    %v2637 = vadd.f32 0.0, %v2636
    %2638 = vmatprep.mubr.bf16.mxu0 0
    %2639 = vmatmul.mubr.bf16.gmra.mrb[0].mxu0 %v2446
    %v2640 = vpop.f32.mrb[0].mxu0
    %v2641 = vadd.f32 0.0, %v2640
    %v2642 = vpop.f32.mrb[0].mxu0
    %v2643 = vadd.f32 0.0, %v2642
    %v2644 = vpop.f32.mrb[0].mxu0
    %v2645 = vadd.f32 0.0, %v2644
    %v2646 = vpop.f32.mrb[0].mxu0
    %v2647 = vadd.f32 0.0, %v2646
    %2648 = vmatprep.mubr.bf16.mxu0 0
    %2649 = vmatmul.mubr.bf16.gmra.mrb[0].mxu0 %v2449
    %v2650 = vpop.f32.mrb[0].mxu0
    %v2651 = vadd.f32 0.0, %v2650
    %v2652 = vpop.f32.mrb[0].mxu0
    %v2653 = vadd.f32 0.0, %v2652
    %v2654 = vpop.f32.mrb[0].mxu0
    %v2655 = vadd.f32 0.0, %v2654
    %v2656 = vpop.f32.mrb[0].mxu0
    %v2657 = vadd.f32 0.0, %v2656
    %2658 = vmatprep.mubr.bf16.mxu0 0
    %2659 = vmatmul.mubr.bf16.gmra.mrb[0].mxu0 %v2452
    %v2660 = vpop.f32.mrb[0].mxu0
    %v2661 = vadd.f32 0.0, %v2660
    %v2662 = vpop.f32.mrb[0].mxu0
    %v2663 = vadd.f32 0.0, %v2662
    %v2664 = vpop.f32.mrb[0].mxu0
    %v2665 = vpop.f32.mrb[0].mxu0
    %v2666 = vadd.f32 0.0, %v2665
    %2667 = vdwg.mxu0
    %2668 = vmatprep.subr.bf16.mxu0 0
    %2669 = vmatpush1.bf16.msra.mxu0 %v458
    %2670 = vmatprep.subr.bf16.mxu0 0
    %2671 = vmatpush1.bf16.msra.mxu0 %v465
    %2672 = vmatprep.subr.bf16.mxu0 0
    %2673 = vmatpush1.bf16.msra.mxu0 0
    %2674 = vmatprep.subr.bf16.mxu0 0
    %2675 = vmatpush1.bf16.msra.mxu0 0
    %2676 = vmatprep.subr.bf16.mxu0 0
    %2677 = vmatpush1.bf16.msra.mxu0 0
    %2678 = vmatprep.subr.bf16.mxu0 0
    %2679 = vmatpush1.bf16.msra.mxu0 0
    %2680 = vmatprep.subr.bf16.mxu0 0
    %2681 = vmatpush1.bf16.msra.mxu0 0
    %2682 = vmatprep.subr.bf16.mxu0 0
    %2683 = vmatpush1.bf16.msra.mxu0 0
    %2684 = vmatprep.subr.bf16.mxu0 0
    %2685 = vmatpush1.bf16.msra.mxu0 0
    %2686 = vmatprep.subr.bf16.mxu0 0
    %2687 = vmatpush1.bf16.msra.mxu0 0
    %2688 = vmatprep.subr.bf16.mxu0 0
    %2689 = vmatpush1.bf16.msra.mxu0 0
    %2690 = vmatprep.subr.bf16.mxu0 0
    %2691 = vmatpush1.bf16.msra.mxu0 0
    %2692 = vmatprep.subr.bf16.mxu0 0
    %2693 = vmatpush1.bf16.msra.mxu0 0
    %2694 = vmatprep.subr.bf16.mxu0 0
    %2695 = vmatpush1.bf16.msra.mxu0 0
    %2696 = vmatprep.subr.bf16.mxu0 0
    %2697 = vmatpush1.bf16.msra.mxu0 0
    %2698 = vmatprep.subr.bf16.mxu0 0
    %2699 = vmatpush1.bf16.msra.mxu0 0
    %2700 = vmatprep.mubr.bf16.mxu0 0
    %2701 = vmatmul.mubr.bf16.gmra.mrb[0].mxu0 %v2443
    %v2702 = vpop.f32.mrb[0].mxu0
    %v2703 = vpop.f32.mrb[0].mxu0
    %v2704 = vpop.f32.mrb[0].mxu0
    %v2705 = vadd.f32 0.0, %v2704
    %v2706 = vpop.f32.mrb[0].mxu0
    %2707 = vmatprep.mubr.bf16.mxu0 0
    %2708 = vmatmul.mubr.bf16.gmra.mrb[0].mxu0 %v2446
    %v2709 = vpop.f32.mrb[0].mxu0
    %v2710 = vadd.f32 0.0, %v2709
    %v2711 = vpop.f32.mrb[0].mxu0
    %v2712 = vpop.f32.mrb[0].mxu0
    %v2713 = vadd.f32 0.0, %v2712
    %v2714 = vpop.f32.mrb[0].mxu0
    %2715 = vmatprep.mubr.bf16.mxu0 0
    %2716 = vmatmul.mubr.bf16.gmra.mrb[0].mxu0 %v2449
    %v2717 = vpop.f32.mrb[0].mxu0
    %v2718 = vadd.f32 0.0, %v2717
    %v2719 = vpop.f32.mrb[0].mxu0
    %v2720 = vpop.f32.mrb[0].mxu0
    %v2721 = vadd.f32 0.0, %v2720
    %v2722 = vpop.f32.mrb[0].mxu0
    %2723 = vmatprep.mubr.bf16.mxu0 0
    %2724 = vmatmul.mubr.bf16.gmra.mrb[0].mxu0 %v2452
    %v2725 = vpop.f32.mrb[0].mxu0
    %v2726 = vadd.f32 0.0, %v2725
    %v2727 = vpop.f32.mrb[0].mxu0
    %v2728 = vpop.f32.mrb[0].mxu0
    %v2729 = vadd.f32 0.0, %v2728
    %v2730 = vpop.f32.mrb[0].mxu0
    %2731 = vdwg.mxu0
    %2753 = vrot.lane.b32.xlu0 %v2562, 8
    %v2754 = vpop.permute.xlu0 %2753
    %2755 = vrot.lane.b32.xlu0 %v2631, 8
    %v2756 = vpop.permute.xlu0 %2755
    %2757 = vrot.lane.b32.xlu0 %v2633, 8
    %v2758 = vpop.permute.xlu0 %2757
    %2759 = vrot.lane.b32.xlu0 %v2566, 8
    %v2760 = vpop.permute.xlu0 %2759
    %2761 = vrot.lane.b32.xlu0 %v2635, 8
    %v2762 = vpop.permute.xlu0 %2761
    %2763 = vrot.lane.b32.xlu0 %v2637, 8
    %v2764 = vpop.permute.xlu0 %2763
    %2765 = vrot.lane.b32.xlu0 %v2572, 8
    %v2766 = vpop.permute.xlu0 %2765
    %2767 = vrot.lane.b32.xlu0 %v2641, 8
    %v2768 = vpop.permute.xlu0 %2767
    %2769 = vrot.lane.b32.xlu0 %v2643, 8
    %v2770 = vpop.permute.xlu0 %2769
    %2771 = vrot.lane.b32.xlu0 %v2576, 8
    %v2772 = vpop.permute.xlu0 %2771
    %2773 = vrot.lane.b32.xlu0 %v2645, 8
    %v2774 = vpop.permute.xlu0 %2773
    %2775 = vrot.lane.b32.xlu0 %v2647, 8
    %v2776 = vpop.permute.xlu0 %2775
    %2777 = vrot.lane.b32.xlu0 %v2582, 8
    %v2778 = vpop.permute.xlu0 %2777
    %2779 = vrot.lane.b32.xlu0 %v2651, 8
    %v2780 = vpop.permute.xlu0 %2779
    %2781 = vrot.lane.b32.xlu0 %v2653, 8
    %v2782 = vpop.permute.xlu0 %2781
    %2783 = vrot.lane.b32.xlu0 %v2586, 8
    %v2784 = vpop.permute.xlu0 %2783
    %2785 = vrot.lane.b32.xlu0 %v2655, 8
    %v2786 = vpop.permute.xlu0 %2785
    %2787 = vrot.lane.b32.xlu0 %v2657, 8
    %v2788 = vpop.permute.xlu0 %2787
    %2789 = vrot.lane.b32.xlu0 %v2592, 8
    %v2790 = vpop.permute.xlu0 %2789
    %2791 = vrot.lane.b32.xlu0 %v2661, 8
    %v2792 = vpop.permute.xlu0 %2791
    %2793 = vrot.lane.b32.xlu0 %v2663, 8
    %v2794 = vpop.permute.xlu0 %2793
    %v2795 = vsel %vm930, %v2754, %v2756
    %v2796 = vsel %vm930, %v2756, %v2758
    %v2797 = vsel %vm930, %v2760, %v2762
    %v2798 = vsel %vm930, %v2762, %v2764
    %v2799 = vsel %vm930, %v2766, %v2768
    %v2800 = vsel %vm930, %v2768, %v2770
    %v2801 = vsel %vm930, %v2772, %v2774
    %v2802 = vsel %vm930, %v2774, %v2776
    %v2803 = vsel %vm930, %v2778, %v2780
    %v2804 = vsel %vm930, %v2780, %v2782
    %v2805 = vsel %vm930, %v2784, %v2786
    %v2806 = vsel %vm930, %v2786, %v2788
    %v2807 = vsel %vm930, %v2790, %v2792
    %v2808 = vsel %vm930, %v2792, %v2794
    %v2823 = vadd.f32 %v2146, %v2795
    %v2824 = vadd.f32 %v2147, %v2796
    %v2825 = vadd.f32 %v2148, %v2797
    %v2826 = vadd.f32 %v2149, %v2798
    %v2827 = vadd.f32 %v2150, %v2799
    %v2828 = vadd.f32 %v2151, %v2800
    %v2829 = vadd.f32 %v2152, %v2801
    %v2830 = vadd.f32 %v2153, %v2802
    %v2831 = vadd.f32 %v2154, %v2803
    %v2832 = vadd.f32 %v2155, %v2804
    %v2833 = vadd.f32 %v2156, %v2805
    %v2834 = vadd.f32 %v2157, %v2806
    %v2835 = vadd.f32 %v2158, %v2807
    %v2836 = vadd.f32 %v2159, %v2808
    %2844 = vrot.lane.b32.xlu0 %v2560, 48
    %v2845 = vpop.permute.xlu0 %2844
    %2846 = vrot.lane.b32.xlu0 %v2562, 48
    %v2847 = vpop.permute.xlu0 %2846
    %2848 = vrot.lane.b32.xlu0 %v2564, 48
    %v2849 = vpop.permute.xlu0 %2848
    %2850 = vrot.lane.b32.xlu0 %v2566, 48
    %v2851 = vpop.permute.xlu0 %2850
    %2852 = vrot.lane.b32.xlu0 %v2570, 48
    %v2853 = vpop.permute.xlu0 %2852
    %2854 = vrot.lane.b32.xlu0 %v2572, 48
    %v2855 = vpop.permute.xlu0 %2854
    %2856 = vrot.lane.b32.xlu0 %v2574, 48
    %v2857 = vpop.permute.xlu0 %2856
    %2858 = vrot.lane.b32.xlu0 %v2576, 48
    %v2859 = vpop.permute.xlu0 %2858
    %2860 = vrot.lane.b32.xlu0 %v2580, 48
    %v2861 = vpop.permute.xlu0 %2860
    %2862 = vrot.lane.b32.xlu0 %v2582, 48
    %v2863 = vpop.permute.xlu0 %2862
    %2864 = vrot.lane.b32.xlu0 %v2584, 48
    %v2865 = vpop.permute.xlu0 %2864
    %2866 = vrot.lane.b32.xlu0 %v2586, 48
    %v2867 = vpop.permute.xlu0 %2866
    %2868 = vrot.lane.b32.xlu0 %v2590, 48
    %v2869 = vpop.permute.xlu0 %2868
    %2870 = vrot.lane.b32.xlu0 %v2592, 48
    %v2871 = vpop.permute.xlu0 %2870
    %v2872 = vsel %vm1008, %v2845, %v2847
    %v2873 = vsel %vm1008, %v2849, %v2851
    %v2874 = vsel %vm1008, %v2853, %v2855
    %v2875 = vsel %vm1008, %v2857, %v2859
    %v2876 = vsel %vm1008, %v2861, %v2863
    %v2877 = vsel %vm1008, %v2865, %v2867
    %v2878 = vsel %vm1008, %v2869, %v2871
    %v2893 = vadd.f32 %v2216, %v2872
    %v2894 = vadd.f32 %v2217, %v2847
    %v2895 = vadd.f32 %v2218, %v2873
    %v2896 = vadd.f32 %v2219, %v2851
    %v2897 = vadd.f32 %v2220, %v2874
    %v2898 = vadd.f32 %v2221, %v2855
    %v2899 = vadd.f32 %v2222, %v2875
    %v2900 = vadd.f32 %v2223, %v2859
    %v2901 = vadd.f32 %v2224, %v2876
    %v2902 = vadd.f32 %v2225, %v2863
    %v2903 = vadd.f32 %v2226, %v2877
    %v2904 = vadd.f32 %v2227, %v2867
    %v2905 = vadd.f32 %v2228, %v2878
    %v2906 = vadd.f32 %v2229, %v2871
    %2914 = vrot.lane.b32.xlu0 %v2491, 88
    %v2915 = vpop.permute.xlu0 %2914
    %2916 = vrot.lane.b32.xlu0 %v2560, 88
    %v2917 = vpop.permute.xlu0 %2916
    %2918 = vrot.lane.b32.xlu0 %v2495, 88
    %v2919 = vpop.permute.xlu0 %2918
    %2920 = vrot.lane.b32.xlu0 %v2564, 88
    %v2921 = vpop.permute.xlu0 %2920
    %2922 = vrot.lane.b32.xlu0 %v2501, 88
    %v2923 = vpop.permute.xlu0 %2922
    %2924 = vrot.lane.b32.xlu0 %v2570, 88
    %v2925 = vpop.permute.xlu0 %2924
    %2926 = vrot.lane.b32.xlu0 %v2505, 88
    %v2927 = vpop.permute.xlu0 %2926
    %2928 = vrot.lane.b32.xlu0 %v2574, 88
    %v2929 = vpop.permute.xlu0 %2928
    %2930 = vrot.lane.b32.xlu0 %v2511, 88
    %v2931 = vpop.permute.xlu0 %2930
    %2932 = vrot.lane.b32.xlu0 %v2580, 88
    %v2933 = vpop.permute.xlu0 %2932
    %2934 = vrot.lane.b32.xlu0 %v2515, 88
    %v2935 = vpop.permute.xlu0 %2934
    %2936 = vrot.lane.b32.xlu0 %v2584, 88
    %v2937 = vpop.permute.xlu0 %2936
    %2938 = vrot.lane.b32.xlu0 %v2521, 88
    %v2939 = vpop.permute.xlu0 %2938
    %2940 = vrot.lane.b32.xlu0 %v2590, 88
    %v2941 = vpop.permute.xlu0 %2940
    %v2942 = vsel %vm1079, %v2915, %v2917
    %v2943 = vsel %vm1079, %v2919, %v2921
    %v2944 = vsel %vm1079, %v2923, %v2925
    %v2945 = vsel %vm1079, %v2927, %v2929
    %v2946 = vsel %vm1079, %v2931, %v2933
    %v2947 = vsel %vm1079, %v2935, %v2937
    %v2948 = vsel %vm1079, %v2939, %v2941
    %v2963 = vadd.f32 %v2307, %v2942
    %v2964 = vadd.f32 %v2308, %v2917
    %v2965 = vadd.f32 %v2309, %v2943
    %v2966 = vadd.f32 %v2310, %v2921
    %v2967 = vadd.f32 %v2311, %v2944
    %v2968 = vadd.f32 %v2312, %v2925
    %v2969 = vadd.f32 %v2313, %v2945
    %v2970 = vadd.f32 %v2314, %v2929
    %v2971 = vadd.f32 %v2315, %v2946
    %v2972 = vadd.f32 %v2316, %v2933
    %v2973 = vadd.f32 %v2317, %v2947
    %v2974 = vadd.f32 %v2318, %v2937
    %v2975 = vadd.f32 %v2319, %v2948
    %v2976 = vadd.f32 %v2320, %v2941
    %v2977 = vadd.f32 %v2399, %v2489
    %v2978 = vadd.f32 %v2400, %v2491
    %v2979 = vadd.f32 %v2401, %v2493
    %v2980 = vadd.f32 %v2402, %v2495
    %v2981 = vadd.f32 %v2403, %v2499
    %v2982 = vadd.f32 %v2404, %v2501
    %v2983 = vadd.f32 %v2405, %v2503
    %v2984 = vadd.f32 %v2406, %v2505
    %v2985 = vadd.f32 %v2407, %v2509
    %v2986 = vadd.f32 %v2408, %v2511
    %v2987 = vadd.f32 %v2409, %v2513
    %v2988 = vadd.f32 %v2410, %v2515
    %v2989 = vadd.f32 %v2411, %v2519
    %v2990 = vadd.f32 %v2412, %v2521
    %2999 = vrot.lane.b32.xlu0 %v2637, 96
    %v3000 = vpop.permute.xlu0 %2999
    %3001 = vrot.lane.b32.xlu0 %v2705, 96
    %v3002 = vpop.permute.xlu0 %3001
    %3003 = vrot.lane.b32.xlu0 %v2643, 96
    %v3004 = vpop.permute.xlu0 %3003
    %3005 = vrot.lane.b32.xlu0 %v2710, 96
    %v3006 = vpop.permute.xlu0 %3005
    %3007 = vrot.lane.b32.xlu0 %v2647, 96
    %v3008 = vpop.permute.xlu0 %3007
    %3009 = vrot.lane.b32.xlu0 %v2713, 96
    %v3010 = vpop.permute.xlu0 %3009
    %3011 = vrot.lane.b32.xlu0 %v2653, 96
    %v3012 = vpop.permute.xlu0 %3011
    %3013 = vrot.lane.b32.xlu0 %v2718, 96
    %v3014 = vpop.permute.xlu0 %3013
    %3015 = vrot.lane.b32.xlu0 %v2657, 96
    %v3016 = vpop.permute.xlu0 %3015
    %3017 = vrot.lane.b32.xlu0 %v2721, 96
    %v3018 = vpop.permute.xlu0 %3017
    %3019 = vrot.lane.b32.xlu0 %v2663, 96
    %v3020 = vpop.permute.xlu0 %3019
    %3021 = vrot.lane.b32.xlu0 %v2726, 96
    %v3022 = vpop.permute.xlu0 %3021
    %3023 = vrot.lane.b32.xlu0 %v2666, 96
    %v3024 = vpop.permute.xlu0 %3023
    %3025 = vrot.lane.b32.xlu0 %v2729, 96
    %v3026 = vpop.permute.xlu0 %3025
    %v3027 = vsel %vm838, %v3000, %v3002
    %v3028 = vsel %vm838, %v3004, %v3006
    %v3029 = vsel %vm838, %v3008, %v3010
    %v3030 = vsel %vm838, %v3012, %v3014
    %v3031 = vsel %vm838, %v3016, %v3018
    %v3032 = vsel %vm838, %v3020, %v3022
    %v3033 = vsel %vm838, %v3024, %v3026
    %v3048 = vadd.f32 %v2977, %v3027
    %v3049 = vadd.f32 %v2978, %v3002
    %v3050 = vadd.f32 %v2979, %v3028
    %v3051 = vadd.f32 %v2980, %v3006
    %v3052 = vadd.f32 %v2981, %v3029
    %v3053 = vadd.f32 %v2982, %v3010
    %v3054 = vadd.f32 %v2983, %v3030
    %v3055 = vadd.f32 %v2984, %v3014
    %v3056 = vadd.f32 %v2985, %v3031
    %v3057 = vadd.f32 %v2986, %v3018
    %v3058 = vadd.f32 %v2987, %v3032
    %v3059 = vadd.f32 %v2988, %v3022
    %v3060 = vadd.f32 %v2989, %v3033
    %v3061 = vadd.f32 %v2990, %v3026
    %v3062 = vtanh.pop %v2823
    %v3063 = vtanh.pop %v2824
    %v3064 = vtanh.pop %v2825
    %v3065 = vtanh.pop %v2826
    %v3066 = vtanh.pop %v2827
    %v3067 = vtanh.pop %v2828
    %v3068 = vtanh.pop %v2829
    %v3069 = vtanh.pop %v2830
    %v3070 = vtanh.pop %v2831
    %v3071 = vtanh.pop %v2832
    %v3072 = vtanh.pop %v2833
    %v3073 = vtanh.pop %v2834
    %v3074 = vtanh.pop %v2835
    %v3075 = vtanh.pop %v2836
    %v3076 = vpack.c.bf16 %v3064, %v3062
    %v3077 = vpack.c.bf16 %v3065, %v3063
    %v3078 = vpack.c.bf16 %v3068, %v3066
    %v3079 = vpack.c.bf16 %v3069, %v3067
    %v3080 = vpack.c.bf16 %v3072, %v3070
    %v3081 = vpack.c.bf16 %v3073, %v3071
    %v3082 = vpack.c.bf16 %v3074, %v3074
    %v3083 = vpack.c.bf16 %v3075, %v3075
    %v3084 = vtanh.pop %v2893
    %v3085 = vtanh.pop %v2894
    %v3086 = vtanh.pop %v2895
    %v3087 = vtanh.pop %v2896
    %v3088 = vtanh.pop %v2897
    %v3089 = vtanh.pop %v2898
    %v3090 = vtanh.pop %v2899
    %v3091 = vtanh.pop %v2900
    %v3092 = vtanh.pop %v2901
    %v3093 = vtanh.pop %v2902
    %v3094 = vtanh.pop %v2903
    %v3095 = vtanh.pop %v2904
    %v3096 = vtanh.pop %v2905
    %v3097 = vtanh.pop %v2906
    %v3098 = vpack.c.bf16 %v3086, %v3084
    %v3099 = vpack.c.bf16 %v3087, %v3085
    %v3100 = vpack.c.bf16 %v3090, %v3088
    %v3101 = vpack.c.bf16 %v3091, %v3089
    %v3102 = vpack.c.bf16 %v3094, %v3092
    %v3103 = vpack.c.bf16 %v3095, %v3093
    %v3104 = vpack.c.bf16 %v3096, %v3096
    %v3105 = vpack.c.bf16 %v3097, %v3097
    %v3106 = vtanh.pop %v2963
    %v3107 = vtanh.pop %v2964
    %v3108 = vtanh.pop %v2965
    %v3109 = vtanh.pop %v2966
    %v3110 = vtanh.pop %v2967
    %v3111 = vtanh.pop %v2968
    %v3112 = vtanh.pop %v2969
    %v3113 = vtanh.pop %v2970
    %v3114 = vtanh.pop %v2971
    %v3115 = vtanh.pop %v2972
    %v3116 = vtanh.pop %v2973
    %v3117 = vtanh.pop %v2974
    %v3118 = vtanh.pop %v2975
    %v3119 = vtanh.pop %v2976
    %v3120 = vpack.c.bf16 %v3108, %v3106
    %v3121 = vpack.c.bf16 %v3109, %v3107
    %v3122 = vpack.c.bf16 %v3112, %v3110
    %v3123 = vpack.c.bf16 %v3113, %v3111
    %v3124 = vpack.c.bf16 %v3116, %v3114
    %v3125 = vpack.c.bf16 %v3117, %v3115
    %v3126 = vpack.c.bf16 %v3118, %v3118
    %v3127 = vpack.c.bf16 %v3119, %v3119
    %v3128 = vtanh.pop %v3048
    %v3129 = vtanh.pop %v3049
    %v3130 = vtanh.pop %v3050
    %v3131 = vtanh.pop %v3051
    %v3132 = vtanh.pop %v3052
    %v3133 = vtanh.pop %v3053
    %v3134 = vtanh.pop %v3054
    %v3135 = vtanh.pop %v3055
    %v3136 = vtanh.pop %v3056
    %v3137 = vtanh.pop %v3057
    %v3138 = vtanh.pop %v3058
    %v3139 = vtanh.pop %v3059
    %v3140 = vtanh.pop %v3060
    %v3141 = vtanh.pop %v3061
    %v3142 = vpack.c.bf16 %v3130, %v3128
    %v3143 = vpack.c.bf16 %v3131, %v3129
    %v3144 = vpack.c.bf16 %v3134, %v3132
    %v3145 = vpack.c.bf16 %v3135, %v3133
    %v3146 = vpack.c.bf16 %v3138, %v3136
    %v3147 = vpack.c.bf16 %v3139, %v3137
    %v3148 = vpack.c.bf16 %v3140, %v3140
    %v3149 = vpack.c.bf16 %v3141, %v3141
    %v3150 = vadd.bf16 %v3076, %v3098
    %v3151 = vadd.bf16 %v3077, %v3099
    %v3152 = vadd.bf16 %v3078, %v3100
    %v3153 = vadd.bf16 %v3079, %v3101
    %v3154 = vadd.bf16 %v3080, %v3102
    %v3155 = vadd.bf16 %v3081, %v3103
    %v3156 = vadd.bf16 %v3082, %v3104
    %v3157 = vadd.bf16 %v3083, %v3105
    %v3158 = vld [vmem:[#allocation2] sm:$0xf]
    %v3159 = vld [vmem:[#allocation2 + $0x4] sm:$0xf]
    %v3160 = vld [vmem:[#allocation2 + $0x8] sm:$0xf]
    %v3161 = vld [vmem:[#allocation2 + $0xc] sm:$0xf]
    %v3162 = vld [vmem:[#allocation2 + $0x10] sm:$0xf]
    %v3163 = vld [vmem:[#allocation2 + $0x14] sm:$0xf]
    %v3164 = vld [vmem:[#allocation2 + $0x18] sm:$0xf]
    %v3165 = vld [vmem:[#allocation2 + $0x1c] sm:$0xf]
    %v3166 = vld [vmem:[#allocation2 + $0x20] sm:$0xf]
    %v3167 = vld [vmem:[#allocation2 + $0x24] sm:$0xf]
    %v3168 = vld [vmem:[#allocation2 + $0x28] sm:$0xf]
    %v3169 = vld [vmem:[#allocation2 + $0x2c] sm:$0xf]
    %v3170 = vld [vmem:[#allocation2 + $0x30] sm:$0xf]
    %v3171 = vld [vmem:[#allocation2 + $0x34] sm:$0xf]
    %v3172 = vld [vmem:[#allocation2 + $0x38] sm:$0xf]
    %v3173 = vld [vmem:[#allocation2 + $0x3c] sm:$0xf]
    %v3174 = vld [vmem:[#allocation2 + $0x40] sm:$0xf]
    %v3175 = vld [vmem:[#allocation2 + $0x44] sm:$0xf]
    %v3176 = vld [vmem:[#allocation2 + $0x48] sm:$0xf]
    %v3177 = vld [vmem:[#allocation2 + $0x4c] sm:$0xf]
    %v3178 = vld [vmem:[#allocation2 + $0x50] sm:$0xf]
    %v3200 = vunpack.c.l.b16 %v3158
    %v3201 = vunpack.c.l.b16 %v3159
    %v3202 = vunpack.c.l.b16 %v3160
    %v3203 = vunpack.c.l.b16 %v3161
    %v3204 = vunpack.c.l.b16 %v3162
    %v3205 = vunpack.c.l.b16 %v3163
    %v3206 = vunpack.c.l.b16 %v3164
    %v3207 = vunpack.c.l.b16 %v3165
    %v3208 = vunpack.c.l.b16 %v3166
    %v3209 = vunpack.c.l.b16 %v3167
    %v3210 = vunpack.c.l.b16 %v3168
    %v3211 = vunpack.c.l.b16 %v3169
    %v3212 = vunpack.c.l.b16 %v3170
    %v3213 = vunpack.c.l.b16 %v3171
    %v3214 = vunpack.c.l.b16 %v3172
    %v3215 = vunpack.c.l.b16 %v3173
    %v3216 = vunpack.c.l.b16 %v3174
    %v3217 = vunpack.c.l.b16 %v3175
    %v3218 = vunpack.c.l.b16 %v3176
    %v3219 = vunpack.c.l.b16 %v3177
    %v3220 = vunpack.c.l.b16 %v3178
    %v3221 = vpack.c.b16 %v3201, %v3200
    %v3222 = vpack.c.b16 %v3203, %v3202
    %v3223 = vpack.c.b16 %v3205, %v3204
    %v3224 = vpack.c.b16 %v3207, %v3206
    %v3225 = vpack.c.b16 %v3209, %v3208
    %v3226 = vpack.c.b16 %v3211, %v3210
    %v3227 = vpack.c.b16 %v3213, %v3212
    %v3228 = vpack.c.b16 %v3215, %v3214
    %v3229 = vpack.c.b16 %v3217, %v3216
    %v3230 = vpack.c.b16 %v3219, %v3218
    %v3231 = vpack.c.b16 %v3220, %v3220
    %vm3242 = vcmask 326656
    %v3244 = vsel %vm3242, %v3151, 0
    %v3247 = vsel %vm3242, %v3153, 0
    %v3250 = vsel %vm3242, %v3155, 0
    %v3253 = vsel %vm3242, %v3157, 0
    %vm3255 = vcmask 1043456
    %v3257 = vsel %vm3255, %v3231, 0
    %3259 = vmatprep.subr.bf16.mxu0 0
    %3260 = vmatpush1.bf16.msra.mxu0 %v3221
    %3261 = vmatprep.subr.bf16.mxu0 0
    %3262 = vmatpush1.bf16.msra.mxu0 %v3222
    %3263 = vmatprep.subr.bf16.mxu0 0
    %3264 = vmatpush1.bf16.msra.mxu0 %v3223
    %3265 = vmatprep.subr.bf16.mxu0 0
    %3266 = vmatpush1.bf16.msra.mxu0 %v3224
    %3267 = vmatprep.subr.bf16.mxu0 0
    %3268 = vmatpush1.bf16.msra.mxu0 %v3225
    %3269 = vmatprep.subr.bf16.mxu0 0
    %3270 = vmatpush1.bf16.msra.mxu0 %v3226
    %3271 = vmatprep.subr.bf16.mxu0 0
    %3272 = vmatpush1.bf16.msra.mxu0 %v3227
    %3273 = vmatprep.subr.bf16.mxu0 0
    %3274 = vmatpush1.bf16.msra.mxu0 %v3228
    %3275 = vmatprep.subr.bf16.mxu0 0
    %3276 = vmatpush1.bf16.msra.mxu0 %v3229
    %3277 = vmatprep.subr.bf16.mxu0 0
    %3278 = vmatpush1.bf16.msra.mxu0 %v3230
    %3279 = vmatprep.subr.bf16.mxu0 0
    %3280 = vmatpush1.bf16.msra.mxu0 %v3257
    %3281 = vmatprep.subr.bf16.mxu0 0
    %3282 = vmatpush1.bf16.msra.mxu0 0
    %3283 = vmatprep.subr.bf16.mxu0 0
    %3284 = vmatpush1.bf16.msra.mxu0 0
    %3285 = vmatprep.subr.bf16.mxu0 0
    %3286 = vmatpush1.bf16.msra.mxu0 0
    %3287 = vmatprep.subr.bf16.mxu0 0
    %3288 = vmatpush1.bf16.msra.mxu0 0
    %3289 = vmatprep.subr.bf16.mxu0 0
    %3290 = vmatpush1.bf16.msra.mxu0 0
    %3291 = vmatprep.mubr.bf16.mxu0 %v3244
    %3292 = vmatmul.mubr.bf16.gmra.mrb[0].mxu0 %v3150
    %v3293 = vpop.f32.mrb[0].mxu0
    %v3294 = vadd.f32 0.0, %v3293
    %v3295 = vpop.f32.mrb[0].mxu0
    %v3296 = vpop.f32.mrb[0].mxu0
    %v3297 = vadd.f32 0.0, %v3296
    %v3298 = vpop.f32.mrb[0].mxu0
    %3299 = vmatprep.mubr.bf16.mxu0 %v3247
    %3300 = vmatmul.mubr.bf16.gmra.mrb[0].mxu0 %v3152
    %v3301 = vpop.f32.mrb[0].mxu0
    %v3302 = vadd.f32 0.0, %v3301
    %v3303 = vpop.f32.mrb[0].mxu0
    %v3304 = vpop.f32.mrb[0].mxu0
    %v3305 = vadd.f32 0.0, %v3304
    %v3306 = vpop.f32.mrb[0].mxu0
    %3307 = vmatprep.mubr.bf16.mxu0 %v3250
    %3308 = vmatmul.mubr.bf16.gmra.mrb[0].mxu0 %v3154
    %v3309 = vpop.f32.mrb[0].mxu0
    %v3310 = vadd.f32 0.0, %v3309
    %v3311 = vpop.f32.mrb[0].mxu0
    %v3312 = vpop.f32.mrb[0].mxu0
    %v3313 = vadd.f32 0.0, %v3312
    %v3314 = vpop.f32.mrb[0].mxu0
    %3315 = vmatprep.mubr.bf16.mxu0 %v3253
    %3316 = vmatmul.mubr.bf16.gmra.mrb[0].mxu0 %v3156
    %v3317 = vpop.f32.mrb[0].mxu0
    %v3318 = vadd.f32 0.0, %v3317
    %v3319 = vpop.f32.mrb[0].mxu0
    %v3320 = vpop.f32.mrb[0].mxu0
    %v3321 = vpop.f32.mrb[0].mxu0
    %3322 = vdwg.mxu0
    %v3323 = vpack.c.bf16 %v3297, %v3294
    %v3324 = vpack.c.bf16 %v3305, %v3302
    %v3325 = vpack.c.bf16 %v3313, %v3310
    %v3326 = vpack.c.bf16 %v3318, %v3318
    %v3327 = vadd.bf16 %v3120, %v3142
    %v3328 = vadd.bf16 %v3121, %v3143
    %v3329 = vadd.bf16 %v3122, %v3144
    %v3330 = vadd.bf16 %v3123, %v3145
    %v3331 = vadd.bf16 %v3124, %v3146
    %v3332 = vadd.bf16 %v3125, %v3147
    %v3333 = vadd.bf16 %v3126, %v3148
    %v3334 = vadd.bf16 %v3127, %v3149
    %v3336 = vsel %vm3242, %v3328, 0
    %v3339 = vsel %vm3242, %v3330, 0
    %v3342 = vsel %vm3242, %v3332, 0
    %v3345 = vsel %vm3242, %v3334, 0
    %3347 = vmatprep.subr.bf16.mxu0 0
    %3348 = vmatpush1.bf16.msra.mxu0 %v3221
    %3349 = vmatprep.subr.bf16.mxu0 0
    %3350 = vmatpush1.bf16.msra.mxu0 %v3222
    %3351 = vmatprep.subr.bf16.mxu0 0
    %3352 = vmatpush1.bf16.msra.mxu0 %v3223
    %3353 = vmatprep.subr.bf16.mxu0 0
    %3354 = vmatpush1.bf16.msra.mxu0 %v3224
    %3355 = vmatprep.subr.bf16.mxu0 0
    %3356 = vmatpush1.bf16.msra.mxu0 %v3225
    %3357 = vmatprep.subr.bf16.mxu0 0
    %3358 = vmatpush1.bf16.msra.mxu0 %v3226
    %3359 = vmatprep.subr.bf16.mxu0 0
    %3360 = vmatpush1.bf16.msra.mxu0 %v3227
    %3361 = vmatprep.subr.bf16.mxu0 0
    %3362 = vmatpush1.bf16.msra.mxu0 %v3228
    %3363 = vmatprep.subr.bf16.mxu0 0
    %3364 = vmatpush1.bf16.msra.mxu0 %v3229
    %3365 = vmatprep.subr.bf16.mxu0 0
    %3366 = vmatpush1.bf16.msra.mxu0 %v3230
    %3367 = vmatprep.subr.bf16.mxu0 0
    %3368 = vmatpush1.bf16.msra.mxu0 %v3257
    %3369 = vmatprep.subr.bf16.mxu0 0
    %3370 = vmatpush1.bf16.msra.mxu0 0
    %3371 = vmatprep.subr.bf16.mxu0 0
    %3372 = vmatpush1.bf16.msra.mxu0 0
    %3373 = vmatprep.subr.bf16.mxu0 0
    %3374 = vmatpush1.bf16.msra.mxu0 0
    %3375 = vmatprep.subr.bf16.mxu0 0
    %3376 = vmatpush1.bf16.msra.mxu0 0
    %3377 = vmatprep.subr.bf16.mxu0 0
    %3378 = vmatpush1.bf16.msra.mxu0 0
    %3379 = vmatprep.mubr.bf16.mxu0 %v3336
    %3380 = vmatmul.mubr.bf16.gmra.mrb[0].mxu0 %v3327
    %v3381 = vpop.f32.mrb[0].mxu0
    %v3382 = vadd.f32 0.0, %v3381
    %v3383 = vpop.f32.mrb[0].mxu0
    %v3384 = vpop.f32.mrb[0].mxu0
    %v3385 = vadd.f32 0.0, %v3384
    %v3386 = vpop.f32.mrb[0].mxu0
    %3387 = vmatprep.mubr.bf16.mxu0 %v3339
    %3388 = vmatmul.mubr.bf16.gmra.mrb[0].mxu0 %v3329
    %v3389 = vpop.f32.mrb[0].mxu0
    %v3390 = vadd.f32 0.0, %v3389
    %v3391 = vpop.f32.mrb[0].mxu0
    %v3392 = vpop.f32.mrb[0].mxu0
    %v3393 = vadd.f32 0.0, %v3392
    %v3394 = vpop.f32.mrb[0].mxu0
    %3395 = vmatprep.mubr.bf16.mxu0 %v3342
    %3396 = vmatmul.mubr.bf16.gmra.mrb[0].mxu0 %v3331
    %v3397 = vpop.f32.mrb[0].mxu0
    %v3398 = vadd.f32 0.0, %v3397
    %v3399 = vpop.f32.mrb[0].mxu0
    %v3400 = vpop.f32.mrb[0].mxu0
    %v3401 = vadd.f32 0.0, %v3400
    %v3402 = vpop.f32.mrb[0].mxu0
    %3403 = vmatprep.mubr.bf16.mxu0 %v3345
    %3404 = vmatmul.mubr.bf16.gmra.mrb[0].mxu0 %v3333
    %v3405 = vpop.f32.mrb[0].mxu0
    %v3406 = vadd.f32 0.0, %v3405
    %v3407 = vpop.f32.mrb[0].mxu0
    %v3408 = vpop.f32.mrb[0].mxu0
    %v3409 = vpop.f32.mrb[0].mxu0
    %3410 = vdwg.mxu0
    %v3411 = vpack.c.bf16 %v3385, %v3382
    %v3412 = vpack.c.bf16 %v3393, %v3390
    %v3413 = vpack.c.bf16 %v3401, %v3398
    %v3414 = vpack.c.bf16 %v3406, %v3406
    %v3415 = vld [vmem:[%s3] sm:$0xff]
    %v3416 = vld [vmem:[%s3 + $0x8] sm:$0xff]
    %v3417 = vld [vmem:[%s3 + $0x10] sm:$0xff]
    %v3418 = vld [vmem:[%s3 + $0x18] sm:$0xf]
    %v3419 = vld [vmem:[%s3 + $0x1c] sm:$0xff]
    %v3420 = vld [vmem:[%s3 + $0x24] sm:$0xff]
    %v3421 = vld [vmem:[%s3 + $0x2c] sm:$0xff]
    %v3422 = vld [vmem:[%s3 + $0x34] sm:$0xf]
    %v3423 = vld [vmem:[%s3 + $0x38] sm:$0xff]
    %v3424 = vld [vmem:[%s3 + $0x40] sm:$0xff]
    %v3425 = vld [vmem:[%s3 + $0x48] sm:$0xff]
    %v3426 = vld [vmem:[%s3 + $0x50] sm:$0xf]
    %v3427 = vld [vmem:[%s3 + $0x54] sm:$0xff]
    %v3428 = vld [vmem:[%s3 + $0x5c] sm:$0xff]
    %v3429 = vld [vmem:[%s3 + $0x64] sm:$0xff]
    %v3430 = vld [vmem:[%s3 + $0x6c] sm:$0xf]
    %v3431 = vld [vmem:[%s3 + $0x70] sm:$0xff]
    %v3432 = vld [vmem:[%s3 + $0x78] sm:$0xff]
    %v3433 = vld [vmem:[%s3 + $0x80] sm:$0xff]
    %v3434 = vld [vmem:[%s3 + $0x88] sm:$0xf]
    %v3435 = vld [vmem:[%s3 + $0x8c] sm:$0xff]
    %v3436 = vld [vmem:[%s3 + $0x94] sm:$0xff]
    %v3437 = vld [vmem:[%s3 + $0x9c] sm:$0xff]
    %v3438 = vld [vmem:[%s3 + $0xa4] sm:$0xf]
    %v3439 = vld [vmem:[%s3 + $0xa8] sm:$0xff]
    %v3440 = vld [vmem:[%s3 + $0xb0] sm:$0xff]
    %v3441 = vld [vmem:[%s3 + $0xb8] sm:$0xff]
    %v3442 = vld [vmem:[%s3 + $0xc0] sm:$0xf]
    %v3443 = vld [vmem:[%s3 + $0xc4] sm:$0xff]
    %v3444 = vld [vmem:[%s3 + $0xcc] sm:$0xff]
    %v3445 = vld [vmem:[%s3 + $0xd4] sm:$0xff]
    %v3446 = vld [vmem:[%s3 + $0xdc] sm:$0xf]
    %v3447 = vld [vmem:[%s3 + $0xe0] sm:$0xff]
    %v3448 = vld [vmem:[%s3 + $0xe8] sm:$0xff]
    %v3449 = vld [vmem:[%s3 + $0xf0] sm:$0xff]
    %v3450 = vld [vmem:[%s3 + $0xf8] sm:$0xf]
    %v3451 = vld [vmem:[%s3 + $0xfc] sm:$0xff]
    %v3452 = vld [vmem:[%s3 + $0x104] sm:$0xff]
    %v3453 = vld [vmem:[%s3 + $0x10c] sm:$0xff]
    %v3454 = vld [vmem:[%s3 + $0x114] sm:$0xf]
    %v3455 = vld [vmem:[%s3 + $0x118] sm:$0x33]
    %v3456 = vld [vmem:[%s3 + $0x120] sm:$0x33]
    %v3457 = vld [vmem:[%s3 + $0x128] sm:$0x33]
    %v3458 = vld [vmem:[%s3 + $0x130] sm:$0x3]
    %v3503 = vunpack.c.l.b16 %v3415
    %v3504 = vunpack.c.h.b16 %v3415
    %v3505 = vunpack.c.l.b16 %v3416
    %v3506 = vunpack.c.h.b16 %v3416
    %v3507 = vunpack.c.l.b16 %v3417
    %v3508 = vunpack.c.h.b16 %v3417
    %v3509 = vunpack.c.l.b16 %v3418
    %v3510 = vunpack.c.l.b16 %v3419
    %v3511 = vunpack.c.h.b16 %v3419
    %v3512 = vunpack.c.l.b16 %v3420
    %v3513 = vunpack.c.h.b16 %v3420
    %v3514 = vunpack.c.l.b16 %v3421
    %v3515 = vunpack.c.h.b16 %v3421
    %v3516 = vunpack.c.l.b16 %v3422
    %v3517 = vunpack.c.l.b16 %v3423
    %v3518 = vunpack.c.h.b16 %v3423
    %v3519 = vunpack.c.l.b16 %v3424
    %v3520 = vunpack.c.h.b16 %v3424
    %v3521 = vunpack.c.l.b16 %v3425
    %v3522 = vunpack.c.h.b16 %v3425
    %v3523 = vunpack.c.l.b16 %v3426
    %v3524 = vunpack.c.l.b16 %v3427
    %v3525 = vunpack.c.h.b16 %v3427
    %v3526 = vunpack.c.l.b16 %v3428
    %v3527 = vunpack.c.h.b16 %v3428
    %v3528 = vunpack.c.l.b16 %v3429
    %v3529 = vunpack.c.h.b16 %v3429
    %v3530 = vunpack.c.l.b16 %v3430
    %v3531 = vunpack.c.l.b16 %v3431
    %v3532 = vunpack.c.h.b16 %v3431
    %v3533 = vunpack.c.l.b16 %v3432
    %v3534 = vunpack.c.h.b16 %v3432
    %v3535 = vunpack.c.l.b16 %v3433
    %v3536 = vunpack.c.h.b16 %v3433
    %v3537 = vunpack.c.l.b16 %v3434
    %v3538 = vunpack.c.l.b16 %v3435
    %v3539 = vunpack.c.h.b16 %v3435
    %v3540 = vunpack.c.l.b16 %v3436
    %v3541 = vunpack.c.h.b16 %v3436
    %v3542 = vunpack.c.l.b16 %v3437
    %v3543 = vunpack.c.h.b16 %v3437
    %v3544 = vunpack.c.l.b16 %v3438
    %v3545 = vunpack.c.l.b16 %v3439
    %v3546 = vunpack.c.h.b16 %v3439
    %v3547 = vunpack.c.l.b16 %v3440
    %v3548 = vunpack.c.h.b16 %v3440
    %v3549 = vunpack.c.l.b16 %v3441
    %v3550 = vunpack.c.h.b16 %v3441
    %v3551 = vunpack.c.l.b16 %v3442
    %v3552 = vunpack.c.l.b16 %v3443
    %v3553 = vunpack.c.h.b16 %v3443
    %v3554 = vunpack.c.l.b16 %v3444
    %v3555 = vunpack.c.h.b16 %v3444
    %v3556 = vunpack.c.l.b16 %v3445
    %v3557 = vunpack.c.h.b16 %v3445
    %v3558 = vunpack.c.l.b16 %v3446
    %v3559 = vunpack.c.l.b16 %v3447
    %v3560 = vunpack.c.h.b16 %v3447
    %v3561 = vunpack.c.l.b16 %v3448
    %v3562 = vunpack.c.h.b16 %v3448
    %v3563 = vunpack.c.l.b16 %v3449
    %v3564 = vunpack.c.h.b16 %v3449
    %v3565 = vunpack.c.l.b16 %v3450
    %v3566 = vunpack.c.l.b16 %v3451
    %v3567 = vunpack.c.h.b16 %v3451
    %v3568 = vunpack.c.l.b16 %v3452
    %v3569 = vunpack.c.h.b16 %v3452
    %v3570 = vunpack.c.l.b16 %v3453
    %v3571 = vunpack.c.h.b16 %v3453
    %v3572 = vunpack.c.l.b16 %v3454
    %v3573 = vunpack.c.l.b16 %v3455
    %v3574 = vunpack.c.h.b16 %v3455
    %v3575 = vunpack.c.l.b16 %v3456
    %v3576 = vunpack.c.h.b16 %v3456
    %v3577 = vunpack.c.l.b16 %v3457
    %v3578 = vunpack.c.h.b16 %v3457
    %v3579 = vunpack.c.l.b16 %v3458
    %v3580 = vpack.c.b16 %v3510, %v3503
    %v3581 = vpack.c.b16 %v3511, %v3504
    %v3582 = vpack.c.b16 %v3512, %v3505
    %v3583 = vpack.c.b16 %v3513, %v3506
    %v3584 = vpack.c.b16 %v3514, %v3507
    %v3585 = vpack.c.b16 %v3515, %v3508
    %v3586 = vpack.c.b16 %v3516, %v3509
    %v3587 = vpack.c.b16 %v3524, %v3517
    %v3588 = vpack.c.b16 %v3525, %v3518
    %v3589 = vpack.c.b16 %v3526, %v3519
    %v3590 = vpack.c.b16 %v3527, %v3520
    %v3591 = vpack.c.b16 %v3528, %v3521
    %v3592 = vpack.c.b16 %v3529, %v3522
    %v3593 = vpack.c.b16 %v3530, %v3523
    %v3594 = vpack.c.b16 %v3538, %v3531
    %v3595 = vpack.c.b16 %v3539, %v3532
    %v3596 = vpack.c.b16 %v3540, %v3533
    %v3597 = vpack.c.b16 %v3541, %v3534
    %v3598 = vpack.c.b16 %v3542, %v3535
    %v3599 = vpack.c.b16 %v3543, %v3536
    %v3600 = vpack.c.b16 %v3544, %v3537
    %v3601 = vpack.c.b16 %v3552, %v3545
    %v3602 = vpack.c.b16 %v3553, %v3546
    %v3603 = vpack.c.b16 %v3554, %v3547
    %v3604 = vpack.c.b16 %v3555, %v3548
    %v3605 = vpack.c.b16 %v3556, %v3549
    %v3606 = vpack.c.b16 %v3557, %v3550
    %v3607 = vpack.c.b16 %v3558, %v3551
    %v3608 = vpack.c.b16 %v3566, %v3559
    %v3609 = vpack.c.b16 %v3567, %v3560
    %v3610 = vpack.c.b16 %v3568, %v3561
    %v3611 = vpack.c.b16 %v3569, %v3562
    %v3612 = vpack.c.b16 %v3570, %v3563
    %v3613 = vpack.c.b16 %v3571, %v3564
    %v3614 = vpack.c.b16 %v3572, %v3565
    %v3615 = vpack.c.b16 %v3573, %v3573
    %v3616 = vpack.c.b16 %v3574, %v3574
    %v3617 = vpack.c.b16 %v3575, %v3575
    %v3618 = vpack.c.b16 %v3576, %v3576
    %v3619 = vpack.c.b16 %v3577, %v3577
    %v3620 = vpack.c.b16 %v3578, %v3578
    %v3621 = vpack.c.b16 %v3579, %v3579
    %vm3657 = vcmask 687104
    %v3659 = vsel %vm3657, %v3323, 0
    %v3662 = vsel %vm3657, %v3324, 0
    %v3665 = vsel %vm3657, %v3325, 0
    %v3668 = vsel %vm3657, %v3326, 0
    %vm3670 = vcmask 1041408
    %v3672 = vsel %vm3670, %v3615, 0
    %v3675 = vsel %vm3670, %v3616, 0
    %v3678 = vsel %vm3670, %v3617, 0
    %v3681 = vsel %vm3670, %v3618, 0
    %v3684 = vsel %vm3670, %v3619, 0
    %v3687 = vsel %vm3670, %v3620, 0
    %v3690 = vsel %vm3670, %v3621, 0
    %3692 = vmatprep.subr.bf16.mxu0 %v3581
    %3693 = vmatpush1.bf16.msra.mxu0 %v3580
    %3694 = vmatprep.subr.bf16.mxu0 %v3588
    %3695 = vmatpush1.bf16.msra.mxu0 %v3587
    %3696 = vmatprep.subr.bf16.mxu0 %v3595
    %3697 = vmatpush1.bf16.msra.mxu0 %v3594
    %3698 = vmatprep.subr.bf16.mxu0 %v3602
    %3699 = vmatpush1.bf16.msra.mxu0 %v3601
    %3700 = vmatprep.subr.bf16.mxu0 %v3609
    %3701 = vmatpush1.bf16.msra.mxu0 %v3608
    %3702 = vmatprep.subr.bf16.mxu0 %v3675
    %3703 = vmatpush1.bf16.msra.mxu0 %v3672
    %3704 = vmatprep.subr.bf16.mxu0 0
    %3705 = vmatpush1.bf16.msra.mxu0 0
    %3706 = vmatprep.subr.bf16.mxu0 0
    %3707 = vmatpush1.bf16.msra.mxu0 0
    %3708 = vmatprep.subr.bf16.mxu0 0
    %3709 = vmatpush1.bf16.msra.mxu0 0
    %3710 = vmatprep.subr.bf16.mxu0 0
    %3711 = vmatpush1.bf16.msra.mxu0 0
    %3712 = vmatprep.subr.bf16.mxu0 0
    %3713 = vmatpush1.bf16.msra.mxu0 0
    %3714 = vmatprep.subr.bf16.mxu0 0
    %3715 = vmatpush1.bf16.msra.mxu0 0
    %3716 = vmatprep.subr.bf16.mxu0 0
    %3717 = vmatpush1.bf16.msra.mxu0 0
    %3718 = vmatprep.subr.bf16.mxu0 0
    %3719 = vmatpush1.bf16.msra.mxu0 0
    %3720 = vmatprep.subr.bf16.mxu0 0
    %3721 = vmatpush1.bf16.msra.mxu0 0
    %3722 = vmatprep.subr.bf16.mxu0 0
    %3723 = vmatpush1.bf16.msra.mxu0 0
    %3724 = vmatprep.mubr.bf16.mxu0 0
    %3725 = vmatmul.mubr.bf16.gmra.mrb[0].mxu0 %v3659
    %v3726 = vpop.f32.mrb[0].mxu0
    %v3727 = vadd.f32 0.0, %v3726
    %v3728 = vpop.f32.mrb[0].mxu0
    %v3729 = vadd.f32 0.0, %v3728
    %v3730 = vpop.f32.mrb[0].mxu0
    %v3731 = vadd.f32 0.0, %v3730
    %v3732 = vpop.f32.mrb[0].mxu0
    %v3733 = vadd.f32 0.0, %v3732
    %3734 = vmatprep.mubr.bf16.mxu0 0
    %3735 = vmatmul.mubr.bf16.gmra.mrb[0].mxu0 %v3662
    %v3736 = vpop.f32.mrb[0].mxu0
    %v3737 = vadd.f32 0.0, %v3736
    %v3738 = vpop.f32.mrb[0].mxu0
    %v3739 = vadd.f32 0.0, %v3738
    %v3740 = vpop.f32.mrb[0].mxu0
    %v3741 = vadd.f32 0.0, %v3740
    %v3742 = vpop.f32.mrb[0].mxu0
    %v3743 = vadd.f32 0.0, %v3742
    %3744 = vmatprep.mubr.bf16.mxu0 0
    %3745 = vmatmul.mubr.bf16.gmra.mrb[0].mxu0 %v3665
    %v3746 = vpop.f32.mrb[0].mxu0
    %v3747 = vadd.f32 0.0, %v3746
    %v3748 = vpop.f32.mrb[0].mxu0
    %v3749 = vadd.f32 0.0, %v3748
    %v3750 = vpop.f32.mrb[0].mxu0
    %v3751 = vpop.f32.mrb[0].mxu0
    %v3752 = vadd.f32 0.0, %v3751
    %3753 = vmatprep.mubr.bf16.mxu0 0
    %3754 = vmatmul.mubr.bf16.gmra.mrb[0].mxu0 %v3668
    %v3755 = vpop.f32.mrb[0].mxu0
    %v3756 = vpop.f32.mrb[0].mxu0
    %v3757 = vpop.f32.mrb[0].mxu0
    %v3758 = vpop.f32.mrb[0].mxu0
    %3759 = vdwg.mxu0
    %3760 = vmatprep.subr.bf16.mxu0 %v3583
    %3761 = vmatpush1.bf16.msra.mxu0 %v3582
    %3762 = vmatprep.subr.bf16.mxu0 %v3590
    %3763 = vmatpush1.bf16.msra.mxu0 %v3589
    %3764 = vmatprep.subr.bf16.mxu0 %v3597
    %3765 = vmatpush1.bf16.msra.mxu0 %v3596
    %3766 = vmatprep.subr.bf16.mxu0 %v3604
    %3767 = vmatpush1.bf16.msra.mxu0 %v3603
    %3768 = vmatprep.subr.bf16.mxu0 %v3611
    %3769 = vmatpush1.bf16.msra.mxu0 %v3610
    %3770 = vmatprep.subr.bf16.mxu0 %v3681
    %3771 = vmatpush1.bf16.msra.mxu0 %v3678
    %3772 = vmatprep.subr.bf16.mxu0 0
    %3773 = vmatpush1.bf16.msra.mxu0 0
    %3774 = vmatprep.subr.bf16.mxu0 0
    %3775 = vmatpush1.bf16.msra.mxu0 0
    %3776 = vmatprep.subr.bf16.mxu0 0
    %3777 = vmatpush1.bf16.msra.mxu0 0
    %3778 = vmatprep.subr.bf16.mxu0 0
    %3779 = vmatpush1.bf16.msra.mxu0 0
    %3780 = vmatprep.subr.bf16.mxu0 0
    %3781 = vmatpush1.bf16.msra.mxu0 0
    %3782 = vmatprep.subr.bf16.mxu0 0
    %3783 = vmatpush1.bf16.msra.mxu0 0
    %3784 = vmatprep.subr.bf16.mxu0 0
    %3785 = vmatpush1.bf16.msra.mxu0 0
    %3786 = vmatprep.subr.bf16.mxu0 0
    %3787 = vmatpush1.bf16.msra.mxu0 0
    %3788 = vmatprep.subr.bf16.mxu0 0
    %3789 = vmatpush1.bf16.msra.mxu0 0
    %3790 = vmatprep.subr.bf16.mxu0 0
    %3791 = vmatpush1.bf16.msra.mxu0 0
    %3792 = vmatprep.mubr.bf16.mxu0 0
    %3793 = vmatmul.mubr.bf16.gmra.mrb[0].mxu0 %v3659
    %v3794 = vpop.f32.mrb[0].mxu0
    %v3795 = vpop.f32.mrb[0].mxu0
    %v3796 = vpop.f32.mrb[0].mxu0
    %v3797 = vadd.f32 0.0, %v3796
    %v3798 = vpop.f32.mrb[0].mxu0
    %v3799 = vadd.f32 0.0, %v3798
    %3800 = vmatprep.mubr.bf16.mxu0 0
    %3801 = vmatmul.mubr.bf16.gmra.mrb[0].mxu0 %v3662
    %v3802 = vpop.f32.mrb[0].mxu0
    %v3803 = vadd.f32 0.0, %v3802
    %v3804 = vpop.f32.mrb[0].mxu0
    %v3805 = vadd.f32 0.0, %v3804
    %v3806 = vpop.f32.mrb[0].mxu0
    %v3807 = vadd.f32 0.0, %v3806
    %v3808 = vpop.f32.mrb[0].mxu0
    %v3809 = vadd.f32 0.0, %v3808
    %3810 = vmatprep.mubr.bf16.mxu0 0
    %3811 = vmatmul.mubr.bf16.gmra.mrb[0].mxu0 %v3665
    %v3812 = vpop.f32.mrb[0].mxu0
    %v3813 = vadd.f32 0.0, %v3812
    %v3814 = vpop.f32.mrb[0].mxu0
    %v3815 = vadd.f32 0.0, %v3814
    %v3816 = vpop.f32.mrb[0].mxu0
    %v3817 = vadd.f32 0.0, %v3816
    %v3818 = vpop.f32.mrb[0].mxu0
    %v3819 = vadd.f32 0.0, %v3818
    %3820 = vmatprep.mubr.bf16.mxu0 0
    %3821 = vmatmul.mubr.bf16.gmra.mrb[0].mxu0 %v3668
    %v3822 = vpop.f32.mrb[0].mxu0
    %v3823 = vpop.f32.mrb[0].mxu0
    %v3824 = vadd.f32 0.0, %v3823
    %v3825 = vpop.f32.mrb[0].mxu0
    %v3826 = vpop.f32.mrb[0].mxu0
    %3827 = vdwg.mxu0
    %3828 = vmatprep.subr.bf16.mxu0 %v3585
    %3829 = vmatpush1.bf16.msra.mxu0 %v3584
    %3830 = vmatprep.subr.bf16.mxu0 %v3592
    %3831 = vmatpush1.bf16.msra.mxu0 %v3591
    %3832 = vmatprep.subr.bf16.mxu0 %v3599
    %3833 = vmatpush1.bf16.msra.mxu0 %v3598
    %3834 = vmatprep.subr.bf16.mxu0 %v3606
    %3835 = vmatpush1.bf16.msra.mxu0 %v3605
    %3836 = vmatprep.subr.bf16.mxu0 %v3613
    %3837 = vmatpush1.bf16.msra.mxu0 %v3612
    %3838 = vmatprep.subr.bf16.mxu0 %v3687
    %3839 = vmatpush1.bf16.msra.mxu0 %v3684
    %3840 = vmatprep.subr.bf16.mxu0 0
    %3841 = vmatpush1.bf16.msra.mxu0 0
    %3842 = vmatprep.subr.bf16.mxu0 0
    %3843 = vmatpush1.bf16.msra.mxu0 0
    %3844 = vmatprep.subr.bf16.mxu0 0
    %3845 = vmatpush1.bf16.msra.mxu0 0
    %3846 = vmatprep.subr.bf16.mxu0 0
    %3847 = vmatpush1.bf16.msra.mxu0 0
    %3848 = vmatprep.subr.bf16.mxu0 0
    %3849 = vmatpush1.bf16.msra.mxu0 0
    %3850 = vmatprep.subr.bf16.mxu0 0
    %3851 = vmatpush1.bf16.msra.mxu0 0
    %3852 = vmatprep.subr.bf16.mxu0 0
    %3853 = vmatpush1.bf16.msra.mxu0 0
    %3854 = vmatprep.subr.bf16.mxu0 0
    %3855 = vmatpush1.bf16.msra.mxu0 0
    %3856 = vmatprep.subr.bf16.mxu0 0
    %3857 = vmatpush1.bf16.msra.mxu0 0
    %3858 = vmatprep.subr.bf16.mxu0 0
    %3859 = vmatpush1.bf16.msra.mxu0 0
    %3860 = vmatprep.mubr.bf16.mxu0 0
    %3861 = vmatmul.mubr.bf16.gmra.mrb[0].mxu0 %v3659
    %v3862 = vpop.f32.mrb[0].mxu0
    %v3863 = vpop.f32.mrb[0].mxu0
    %v3864 = vpop.f32.mrb[0].mxu0
    %v3865 = vpop.f32.mrb[0].mxu0
    %3866 = vmatprep.mubr.bf16.mxu0 0
    %3867 = vmatmul.mubr.bf16.gmra.mrb[0].mxu0 %v3662
    %v3868 = vpop.f32.mrb[0].mxu0
    %v3869 = vadd.f32 0.0, %v3868
    %v3870 = vpop.f32.mrb[0].mxu0
    %v3871 = vadd.f32 0.0, %v3870
    %v3872 = vpop.f32.mrb[0].mxu0
    %v3873 = vadd.f32 0.0, %v3872
    %v3874 = vpop.f32.mrb[0].mxu0
    %v3875 = vadd.f32 0.0, %v3874
    %3876 = vmatprep.mubr.bf16.mxu0 0
    %3877 = vmatmul.mubr.bf16.gmra.mrb[0].mxu0 %v3665
    %v3878 = vpop.f32.mrb[0].mxu0
    %v3879 = vadd.f32 0.0, %v3878
    %v3880 = vpop.f32.mrb[0].mxu0
    %v3881 = vadd.f32 0.0, %v3880
    %v3882 = vpop.f32.mrb[0].mxu0
    %v3883 = vadd.f32 0.0, %v3882
    %v3884 = vpop.f32.mrb[0].mxu0
    %v3885 = vadd.f32 0.0, %v3884
    %3886 = vmatprep.mubr.bf16.mxu0 0
    %3887 = vmatmul.mubr.bf16.gmra.mrb[0].mxu0 %v3668
    %v3888 = vpop.f32.mrb[0].mxu0
    %v3889 = vadd.f32 0.0, %v3888
    %v3890 = vpop.f32.mrb[0].mxu0
    %v3891 = vadd.f32 0.0, %v3890
    %v3892 = vpop.f32.mrb[0].mxu0
    %v3893 = vpop.f32.mrb[0].mxu0
    %3894 = vdwg.mxu0
    %3895 = vmatprep.subr.bf16.mxu0 0
    %3896 = vmatpush1.bf16.msra.mxu0 %v3586
    %3897 = vmatprep.subr.bf16.mxu0 0
    %3898 = vmatpush1.bf16.msra.mxu0 %v3593
    %3899 = vmatprep.subr.bf16.mxu0 0
    %3900 = vmatpush1.bf16.msra.mxu0 %v3600
    %3901 = vmatprep.subr.bf16.mxu0 0
    %3902 = vmatpush1.bf16.msra.mxu0 %v3607
    %3903 = vmatprep.subr.bf16.mxu0 0
    %3904 = vmatpush1.bf16.msra.mxu0 %v3614
    %3905 = vmatprep.subr.bf16.mxu0 0
    %3906 = vmatpush1.bf16.msra.mxu0 %v3690
    %3907 = vmatprep.subr.bf16.mxu0 0
    %3908 = vmatpush1.bf16.msra.mxu0 0
    %3909 = vmatprep.subr.bf16.mxu0 0
    %3910 = vmatpush1.bf16.msra.mxu0 0
    %3911 = vmatprep.subr.bf16.mxu0 0
    %3912 = vmatpush1.bf16.msra.mxu0 0
    %3913 = vmatprep.subr.bf16.mxu0 0
    %3914 = vmatpush1.bf16.msra.mxu0 0
    %3915 = vmatprep.subr.bf16.mxu0 0
    %3916 = vmatpush1.bf16.msra.mxu0 0
    %3917 = vmatprep.subr.bf16.mxu0 0
    %3918 = vmatpush1.bf16.msra.mxu0 0
    %3919 = vmatprep.subr.bf16.mxu0 0
    %3920 = vmatpush1.bf16.msra.mxu0 0
    %3921 = vmatprep.subr.bf16.mxu0 0
    %3922 = vmatpush1.bf16.msra.mxu0 0
    %3923 = vmatprep.subr.bf16.mxu0 0
    %3924 = vmatpush1.bf16.msra.mxu0 0
    %3925 = vmatprep.subr.bf16.mxu0 0
    %3926 = vmatpush1.bf16.msra.mxu0 0
    %3927 = vmatprep.mubr.bf16.mxu0 0
    %3928 = vmatmul.mubr.bf16.gmra.mrb[0].mxu0 %v3659
    %v3929 = vpop.f32.mrb[0].mxu0
    %v3930 = vpop.f32.mrb[0].mxu0
    %v3931 = vpop.f32.mrb[0].mxu0
    %v3932 = vpop.f32.mrb[0].mxu0
    %3933 = vmatprep.mubr.bf16.mxu0 0
    %3934 = vmatmul.mubr.bf16.gmra.mrb[0].mxu0 %v3662
    %v3935 = vpop.f32.mrb[0].mxu0
    %v3936 = vadd.f32 0.0, %v3935
    %v3937 = vpop.f32.mrb[0].mxu0
    %v3938 = vpop.f32.mrb[0].mxu0
    %v3939 = vadd.f32 0.0, %v3938
    %v3940 = vpop.f32.mrb[0].mxu0
    %3941 = vmatprep.mubr.bf16.mxu0 0
    %3942 = vmatmul.mubr.bf16.gmra.mrb[0].mxu0 %v3665
    %v3943 = vpop.f32.mrb[0].mxu0
    %v3944 = vadd.f32 0.0, %v3943
    %v3945 = vpop.f32.mrb[0].mxu0
    %v3946 = vpop.f32.mrb[0].mxu0
    %v3947 = vadd.f32 0.0, %v3946
    %v3948 = vpop.f32.mrb[0].mxu0
    %3949 = vmatprep.mubr.bf16.mxu0 0
    %3950 = vmatmul.mubr.bf16.gmra.mrb[0].mxu0 %v3668
    %v3951 = vpop.f32.mrb[0].mxu0
    %v3952 = vadd.f32 0.0, %v3951
    %v3953 = vpop.f32.mrb[0].mxu0
    %v3954 = vpop.f32.mrb[0].mxu0
    %v3955 = vpop.f32.mrb[0].mxu0
    %3956 = vdwg.mxu0
    %v3958 = vsel %vm3657, %v3411, 0
    %v3961 = vsel %vm3657, %v3412, 0
    %v3964 = vsel %vm3657, %v3413, 0
    %v3967 = vsel %vm3657, %v3414, 0
    %3969 = vmatprep.subr.bf16.mxu0 %v3581
    %3970 = vmatpush1.bf16.msra.mxu0 %v3580
    %3971 = vmatprep.subr.bf16.mxu0 %v3588
    %3972 = vmatpush1.bf16.msra.mxu0 %v3587
    %3973 = vmatprep.subr.bf16.mxu0 %v3595
    %3974 = vmatpush1.bf16.msra.mxu0 %v3594
    %3975 = vmatprep.subr.bf16.mxu0 %v3602
    %3976 = vmatpush1.bf16.msra.mxu0 %v3601
    %3977 = vmatprep.subr.bf16.mxu0 %v3609
    %3978 = vmatpush1.bf16.msra.mxu0 %v3608
    %3979 = vmatprep.subr.bf16.mxu0 %v3675
    %3980 = vmatpush1.bf16.msra.mxu0 %v3672
    %3981 = vmatprep.subr.bf16.mxu0 0
    %3982 = vmatpush1.bf16.msra.mxu0 0
    %3983 = vmatprep.subr.bf16.mxu0 0
    %3984 = vmatpush1.bf16.msra.mxu0 0
    %3985 = vmatprep.subr.bf16.mxu0 0
    %3986 = vmatpush1.bf16.msra.mxu0 0
    %3987 = vmatprep.subr.bf16.mxu0 0
    %3988 = vmatpush1.bf16.msra.mxu0 0
    %3989 = vmatprep.subr.bf16.mxu0 0
    %3990 = vmatpush1.bf16.msra.mxu0 0
    %3991 = vmatprep.subr.bf16.mxu0 0
    %3992 = vmatpush1.bf16.msra.mxu0 0
    %3993 = vmatprep.subr.bf16.mxu0 0
    %3994 = vmatpush1.bf16.msra.mxu0 0
    %3995 = vmatprep.subr.bf16.mxu0 0
    %3996 = vmatpush1.bf16.msra.mxu0 0
    %3997 = vmatprep.subr.bf16.mxu0 0
    %3998 = vmatpush1.bf16.msra.mxu0 0
    %3999 = vmatprep.subr.bf16.mxu0 0
    %4000 = vmatpush1.bf16.msra.mxu0 0
    %4001 = vmatprep.mubr.bf16.mxu0 0
    %4002 = vmatmul.mubr.bf16.gmra.mrb[0].mxu0 %v3958
    %v4003 = vpop.f32.mrb[0].mxu0
    %v4004 = vadd.f32 0.0, %v4003
    %v4005 = vpop.f32.mrb[0].mxu0
    %v4006 = vadd.f32 0.0, %v4005
    %v4007 = vpop.f32.mrb[0].mxu0
    %v4008 = vadd.f32 0.0, %v4007
    %v4009 = vpop.f32.mrb[0].mxu0
    %v4010 = vadd.f32 0.0, %v4009
    %4011 = vmatprep.mubr.bf16.mxu0 0
    %4012 = vmatmul.mubr.bf16.gmra.mrb[0].mxu0 %v3961
    %v4013 = vpop.f32.mrb[0].mxu0
    %v4014 = vadd.f32 0.0, %v4013
    %v4015 = vpop.f32.mrb[0].mxu0
    %v4016 = vadd.f32 0.0, %v4015
    %v4017 = vpop.f32.mrb[0].mxu0
    %v4018 = vadd.f32 0.0, %v4017
    %v4019 = vpop.f32.mrb[0].mxu0
    %v4020 = vadd.f32 0.0, %v4019
    %4021 = vmatprep.mubr.bf16.mxu0 0
    %4022 = vmatmul.mubr.bf16.gmra.mrb[0].mxu0 %v3964
    %v4023 = vpop.f32.mrb[0].mxu0
    %v4024 = vadd.f32 0.0, %v4023
    %v4025 = vpop.f32.mrb[0].mxu0
    %v4026 = vadd.f32 0.0, %v4025
    %v4027 = vpop.f32.mrb[0].mxu0
    %v4028 = vpop.f32.mrb[0].mxu0
    %4029 = vmatprep.mubr.bf16.mxu0 0
    %4030 = vmatmul.mubr.bf16.gmra.mrb[0].mxu0 %v3967
    %v4031 = vpop.f32.mrb[0].mxu0
    %v4032 = vpop.f32.mrb[0].mxu0
    %v4033 = vpop.f32.mrb[0].mxu0
    %v4034 = vpop.f32.mrb[0].mxu0
    %4035 = vdwg.mxu0
    %4036 = vmatprep.subr.bf16.mxu0 %v3583
    %4037 = vmatpush1.bf16.msra.mxu0 %v3582
    %4038 = vmatprep.subr.bf16.mxu0 %v3590
    %4039 = vmatpush1.bf16.msra.mxu0 %v3589
    %4040 = vmatprep.subr.bf16.mxu0 %v3597
    %4041 = vmatpush1.bf16.msra.mxu0 %v3596
    %4042 = vmatprep.subr.bf16.mxu0 %v3604
    %4043 = vmatpush1.bf16.msra.mxu0 %v3603
    %4044 = vmatprep.subr.bf16.mxu0 %v3611
    %4045 = vmatpush1.bf16.msra.mxu0 %v3610
    %4046 = vmatprep.subr.bf16.mxu0 %v3681
    %4047 = vmatpush1.bf16.msra.mxu0 %v3678
    %4048 = vmatprep.subr.bf16.mxu0 0
    %4049 = vmatpush1.bf16.msra.mxu0 0
    %4050 = vmatprep.subr.bf16.mxu0 0
    %4051 = vmatpush1.bf16.msra.mxu0 0
    %4052 = vmatprep.subr.bf16.mxu0 0
    %4053 = vmatpush1.bf16.msra.mxu0 0
    %4054 = vmatprep.subr.bf16.mxu0 0
    %4055 = vmatpush1.bf16.msra.mxu0 0
    %4056 = vmatprep.subr.bf16.mxu0 0
    %4057 = vmatpush1.bf16.msra.mxu0 0
    %4058 = vmatprep.subr.bf16.mxu0 0
    %4059 = vmatpush1.bf16.msra.mxu0 0
    %4060 = vmatprep.subr.bf16.mxu0 0
    %4061 = vmatpush1.bf16.msra.mxu0 0
    %4062 = vmatprep.subr.bf16.mxu0 0
    %4063 = vmatpush1.bf16.msra.mxu0 0
    %4064 = vmatprep.subr.bf16.mxu0 0
    %4065 = vmatpush1.bf16.msra.mxu0 0
    %4066 = vmatprep.subr.bf16.mxu0 0
    %4067 = vmatpush1.bf16.msra.mxu0 0
    %4068 = vmatprep.mubr.bf16.mxu0 0
    %4069 = vmatmul.mubr.bf16.gmra.mrb[0].mxu0 %v3958
    %v4070 = vpop.f32.mrb[0].mxu0
    %v4071 = vadd.f32 0.0, %v4070
    %v4072 = vpop.f32.mrb[0].mxu0
    %v4073 = vpop.f32.mrb[0].mxu0
    %v4074 = vadd.f32 0.0, %v4073
    %v4075 = vpop.f32.mrb[0].mxu0
    %v4076 = vadd.f32 0.0, %v4075
    %4077 = vmatprep.mubr.bf16.mxu0 0
    %4078 = vmatmul.mubr.bf16.gmra.mrb[0].mxu0 %v3961
    %v4079 = vpop.f32.mrb[0].mxu0
    %v4080 = vadd.f32 0.0, %v4079
    %v4081 = vpop.f32.mrb[0].mxu0
    %v4082 = vadd.f32 0.0, %v4081
    %v4083 = vpop.f32.mrb[0].mxu0
    %v4084 = vadd.f32 0.0, %v4083
    %v4085 = vpop.f32.mrb[0].mxu0
    %v4086 = vadd.f32 0.0, %v4085
    %4087 = vmatprep.mubr.bf16.mxu0 0
    %4088 = vmatmul.mubr.bf16.gmra.mrb[0].mxu0 %v3964
    %v4089 = vpop.f32.mrb[0].mxu0
    %v4090 = vadd.f32 0.0, %v4089
    %v4091 = vpop.f32.mrb[0].mxu0
    %v4092 = vadd.f32 0.0, %v4091
    %v4093 = vpop.f32.mrb[0].mxu0
    %v4094 = vadd.f32 0.0, %v4093
    %v4095 = vpop.f32.mrb[0].mxu0
    %v4096 = vadd.f32 0.0, %v4095
    %4097 = vmatprep.mubr.bf16.mxu0 0
    %4098 = vmatmul.mubr.bf16.gmra.mrb[0].mxu0 %v3967
    %v4099 = vpop.f32.mrb[0].mxu0
    %v4100 = vpop.f32.mrb[0].mxu0
    %v4101 = vpop.f32.mrb[0].mxu0
    %v4102 = vpop.f32.mrb[0].mxu0
    %4103 = vdwg.mxu0
    %4104 = vmatprep.subr.bf16.mxu0 %v3585
    %4105 = vmatpush1.bf16.msra.mxu0 %v3584
    %4106 = vmatprep.subr.bf16.mxu0 %v3592
    %4107 = vmatpush1.bf16.msra.mxu0 %v3591
    %4108 = vmatprep.subr.bf16.mxu0 %v3599
    %4109 = vmatpush1.bf16.msra.mxu0 %v3598
    %4110 = vmatprep.subr.bf16.mxu0 %v3606
    %4111 = vmatpush1.bf16.msra.mxu0 %v3605
    %4112 = vmatprep.subr.bf16.mxu0 %v3613
    %4113 = vmatpush1.bf16.msra.mxu0 %v3612
    %4114 = vmatprep.subr.bf16.mxu0 %v3687
    %4115 = vmatpush1.bf16.msra.mxu0 %v3684
    %4116 = vmatprep.subr.bf16.mxu0 0
    %4117 = vmatpush1.bf16.msra.mxu0 0
    %4118 = vmatprep.subr.bf16.mxu0 0
    %4119 = vmatpush1.bf16.msra.mxu0 0
    %4120 = vmatprep.subr.bf16.mxu0 0
    %4121 = vmatpush1.bf16.msra.mxu0 0
    %4122 = vmatprep.subr.bf16.mxu0 0
    %4123 = vmatpush1.bf16.msra.mxu0 0
    %4124 = vmatprep.subr.bf16.mxu0 0
    %4125 = vmatpush1.bf16.msra.mxu0 0
    %4126 = vmatprep.subr.bf16.mxu0 0
    %4127 = vmatpush1.bf16.msra.mxu0 0
    %4128 = vmatprep.subr.bf16.mxu0 0
    %4129 = vmatpush1.bf16.msra.mxu0 0
    %4130 = vmatprep.subr.bf16.mxu0 0
    %4131 = vmatpush1.bf16.msra.mxu0 0
    %4132 = vmatprep.subr.bf16.mxu0 0
    %4133 = vmatpush1.bf16.msra.mxu0 0
    %4134 = vmatprep.subr.bf16.mxu0 0
    %4135 = vmatpush1.bf16.msra.mxu0 0
    %4136 = vmatprep.mubr.bf16.mxu0 0
    %4137 = vmatmul.mubr.bf16.gmra.mrb[0].mxu0 %v3958
    %v4138 = vpop.f32.mrb[0].mxu0
    %v4139 = vpop.f32.mrb[0].mxu0
    %v4140 = vpop.f32.mrb[0].mxu0
    %v4141 = vadd.f32 0.0, %v4140
    %v4142 = vpop.f32.mrb[0].mxu0
    %4143 = vmatprep.mubr.bf16.mxu0 0
    %4144 = vmatmul.mubr.bf16.gmra.mrb[0].mxu0 %v3961
    %v4145 = vpop.f32.mrb[0].mxu0
    %v4146 = vadd.f32 0.0, %v4145
    %v4147 = vpop.f32.mrb[0].mxu0
    %v4148 = vadd.f32 0.0, %v4147
    %v4149 = vpop.f32.mrb[0].mxu0
    %v4150 = vadd.f32 0.0, %v4149
    %v4151 = vpop.f32.mrb[0].mxu0
    %v4152 = vadd.f32 0.0, %v4151
    %4153 = vmatprep.mubr.bf16.mxu0 0
    %4154 = vmatmul.mubr.bf16.gmra.mrb[0].mxu0 %v3964
    %v4155 = vpop.f32.mrb[0].mxu0
    %v4156 = vadd.f32 0.0, %v4155
    %v4157 = vpop.f32.mrb[0].mxu0
    %v4158 = vadd.f32 0.0, %v4157
    %v4159 = vpop.f32.mrb[0].mxu0
    %v4160 = vadd.f32 0.0, %v4159
    %v4161 = vpop.f32.mrb[0].mxu0
    %v4162 = vadd.f32 0.0, %v4161
    %4163 = vmatprep.mubr.bf16.mxu0 0
    %4164 = vmatmul.mubr.bf16.gmra.mrb[0].mxu0 %v3967
    %v4165 = vpop.f32.mrb[0].mxu0
    %v4166 = vpop.f32.mrb[0].mxu0
    %v4167 = vadd.f32 0.0, %v4166
    %v4168 = vpop.f32.mrb[0].mxu0
    %v4169 = vpop.f32.mrb[0].mxu0
    %4170 = vdwg.mxu0
    %4171 = vmatprep.subr.bf16.mxu0 0
    %4172 = vmatpush1.bf16.msra.mxu0 %v3586
    %4173 = vmatprep.subr.bf16.mxu0 0
    %4174 = vmatpush1.bf16.msra.mxu0 %v3593
    %4175 = vmatprep.subr.bf16.mxu0 0
    %4176 = vmatpush1.bf16.msra.mxu0 %v3600
    %4177 = vmatprep.subr.bf16.mxu0 0
    %4178 = vmatpush1.bf16.msra.mxu0 %v3607
    %4179 = vmatprep.subr.bf16.mxu0 0
    %4180 = vmatpush1.bf16.msra.mxu0 %v3614
    %4181 = vmatprep.subr.bf16.mxu0 0
    %4182 = vmatpush1.bf16.msra.mxu0 %v3690
    %4183 = vmatprep.subr.bf16.mxu0 0
    %4184 = vmatpush1.bf16.msra.mxu0 0
    %4185 = vmatprep.subr.bf16.mxu0 0
    %4186 = vmatpush1.bf16.msra.mxu0 0
    %4187 = vmatprep.subr.bf16.mxu0 0
    %4188 = vmatpush1.bf16.msra.mxu0 0
    %4189 = vmatprep.subr.bf16.mxu0 0
    %4190 = vmatpush1.bf16.msra.mxu0 0
    %4191 = vmatprep.subr.bf16.mxu0 0
    %4192 = vmatpush1.bf16.msra.mxu0 0
    %4193 = vmatprep.subr.bf16.mxu0 0
    %4194 = vmatpush1.bf16.msra.mxu0 0
    %4195 = vmatprep.subr.bf16.mxu0 0
    %4196 = vmatpush1.bf16.msra.mxu0 0
    %4197 = vmatprep.subr.bf16.mxu0 0
    %4198 = vmatpush1.bf16.msra.mxu0 0
    %4199 = vmatprep.subr.bf16.mxu0 0
    %4200 = vmatpush1.bf16.msra.mxu0 0
    %4201 = vmatprep.subr.bf16.mxu0 0
    %4202 = vmatpush1.bf16.msra.mxu0 0
    %4203 = vmatprep.mubr.bf16.mxu0 0
    %4204 = vmatmul.mubr.bf16.gmra.mrb[0].mxu0 %v3958
    %v4205 = vpop.f32.mrb[0].mxu0
    %v4206 = vpop.f32.mrb[0].mxu0
    %v4207 = vpop.f32.mrb[0].mxu0
    %v4208 = vpop.f32.mrb[0].mxu0
    %4209 = vmatprep.mubr.bf16.mxu0 0
    %4210 = vmatmul.mubr.bf16.gmra.mrb[0].mxu0 %v3961
    %v4211 = vpop.f32.mrb[0].mxu0
    %v4212 = vadd.f32 0.0, %v4211
    %v4213 = vpop.f32.mrb[0].mxu0
    %v4214 = vpop.f32.mrb[0].mxu0
    %v4215 = vadd.f32 0.0, %v4214
    %v4216 = vpop.f32.mrb[0].mxu0
    %4217 = vmatprep.mubr.bf16.mxu0 0
    %4218 = vmatmul.mubr.bf16.gmra.mrb[0].mxu0 %v3964
    %v4219 = vpop.f32.mrb[0].mxu0
    %v4220 = vadd.f32 0.0, %v4219
    %v4221 = vpop.f32.mrb[0].mxu0
    %v4222 = vpop.f32.mrb[0].mxu0
    %v4223 = vadd.f32 0.0, %v4222
    %v4224 = vpop.f32.mrb[0].mxu0
    %4225 = vmatprep.mubr.bf16.mxu0 0
    %4226 = vmatmul.mubr.bf16.gmra.mrb[0].mxu0 %v3967
    %v4227 = vpop.f32.mrb[0].mxu0
    %v4228 = vadd.f32 0.0, %v4227
    %v4229 = vpop.f32.mrb[0].mxu0
    %v4230 = vpop.f32.mrb[0].mxu0
    %v4231 = vpop.f32.mrb[0].mxu0
    %4232 = vdwg.mxu0
    %v4233 = vld [vmem:[%s4] sm:$0x3]
    %v4235 = vlaneseq
    %v4236 = vshrl.u32 %v4235, 7
    %v4237 = vsub.s32 0, %v4236
    %v4238 = vrot.slane %v4233, %v4237
    %v4239 = vlaneseq
    %v4240 = vshrl.u32 %v4239, 7
    %v4241 = vsub.s32 1, %v4240
    %v4242 = vrot.slane %v4233, %v4241
    %v4245 = vadd.f32 %v4238, %v3727
    %v4246 = vadd.f32 %v4242, %v3729
    %v4247 = vadd.f32 %v4238, %v3731
    %v4248 = vadd.f32 %v4242, %v3733
    %v4249 = vadd.f32 %v4238, %v3737
    %v4250 = vadd.f32 %v4242, %v3739
    %v4251 = vadd.f32 %v4238, %v3741
    %v4252 = vadd.f32 %v4242, %v3743
    %v4253 = vadd.f32 %v4238, %v3747
    %v4254 = vadd.f32 %v4242, %v3749
    %v4255 = vadd.f32 %v4238, %v4004
    %v4256 = vadd.f32 %v4242, %v4006
    %v4257 = vadd.f32 %v4238, %v4008
    %v4258 = vadd.f32 %v4242, %v4010
    %v4259 = vadd.f32 %v4238, %v4014
    %v4260 = vadd.f32 %v4242, %v4016
    %v4261 = vadd.f32 %v4238, %v4018
    %v4262 = vadd.f32 %v4242, %v4020
    %v4263 = vadd.f32 %v4238, %v4024
    %v4264 = vadd.f32 %v4242, %v4026
    %4275 = vrot.lane.b32.xlu0 %v4006, 96
    %v4276 = vpop.permute.xlu0 %4275
    %4277 = vrot.lane.b32.xlu0 %v4071, 96
    %v4278 = vpop.permute.xlu0 %4277
    %4279 = vrot.lane.b32.xlu0 %v4010, 96
    %v4280 = vpop.permute.xlu0 %4279
    %4281 = vrot.lane.b32.xlu0 %v4074, 96
    %v4282 = vpop.permute.xlu0 %4281
    %4283 = vrot.lane.b32.xlu0 %v4016, 96
    %v4284 = vpop.permute.xlu0 %4283
    %4285 = vrot.lane.b32.xlu0 %v4080, 96
    %v4286 = vpop.permute.xlu0 %4285
    %4287 = vrot.lane.b32.xlu0 %v4020, 96
    %v4288 = vpop.permute.xlu0 %4287
    %4289 = vrot.lane.b32.xlu0 %v4084, 96
    %v4290 = vpop.permute.xlu0 %4289
    %4291 = vrot.lane.b32.xlu0 %v4026, 96
    %v4292 = vpop.permute.xlu0 %4291
    %4293 = vrot.lane.b32.xlu0 %v4090, 96
    %v4294 = vpop.permute.xlu0 %4293
    %v4295 = vsel %vm838, %v4276, %v4278
    %v4296 = vsel %vm838, %v4280, %v4282
    %v4297 = vsel %vm838, %v4284, %v4286
    %v4298 = vsel %vm838, %v4288, %v4290
    %v4299 = vsel %vm838, %v4292, %v4294
    %v4310 = vadd.f32 %v4245, %v4295
    %v4311 = vadd.f32 %v4246, %v4278
    %v4312 = vadd.f32 %v4247, %v4296
    %v4313 = vadd.f32 %v4248, %v4282
    %v4314 = vadd.f32 %v4249, %v4297
    %v4315 = vadd.f32 %v4250, %v4286
    %v4316 = vadd.f32 %v4251, %v4298
    %v4317 = vadd.f32 %v4252, %v4290
    %v4318 = vadd.f32 %v4253, %v4299
    %v4319 = vadd.f32 %v4254, %v4294
    %4330 = vrot.lane.b32.xlu0 %v3733, 96
    %v4331 = vpop.permute.xlu0 %4330
    %4332 = vrot.lane.b32.xlu0 %v3797, 96
    %v4333 = vpop.permute.xlu0 %4332
    %4334 = vrot.lane.b32.xlu0 %v3739, 96
    %v4335 = vpop.permute.xlu0 %4334
    %4336 = vrot.lane.b32.xlu0 %v3803, 96
    %v4337 = vpop.permute.xlu0 %4336
    %4338 = vrot.lane.b32.xlu0 %v3743, 96
    %v4339 = vpop.permute.xlu0 %4338
    %4340 = vrot.lane.b32.xlu0 %v3807, 96
    %v4341 = vpop.permute.xlu0 %4340
    %4342 = vrot.lane.b32.xlu0 %v3749, 96
    %v4343 = vpop.permute.xlu0 %4342
    %4344 = vrot.lane.b32.xlu0 %v3813, 96
    %v4345 = vpop.permute.xlu0 %4344
    %4346 = vrot.lane.b32.xlu0 %v3752, 96
    %v4347 = vpop.permute.xlu0 %4346
    %4348 = vrot.lane.b32.xlu0 %v3817, 96
    %v4349 = vpop.permute.xlu0 %4348
    %v4350 = vsel %vm838, %v4331, %v4333
    %v4351 = vsel %vm838, %v4335, %v4337
    %v4352 = vsel %vm838, %v4339, %v4341
    %v4353 = vsel %vm838, %v4343, %v4345
    %v4354 = vsel %vm838, %v4347, %v4349
    %v4365 = vadd.f32 %v4255, %v4350
    %v4366 = vadd.f32 %v4256, %v4333
    %v4367 = vadd.f32 %v4257, %v4351
    %v4368 = vadd.f32 %v4258, %v4337
    %v4369 = vadd.f32 %v4259, %v4352
    %v4370 = vadd.f32 %v4260, %v4341
    %v4371 = vadd.f32 %v4261, %v4353
    %v4372 = vadd.f32 %v4262, %v4345
    %v4373 = vadd.f32 %v4263, %v4354
    %v4374 = vadd.f32 %v4264, %v4349
    %4380 = vrot.lane.b32.xlu0 %v3797, 64
    %v4381 = vpop.permute.xlu0 %4380
    %4382 = vrot.lane.b32.xlu0 %v3799, 64
    %v4383 = vpop.permute.xlu0 %4382
    %4384 = vrot.lane.b32.xlu0 %v3803, 64
    %v4385 = vpop.permute.xlu0 %4384
    %4386 = vrot.lane.b32.xlu0 %v3805, 64
    %v4387 = vpop.permute.xlu0 %4386
    %4388 = vrot.lane.b32.xlu0 %v3807, 64
    %v4389 = vpop.permute.xlu0 %4388
    %4390 = vrot.lane.b32.xlu0 %v3809, 64
    %v4391 = vpop.permute.xlu0 %4390
    %4392 = vrot.lane.b32.xlu0 %v3813, 64
    %v4393 = vpop.permute.xlu0 %4392
    %4394 = vrot.lane.b32.xlu0 %v3815, 64
    %v4395 = vpop.permute.xlu0 %4394
    %4396 = vrot.lane.b32.xlu0 %v3817, 64
    %v4397 = vpop.permute.xlu0 %4396
    %4398 = vrot.lane.b32.xlu0 %v3819, 64
    %v4399 = vpop.permute.xlu0 %4398
    %vm4400 = vcmask 523264
    %v4401 = vsel %vm4400, %v4381, %v4383
    %v4402 = vsel %vm4400, %v4385, %v4387
    %v4403 = vsel %vm4400, %v4389, %v4391
    %v4404 = vsel %vm4400, %v4393, %v4395
    %v4405 = vsel %vm4400, %v4397, %v4399
    %v4416 = vadd.f32 %v4310, %v4401
    %v4417 = vadd.f32 %v4311, %v4383
    %v4418 = vadd.f32 %v4312, %v4402
    %v4419 = vadd.f32 %v4313, %v4387
    %v4420 = vadd.f32 %v4314, %v4403
    %v4421 = vadd.f32 %v4315, %v4391
    %v4422 = vadd.f32 %v4316, %v4404
    %v4423 = vadd.f32 %v4317, %v4395
    %v4424 = vadd.f32 %v4318, %v4405
    %v4425 = vadd.f32 %v4319, %v4399
    %4432 = vrot.lane.b32.xlu0 %v4074, 64
    %v4433 = vpop.permute.xlu0 %4432
    %4434 = vrot.lane.b32.xlu0 %v4076, 64
    %v4435 = vpop.permute.xlu0 %4434
    %4436 = vrot.lane.b32.xlu0 %v4080, 64
    %v4437 = vpop.permute.xlu0 %4436
    %4438 = vrot.lane.b32.xlu0 %v4082, 64
    %v4439 = vpop.permute.xlu0 %4438
    %4440 = vrot.lane.b32.xlu0 %v4084, 64
    %v4441 = vpop.permute.xlu0 %4440
    %4442 = vrot.lane.b32.xlu0 %v4086, 64
    %v4443 = vpop.permute.xlu0 %4442
    %4444 = vrot.lane.b32.xlu0 %v4090, 64
    %v4445 = vpop.permute.xlu0 %4444
    %4446 = vrot.lane.b32.xlu0 %v4092, 64
    %v4447 = vpop.permute.xlu0 %4446
    %4448 = vrot.lane.b32.xlu0 %v4094, 64
    %v4449 = vpop.permute.xlu0 %4448
    %4450 = vrot.lane.b32.xlu0 %v4096, 64
    %v4451 = vpop.permute.xlu0 %4450
    %v4452 = vsel %vm4400, %v4433, %v4435
    %v4453 = vsel %vm4400, %v4437, %v4439
    %v4454 = vsel %vm4400, %v4441, %v4443
    %v4455 = vsel %vm4400, %v4445, %v4447
    %v4456 = vsel %vm4400, %v4449, %v4451
    %v4467 = vadd.f32 %v4365, %v4452
    %v4468 = vadd.f32 %v4366, %v4435
    %v4469 = vadd.f32 %v4367, %v4453
    %v4470 = vadd.f32 %v4368, %v4439
    %v4471 = vadd.f32 %v4369, %v4454
    %v4472 = vadd.f32 %v4370, %v4443
    %v4473 = vadd.f32 %v4371, %v4455
    %v4474 = vadd.f32 %v4372, %v4447
    %v4475 = vadd.f32 %v4373, %v4456
    %v4476 = vadd.f32 %v4374, %v4451
    %4482 = vrot.lane.b32.xlu0 %v4076, 32
    %v4483 = vpop.permute.xlu0 %4482
    %4484 = vrot.lane.b32.xlu0 %v4141, 32
    %v4485 = vpop.permute.xlu0 %4484
    %4486 = vrot.lane.b32.xlu0 %v4082, 32
    %v4487 = vpop.permute.xlu0 %4486
    %4488 = vrot.lane.b32.xlu0 %v4146, 32
    %v4489 = vpop.permute.xlu0 %4488
    %4490 = vrot.lane.b32.xlu0 %v4086, 32
    %v4491 = vpop.permute.xlu0 %4490
    %4492 = vrot.lane.b32.xlu0 %v4150, 32
    %v4493 = vpop.permute.xlu0 %4492
    %4494 = vrot.lane.b32.xlu0 %v4092, 32
    %v4495 = vpop.permute.xlu0 %4494
    %4496 = vrot.lane.b32.xlu0 %v4156, 32
    %v4497 = vpop.permute.xlu0 %4496
    %4498 = vrot.lane.b32.xlu0 %v4096, 32
    %v4499 = vpop.permute.xlu0 %4498
    %4500 = vrot.lane.b32.xlu0 %v4160, 32
    %v4501 = vpop.permute.xlu0 %4500
    %v4502 = vsel %vm480, %v4483, %v4485
    %v4503 = vsel %vm480, %v4487, %v4489
    %v4504 = vsel %vm480, %v4491, %v4493
    %v4505 = vsel %vm480, %v4495, %v4497
    %v4506 = vsel %vm480, %v4499, %v4501
    %v4517 = vadd.f32 %v4416, %v4502
    %v4518 = vadd.f32 %v4417, %v4485
    %v4519 = vadd.f32 %v4418, %v4503
    %v4520 = vadd.f32 %v4419, %v4489
    %v4521 = vadd.f32 %v4420, %v4504
    %v4522 = vadd.f32 %v4421, %v4493
    %v4523 = vadd.f32 %v4422, %v4505
    %v4524 = vadd.f32 %v4423, %v4497
    %v4525 = vadd.f32 %v4424, %v4506
    %v4526 = vadd.f32 %v4425, %v4501
    %4533 = vrot.lane.b32.xlu0 %v3805, 32
    %v4534 = vpop.permute.xlu0 %4533
    %4535 = vrot.lane.b32.xlu0 %v3869, 32
    %v4536 = vpop.permute.xlu0 %4535
    %4537 = vrot.lane.b32.xlu0 %v3809, 32
    %v4538 = vpop.permute.xlu0 %4537
    %4539 = vrot.lane.b32.xlu0 %v3873, 32
    %v4540 = vpop.permute.xlu0 %4539
    %4541 = vrot.lane.b32.xlu0 %v3815, 32
    %v4542 = vpop.permute.xlu0 %4541
    %4543 = vrot.lane.b32.xlu0 %v3879, 32
    %v4544 = vpop.permute.xlu0 %4543
    %4545 = vrot.lane.b32.xlu0 %v3819, 32
    %v4546 = vpop.permute.xlu0 %4545
    %4547 = vrot.lane.b32.xlu0 %v3883, 32
    %v4548 = vpop.permute.xlu0 %4547
    %4549 = vrot.lane.b32.xlu0 %v3824, 32
    %v4550 = vpop.permute.xlu0 %4549
    %4551 = vrot.lane.b32.xlu0 %v3889, 32
    %v4552 = vpop.permute.xlu0 %4551
    %v4553 = vsel %vm480, %v4534, %v4536
    %v4554 = vsel %vm480, %v4538, %v4540
    %v4555 = vsel %vm480, %v4542, %v4544
    %v4556 = vsel %vm480, %v4546, %v4548
    %v4557 = vsel %vm480, %v4550, %v4552
    %v4568 = vadd.f32 %v4467, %v4553
    %v4569 = vadd.f32 %v4468, %v4536
    %v4570 = vadd.f32 %v4469, %v4554
    %v4571 = vadd.f32 %v4470, %v4540
    %v4572 = vadd.f32 %v4471, %v4555
    %v4573 = vadd.f32 %v4472, %v4544
    %v4574 = vadd.f32 %v4473, %v4556
    %v4575 = vadd.f32 %v4474, %v4548
    %v4576 = vadd.f32 %v4475, %v4557
    %v4577 = vadd.f32 %v4476, %v4552
    %v4578 = vadd.f32 %v4517, %v3871
    %v4579 = vadd.f32 %v4518, %v3936
    %v4580 = vadd.f32 %v4519, %v3875
    %v4581 = vadd.f32 %v4520, %v3939
    %v4582 = vadd.f32 %v4521, %v3881
    %v4583 = vadd.f32 %v4522, %v3944
    %v4584 = vadd.f32 %v4523, %v3885
    %v4585 = vadd.f32 %v4524, %v3947
    %v4586 = vadd.f32 %v4525, %v3891
    %v4587 = vadd.f32 %v4526, %v3952
    %v4588 = vadd.f32 %v4568, %v4148
    %v4589 = vadd.f32 %v4569, %v4212
    %v4590 = vadd.f32 %v4570, %v4152
    %v4591 = vadd.f32 %v4571, %v4215
    %v4592 = vadd.f32 %v4572, %v4158
    %v4593 = vadd.f32 %v4573, %v4220
    %v4594 = vadd.f32 %v4574, %v4162
    %v4595 = vadd.f32 %v4575, %v4223
    %v4596 = vadd.f32 %v4576, %v4167
    %v4597 = vadd.f32 %v4577, %v4228
    %v4598 = vtanh.pop %v4578
    %v4599 = vtanh.pop %v4579
    %v4600 = vtanh.pop %v4580
    %v4601 = vtanh.pop %v4581
    %v4602 = vtanh.pop %v4582
    %v4603 = vtanh.pop %v4583
    %v4604 = vtanh.pop %v4584
    %v4605 = vtanh.pop %v4585
    %v4606 = vtanh.pop %v4586
    %v4607 = vtanh.pop %v4587
    %v4608 = vpack.c.bf16 %v4600, %v4598
    %v4609 = vpack.c.bf16 %v4601, %v4599
    %v4610 = vpack.c.bf16 %v4604, %v4602
    %v4611 = vpack.c.bf16 %v4605, %v4603
    %v4612 = vpack.c.bf16 %v4606, %v4606
    %v4613 = vpack.c.bf16 %v4607, %v4607
    %v4614 = vtanh.pop %v4588
    %v4615 = vtanh.pop %v4589
    %v4616 = vtanh.pop %v4590
    %v4617 = vtanh.pop %v4591
    %v4618 = vtanh.pop %v4592
    %v4619 = vtanh.pop %v4593
    %v4620 = vtanh.pop %v4594
    %v4621 = vtanh.pop %v4595
    %v4622 = vtanh.pop %v4596
    %v4623 = vtanh.pop %v4597
    %v4624 = vpack.c.bf16 %v4616, %v4614
    %v4625 = vpack.c.bf16 %v4617, %v4615
    %v4626 = vpack.c.bf16 %v4620, %v4618
    %v4627 = vpack.c.bf16 %v4621, %v4619
    %v4628 = vpack.c.bf16 %v4622, %v4622
    %v4629 = vpack.c.bf16 %v4623, %v4623
    %v4630 = vadd.bf16 %v4608, %v4624
    %v4631 = vadd.bf16 %v4609, %v4625
    %v4632 = vadd.bf16 %v4610, %v4626
    %v4633 = vadd.bf16 %v4611, %v4627
    %v4634 = vadd.bf16 %v4612, %v4628
    %v4635 = vadd.bf16 %v4613, %v4629
    %v4636 = vld [vmem:[#allocation4] sm:$0xf]
    %v4637 = vld [vmem:[#allocation4 + $0x4] sm:$0xf]
    %v4638 = vld [vmem:[#allocation4 + $0x8] sm:$0xf]
    %v4639 = vld [vmem:[#allocation4 + $0xc] sm:$0xf]
    %v4640 = vld [vmem:[#allocation4 + $0x10] sm:$0xf]
    %v4641 = vld [vmem:[#allocation4 + $0x14] sm:$0xf]
    %v4642 = vld [vmem:[#allocation4 + $0x18] sm:$0xf]
    %v4643 = vld [vmem:[#allocation4 + $0x1c] sm:$0xf]
    %v4644 = vld [vmem:[#allocation4 + $0x20] sm:$0xf]
    %v4645 = vld [vmem:[#allocation4 + $0x24] sm:$0xf]
    %v4646 = vld [vmem:[#allocation4 + $0x28] sm:$0xf]
    %v4647 = vld [vmem:[#allocation4 + $0x2c] sm:$0xf]
    %v4648 = vld [vmem:[#allocation4 + $0x30] sm:$0xf]
    %v4649 = vld [vmem:[#allocation4 + $0x34] sm:$0xf]
    %v4650 = vld [vmem:[#allocation4 + $0x38] sm:$0xf]
    %v4651 = vld [vmem:[#allocation4 + $0x3c] sm:$0xf]
    %v4652 = vld [vmem:[#allocation4 + $0x40] sm:$0xf]
    %v4653 = vld [vmem:[#allocation4 + $0x44] sm:$0xf]
    %v4654 = vld [vmem:[#allocation4 + $0x48] sm:$0xf]
    %v4655 = vld [vmem:[#allocation4 + $0x4c] sm:$0xf]
    %v4676 = vunpack.c.l.b16 %v4636
    %v4677 = vunpack.c.l.b16 %v4637
    %v4678 = vunpack.c.l.b16 %v4638
    %v4679 = vunpack.c.l.b16 %v4639
    %v4680 = vunpack.c.l.b16 %v4640
    %v4681 = vunpack.c.l.b16 %v4641
    %v4682 = vunpack.c.l.b16 %v4642
    %v4683 = vunpack.c.l.b16 %v4643
    %v4684 = vunpack.c.l.b16 %v4644
    %v4685 = vunpack.c.l.b16 %v4645
    %v4686 = vunpack.c.l.b16 %v4646
    %v4687 = vunpack.c.l.b16 %v4647
    %v4688 = vunpack.c.l.b16 %v4648
    %v4689 = vunpack.c.l.b16 %v4649
    %v4690 = vunpack.c.l.b16 %v4650
    %v4691 = vunpack.c.l.b16 %v4651
    %v4692 = vunpack.c.l.b16 %v4652
    %v4693 = vunpack.c.l.b16 %v4653
    %v4694 = vunpack.c.l.b16 %v4654
    %v4695 = vunpack.c.l.b16 %v4655
    %v4696 = vpack.c.b16 %v4677, %v4676
    %v4697 = vpack.c.b16 %v4679, %v4678
    %v4698 = vpack.c.b16 %v4681, %v4680
    %v4699 = vpack.c.b16 %v4683, %v4682
    %v4700 = vpack.c.b16 %v4685, %v4684
    %v4701 = vpack.c.b16 %v4687, %v4686
    %v4702 = vpack.c.b16 %v4689, %v4688
    %v4703 = vpack.c.b16 %v4691, %v4690
    %v4704 = vpack.c.b16 %v4693, %v4692
    %v4705 = vpack.c.b16 %v4695, %v4694
    %v4717 = vsel %vm480, %v4631, 0
    %v4720 = vsel %vm480, %v4633, 0
    %v4723 = vsel %vm480, %v4635, 0
    %4725 = vmatprep.subr.bf16.mxu0 0
    %4726 = vmatpush1.bf16.msra.mxu0 %v4696
    %4727 = vmatprep.subr.bf16.mxu0 0
    %4728 = vmatpush1.bf16.msra.mxu0 %v4697
    %4729 = vmatprep.subr.bf16.mxu0 0
    %4730 = vmatpush1.bf16.msra.mxu0 %v4698
    %4731 = vmatprep.subr.bf16.mxu0 0
    %4732 = vmatpush1.bf16.msra.mxu0 %v4699
    %4733 = vmatprep.subr.bf16.mxu0 0
    %4734 = vmatpush1.bf16.msra.mxu0 %v4700
    %4735 = vmatprep.subr.bf16.mxu0 0
    %4736 = vmatpush1.bf16.msra.mxu0 %v4701
    %4737 = vmatprep.subr.bf16.mxu0 0
    %4738 = vmatpush1.bf16.msra.mxu0 %v4702
    %4739 = vmatprep.subr.bf16.mxu0 0
    %4740 = vmatpush1.bf16.msra.mxu0 %v4703
    %4741 = vmatprep.subr.bf16.mxu0 0
    %4742 = vmatpush1.bf16.msra.mxu0 %v4704
    %4743 = vmatprep.subr.bf16.mxu0 0
    %4744 = vmatpush1.bf16.msra.mxu0 %v4705
    %4745 = vmatprep.subr.bf16.mxu0 0
    %4746 = vmatpush1.bf16.msra.mxu0 0
    %4747 = vmatprep.subr.bf16.mxu0 0
    %4748 = vmatpush1.bf16.msra.mxu0 0
    %4749 = vmatprep.subr.bf16.mxu0 0
    %4750 = vmatpush1.bf16.msra.mxu0 0
    %4751 = vmatprep.subr.bf16.mxu0 0
    %4752 = vmatpush1.bf16.msra.mxu0 0
    %4753 = vmatprep.subr.bf16.mxu0 0
    %4754 = vmatpush1.bf16.msra.mxu0 0
    %4755 = vmatprep.subr.bf16.mxu0 0
    %4756 = vmatpush1.bf16.msra.mxu0 0
    %4757 = vmatprep.mubr.bf16.mxu0 %v4717
    %4758 = vmatmul.mubr.bf16.gmra.mrb[0].mxu0 %v4630
    %v4759 = vpop.f32.mrb[0].mxu0
    %v4760 = vadd.f32 0.0, %v4759
    %v4761 = vpop.f32.mrb[0].mxu0
    %v4762 = vpop.f32.mrb[0].mxu0
    %v4763 = vadd.f32 0.0, %v4762
    %v4764 = vpop.f32.mrb[0].mxu0
    %4765 = vmatprep.mubr.bf16.mxu0 %v4720
    %4766 = vmatmul.mubr.bf16.gmra.mrb[0].mxu0 %v4632
    %v4767 = vpop.f32.mrb[0].mxu0
    %v4768 = vadd.f32 0.0, %v4767
    %v4769 = vpop.f32.mrb[0].mxu0
    %v4770 = vpop.f32.mrb[0].mxu0
    %v4771 = vadd.f32 0.0, %v4770
    %v4772 = vpop.f32.mrb[0].mxu0
    %4773 = vmatprep.mubr.bf16.mxu0 %v4723
    %4774 = vmatmul.mubr.bf16.gmra.mrb[0].mxu0 %v4634
    %v4775 = vpop.f32.mrb[0].mxu0
    %v4776 = vadd.f32 0.0, %v4775
    %v4777 = vpop.f32.mrb[0].mxu0
    %v4778 = vpop.f32.mrb[0].mxu0
    %v4779 = vpop.f32.mrb[0].mxu0
    %4780 = vdwg.mxu0
    %v4781 = vpack.c.bf16 %v4763, %v4760
    %v4782 = vpack.c.bf16 %v4771, %v4768
    %v4783 = vpack.c.bf16 %v4776, %v4776
    %v4784 = vld [vmem:[#allocation6] sm:$0x1]
    %v4785 = vld [vmem:[%s6] sm:$0xf]
    %v4786 = vld [vmem:[%s6 + $0x4] sm:$0xf]
    %v4787 = vld [vmem:[%s6 + $0x8] sm:$0xf]
    %v4788 = vld [vmem:[%s6 + $0xc] sm:$0xf]
    %v4789 = vld [vmem:[%s6 + $0x10] sm:$0xf]
    %v4790 = vld [vmem:[%s6 + $0x14] sm:$0xf]
    %v4791 = vld [vmem:[%s6 + $0x18] sm:$0xf]
    %v4792 = vld [vmem:[%s6 + $0x1c] sm:$0xf]
    %v4793 = vld [vmem:[%s6 + $0x20] sm:$0xf]
    %v4794 = vld [vmem:[%s6 + $0x24] sm:$0xf]
    %v4805 = vunpack.c.l.b16 %v4785
    %v4806 = vunpack.c.l.b16 %v4786
    %v4807 = vunpack.c.l.b16 %v4787
    %v4808 = vunpack.c.l.b16 %v4788
    %v4809 = vunpack.c.l.b16 %v4789
    %v4810 = vunpack.c.l.b16 %v4790
    %v4811 = vunpack.c.l.b16 %v4791
    %v4812 = vunpack.c.l.b16 %v4792
    %v4813 = vunpack.c.l.b16 %v4793
    %v4814 = vunpack.c.l.b16 %v4794
    %v4815 = vpack.c.b16 %v4806, %v4805
    %v4816 = vpack.c.b16 %v4808, %v4807
    %v4817 = vpack.c.b16 %v4810, %v4809
    %v4818 = vpack.c.b16 %v4812, %v4811
    %v4819 = vpack.c.b16 %v4814, %v4813
    %vm4825 = vcmask 654336
    %v4827 = vsel %vm4825, %v4781, 0
    %4829 = vmatprep.subr.bf16.mxu0 0
    %4830 = vmatpush1.bf16.msra.mxu0 %v4815
    %4831 = vmatprep.subr.bf16.mxu0 0
    %4832 = vmatpush1.bf16.msra.mxu0 %v4816
    %4833 = vmatprep.subr.bf16.mxu0 0
    %4834 = vmatpush1.bf16.msra.mxu0 %v4817
    %4835 = vmatprep.subr.bf16.mxu0 0
    %4836 = vmatpush1.bf16.msra.mxu0 %v4818
    %4837 = vmatprep.subr.bf16.mxu0 0
    %4838 = vmatpush1.bf16.msra.mxu0 %v4819
    %4839 = vmatprep.subr.bf16.mxu0 0
    %4840 = vmatpush1.bf16.msra.mxu0 0
    %4841 = vmatprep.subr.bf16.mxu0 0
    %4842 = vmatpush1.bf16.msra.mxu0 0
    %4843 = vmatprep.subr.bf16.mxu0 0
    %4844 = vmatpush1.bf16.msra.mxu0 0
    %4845 = vmatprep.subr.bf16.mxu0 0
    %4846 = vmatpush1.bf16.msra.mxu0 0
    %4847 = vmatprep.subr.bf16.mxu0 0
    %4848 = vmatpush1.bf16.msra.mxu0 0
    %4849 = vmatprep.subr.bf16.mxu0 0
    %4850 = vmatpush1.bf16.msra.mxu0 0
    %4851 = vmatprep.subr.bf16.mxu0 0
    %4852 = vmatpush1.bf16.msra.mxu0 0
    %4853 = vmatprep.subr.bf16.mxu0 0
    %4854 = vmatpush1.bf16.msra.mxu0 0
    %4855 = vmatprep.subr.bf16.mxu0 0
    %4856 = vmatpush1.bf16.msra.mxu0 0
    %4857 = vmatprep.subr.bf16.mxu0 0
    %4858 = vmatpush1.bf16.msra.mxu0 0
    %4859 = vmatprep.subr.bf16.mxu0 0
    %4860 = vmatpush1.bf16.msra.mxu0 0
    %4861 = vmatprep.mubr.bf16.mxu0 0
    %4862 = vmatmul.mubr.bf16.gmra.mrb[0].mxu0 %v4827
    %v4863 = vpop.f32.mrb[0].mxu0
    %v4864 = vadd.f32 0.0, %v4863
    %v4865 = vpop.f32.mrb[0].mxu0
    %v4866 = vpop.f32.mrb[0].mxu0
    %v4867 = vpop.f32.mrb[0].mxu0
    %4868 = vdwg.mxu0
    %v4870 = vlaneseq
    %v4871 = vshrl.u32 %v4870, 7
    %v4872 = vsub.s32 0, %v4871
    %v4873 = vrot.slane %v4784, %v4872
    %v4875 = vadd.f32 %v4873, %v4864
    %s4876 = scalar_lea.vmem %s6, 40
    %v4877 = vld [vmem:[%s4876] sm:$0xf]
    %v4878 = vld [vmem:[%s4876 + $0x4] sm:$0xf]
    %v4879 = vld [vmem:[%s4876 + $0x8] sm:$0xf]
    %v4880 = vld [vmem:[%s4876 + $0xc] sm:$0xf]
    %v4881 = vld [vmem:[%s4876 + $0x10] sm:$0xf]
    %v4882 = vld [vmem:[%s4876 + $0x14] sm:$0xf]
    %v4883 = vld [vmem:[%s4876 + $0x18] sm:$0xf]
    %v4884 = vld [vmem:[%s4876 + $0x1c] sm:$0xf]
    %v4885 = vld [vmem:[%s4876 + $0x20] sm:$0xf]
    %v4886 = vld [vmem:[%s4876 + $0x24] sm:$0xf]
    %v4888 = vrot.slane %v4781, 4
    %v4899 = vunpack.c.l.b16 %v4877
    %v4900 = vunpack.c.l.b16 %v4878
    %v4901 = vunpack.c.l.b16 %v4879
    %v4902 = vunpack.c.l.b16 %v4880
    %v4903 = vunpack.c.l.b16 %v4881
    %v4904 = vunpack.c.l.b16 %v4882
    %v4905 = vunpack.c.l.b16 %v4883
    %v4906 = vunpack.c.l.b16 %v4884
    %v4907 = vunpack.c.l.b16 %v4885
    %v4908 = vunpack.c.l.b16 %v4886
    %v4909 = vpack.c.b16 %v4900, %v4899
    %v4910 = vpack.c.b16 %v4902, %v4901
    %v4911 = vpack.c.b16 %v4904, %v4903
    %v4912 = vpack.c.b16 %v4906, %v4905
    %v4913 = vpack.c.b16 %v4908, %v4907
    %v4920 = vsel %vm4825, %v4888, 0
    %4922 = vmatprep.subr.bf16.mxu0 0
    %4923 = vmatpush1.bf16.msra.mxu0 %v4909
    %4924 = vmatprep.subr.bf16.mxu0 0
    %4925 = vmatpush1.bf16.msra.mxu0 %v4910
    %4926 = vmatprep.subr.bf16.mxu0 0
    %4927 = vmatpush1.bf16.msra.mxu0 %v4911
    %4928 = vmatprep.subr.bf16.mxu0 0
    %4929 = vmatpush1.bf16.msra.mxu0 %v4912
    %4930 = vmatprep.subr.bf16.mxu0 0
    %4931 = vmatpush1.bf16.msra.mxu0 %v4913
    %4932 = vmatprep.subr.bf16.mxu0 0
    %4933 = vmatpush1.bf16.msra.mxu0 0
    %4934 = vmatprep.subr.bf16.mxu0 0
    %4935 = vmatpush1.bf16.msra.mxu0 0
    %4936 = vmatprep.subr.bf16.mxu0 0
    %4937 = vmatpush1.bf16.msra.mxu0 0
    %4938 = vmatprep.subr.bf16.mxu0 0
    %4939 = vmatpush1.bf16.msra.mxu0 0
    %4940 = vmatprep.subr.bf16.mxu0 0
    %4941 = vmatpush1.bf16.msra.mxu0 0
    %4942 = vmatprep.subr.bf16.mxu0 0
    %4943 = vmatpush1.bf16.msra.mxu0 0
    %4944 = vmatprep.subr.bf16.mxu0 0
    %4945 = vmatpush1.bf16.msra.mxu0 0
    %4946 = vmatprep.subr.bf16.mxu0 0
    %4947 = vmatpush1.bf16.msra.mxu0 0
    %4948 = vmatprep.subr.bf16.mxu0 0
    %4949 = vmatpush1.bf16.msra.mxu0 0
    %4950 = vmatprep.subr.bf16.mxu0 0
    %4951 = vmatpush1.bf16.msra.mxu0 0
    %4952 = vmatprep.subr.bf16.mxu0 0
    %4953 = vmatpush1.bf16.msra.mxu0 0
    %4954 = vmatprep.mubr.bf16.mxu0 0
    %4955 = vmatmul.mubr.bf16.gmra.mrb[0].mxu0 %v4920
    %v4956 = vpop.f32.mrb[0].mxu0
    %v4957 = vadd.f32 0.0, %v4956
    %v4958 = vpop.f32.mrb[0].mxu0
    %v4959 = vpop.f32.mrb[0].mxu0
    %v4960 = vpop.f32.mrb[0].mxu0
    %4961 = vdwg.mxu0
    %v4962 = vadd.f32 %v4875, %v4957
    %s4963 = scalar_lea.vmem %s6, 80
    %v4964 = vld [vmem:[%s4963] sm:$0xf]
    %v4965 = vld [vmem:[%s4963 + $0x4] sm:$0xf]
    %v4966 = vld [vmem:[%s4963 + $0x8] sm:$0xf]
    %v4967 = vld [vmem:[%s4963 + $0xc] sm:$0xf]
    %v4968 = vld [vmem:[%s4963 + $0x10] sm:$0xf]
    %v4969 = vld [vmem:[%s4963 + $0x14] sm:$0xf]
    %v4970 = vld [vmem:[%s4963 + $0x18] sm:$0xf]
    %v4971 = vld [vmem:[%s4963 + $0x1c] sm:$0xf]
    %v4972 = vld [vmem:[%s4963 + $0x20] sm:$0xf]
    %v4973 = vld [vmem:[%s4963 + $0x24] sm:$0xf]
    %v4984 = vunpack.c.l.b16 %v4964
    %v4985 = vunpack.c.l.b16 %v4965
    %v4986 = vunpack.c.l.b16 %v4966
    %v4987 = vunpack.c.l.b16 %v4967
    %v4988 = vunpack.c.l.b16 %v4968
    %v4989 = vunpack.c.l.b16 %v4969
    %v4990 = vunpack.c.l.b16 %v4970
    %v4991 = vunpack.c.l.b16 %v4971
    %v4992 = vunpack.c.l.b16 %v4972
    %v4993 = vunpack.c.l.b16 %v4973
    %v4994 = vpack.c.b16 %v4985, %v4984
    %v4995 = vpack.c.b16 %v4987, %v4986
    %v4996 = vpack.c.b16 %v4989, %v4988
    %v4997 = vpack.c.b16 %v4991, %v4990
    %v4998 = vpack.c.b16 %v4993, %v4992
    %v5005 = vsel %vm4825, %v4782, 0
    %5007 = vmatprep.subr.bf16.mxu0 0
    %5008 = vmatpush1.bf16.msra.mxu0 %v4994
    %5009 = vmatprep.subr.bf16.mxu0 0
    %5010 = vmatpush1.bf16.msra.mxu0 %v4995
    %5011 = vmatprep.subr.bf16.mxu0 0
    %5012 = vmatpush1.bf16.msra.mxu0 %v4996
    %5013 = vmatprep.subr.bf16.mxu0 0
    %5014 = vmatpush1.bf16.msra.mxu0 %v4997
    %5015 = vmatprep.subr.bf16.mxu0 0
    %5016 = vmatpush1.bf16.msra.mxu0 %v4998
    %5017 = vmatprep.subr.bf16.mxu0 0
    %5018 = vmatpush1.bf16.msra.mxu0 0
    %5019 = vmatprep.subr.bf16.mxu0 0
    %5020 = vmatpush1.bf16.msra.mxu0 0
    %5021 = vmatprep.subr.bf16.mxu0 0
    %5022 = vmatpush1.bf16.msra.mxu0 0
    %5023 = vmatprep.subr.bf16.mxu0 0
    %5024 = vmatpush1.bf16.msra.mxu0 0
    %5025 = vmatprep.subr.bf16.mxu0 0
    %5026 = vmatpush1.bf16.msra.mxu0 0
    %5027 = vmatprep.subr.bf16.mxu0 0
    %5028 = vmatpush1.bf16.msra.mxu0 0
    %5029 = vmatprep.subr.bf16.mxu0 0
    %5030 = vmatpush1.bf16.msra.mxu0 0
    %5031 = vmatprep.subr.bf16.mxu0 0
    %5032 = vmatpush1.bf16.msra.mxu0 0
    %5033 = vmatprep.subr.bf16.mxu0 0
    %5034 = vmatpush1.bf16.msra.mxu0 0
    %5035 = vmatprep.subr.bf16.mxu0 0
    %5036 = vmatpush1.bf16.msra.mxu0 0
    %5037 = vmatprep.subr.bf16.mxu0 0
    %5038 = vmatpush1.bf16.msra.mxu0 0
    %5039 = vmatprep.mubr.bf16.mxu0 0
    %5040 = vmatmul.mubr.bf16.gmra.mrb[0].mxu0 %v5005
    %v5041 = vpop.f32.mrb[0].mxu0
    %v5042 = vadd.f32 0.0, %v5041
    %v5043 = vpop.f32.mrb[0].mxu0
    %v5044 = vpop.f32.mrb[0].mxu0
    %v5045 = vpop.f32.mrb[0].mxu0
    %5046 = vdwg.mxu0
    %v5047 = vadd.f32 %v4962, %v5042
    %s5048 = scalar_lea.vmem %s6, 120
    %v5049 = vld [vmem:[%s5048] sm:$0xf]
    %v5050 = vld [vmem:[%s5048 + $0x4] sm:$0xf]
    %v5051 = vld [vmem:[%s5048 + $0x8] sm:$0xf]
    %v5052 = vld [vmem:[%s5048 + $0xc] sm:$0xf]
    %v5053 = vld [vmem:[%s5048 + $0x10] sm:$0xf]
    %v5054 = vld [vmem:[%s5048 + $0x14] sm:$0xf]
    %v5055 = vld [vmem:[%s5048 + $0x18] sm:$0xf]
    %v5056 = vld [vmem:[%s5048 + $0x1c] sm:$0xf]
    %v5057 = vld [vmem:[%s5048 + $0x20] sm:$0xf]
    %v5058 = vld [vmem:[%s5048 + $0x24] sm:$0xf]
    %v5060 = vrot.slane %v4782, 4
    %v5071 = vunpack.c.l.b16 %v5049
    %v5072 = vunpack.c.l.b16 %v5050
    %v5073 = vunpack.c.l.b16 %v5051
    %v5074 = vunpack.c.l.b16 %v5052
    %v5075 = vunpack.c.l.b16 %v5053
    %v5076 = vunpack.c.l.b16 %v5054
    %v5077 = vunpack.c.l.b16 %v5055
    %v5078 = vunpack.c.l.b16 %v5056
    %v5079 = vunpack.c.l.b16 %v5057
    %v5080 = vunpack.c.l.b16 %v5058
    %v5081 = vpack.c.b16 %v5072, %v5071
    %v5082 = vpack.c.b16 %v5074, %v5073
    %v5083 = vpack.c.b16 %v5076, %v5075
    %v5084 = vpack.c.b16 %v5078, %v5077
    %v5085 = vpack.c.b16 %v5080, %v5079
    %v5092 = vsel %vm4825, %v5060, 0
    %5094 = vmatprep.subr.bf16.mxu0 0
    %5095 = vmatpush1.bf16.msra.mxu0 %v5081
    %5096 = vmatprep.subr.bf16.mxu0 0
    %5097 = vmatpush1.bf16.msra.mxu0 %v5082
    %5098 = vmatprep.subr.bf16.mxu0 0
    %5099 = vmatpush1.bf16.msra.mxu0 %v5083
    %5100 = vmatprep.subr.bf16.mxu0 0
    %5101 = vmatpush1.bf16.msra.mxu0 %v5084
    %5102 = vmatprep.subr.bf16.mxu0 0
    %5103 = vmatpush1.bf16.msra.mxu0 %v5085
    %5104 = vmatprep.subr.bf16.mxu0 0
    %5105 = vmatpush1.bf16.msra.mxu0 0
    %5106 = vmatprep.subr.bf16.mxu0 0
    %5107 = vmatpush1.bf16.msra.mxu0 0
    %5108 = vmatprep.subr.bf16.mxu0 0
    %5109 = vmatpush1.bf16.msra.mxu0 0
    %5110 = vmatprep.subr.bf16.mxu0 0
    %5111 = vmatpush1.bf16.msra.mxu0 0
    %5112 = vmatprep.subr.bf16.mxu0 0
    %5113 = vmatpush1.bf16.msra.mxu0 0
    %5114 = vmatprep.subr.bf16.mxu0 0
    %5115 = vmatpush1.bf16.msra.mxu0 0
    %5116 = vmatprep.subr.bf16.mxu0 0
    %5117 = vmatpush1.bf16.msra.mxu0 0
    %5118 = vmatprep.subr.bf16.mxu0 0
    %5119 = vmatpush1.bf16.msra.mxu0 0
    %5120 = vmatprep.subr.bf16.mxu0 0
    %5121 = vmatpush1.bf16.msra.mxu0 0
    %5122 = vmatprep.subr.bf16.mxu0 0
    %5123 = vmatpush1.bf16.msra.mxu0 0
    %5124 = vmatprep.subr.bf16.mxu0 0
    %5125 = vmatpush1.bf16.msra.mxu0 0
    %5126 = vmatprep.mubr.bf16.mxu0 0
    %5127 = vmatmul.mubr.bf16.gmra.mrb[0].mxu0 %v5092
    %v5128 = vpop.f32.mrb[0].mxu0
    %v5129 = vadd.f32 0.0, %v5128
    %v5130 = vpop.f32.mrb[0].mxu0
    %v5131 = vpop.f32.mrb[0].mxu0
    %v5132 = vpop.f32.mrb[0].mxu0
    %5133 = vdwg.mxu0
    %v5134 = vadd.f32 %v5047, %v5129
    %s5135 = scalar_lea.vmem %s6, 160
    %v5136 = vld [vmem:[%s5135] sm:$0xf]
    %v5137 = vld [vmem:[%s5135 + $0x4] sm:$0xf]
    %v5138 = vld [vmem:[%s5135 + $0x8] sm:$0xf]
    %v5139 = vld [vmem:[%s5135 + $0xc] sm:$0xf]
    %v5140 = vld [vmem:[%s5135 + $0x10] sm:$0xf]
    %v5141 = vld [vmem:[%s5135 + $0x14] sm:$0xf]
    %v5142 = vld [vmem:[%s5135 + $0x18] sm:$0xf]
    %v5143 = vld [vmem:[%s5135 + $0x1c] sm:$0xf]
    %v5144 = vld [vmem:[%s5135 + $0x20] sm:$0xf]
    %v5145 = vld [vmem:[%s5135 + $0x24] sm:$0xf]
    %v5156 = vunpack.c.l.b16 %v5136
    %v5157 = vunpack.c.l.b16 %v5137
    %v5158 = vunpack.c.l.b16 %v5138
    %v5159 = vunpack.c.l.b16 %v5139
    %v5160 = vunpack.c.l.b16 %v5140
    %v5161 = vunpack.c.l.b16 %v5141
    %v5162 = vunpack.c.l.b16 %v5142
    %v5163 = vunpack.c.l.b16 %v5143
    %v5164 = vunpack.c.l.b16 %v5144
    %v5165 = vunpack.c.l.b16 %v5145
    %v5166 = vpack.c.b16 %v5157, %v5156
    %v5167 = vpack.c.b16 %v5159, %v5158
    %v5168 = vpack.c.b16 %v5161, %v5160
    %v5169 = vpack.c.b16 %v5163, %v5162
    %v5170 = vpack.c.b16 %v5165, %v5164
    %v5177 = vsel %vm4825, %v4783, 0
    %5179 = vmatprep.subr.bf16.mxu0 0
    %5180 = vmatpush1.bf16.msra.mxu0 %v5166
    %5181 = vmatprep.subr.bf16.mxu0 0
    %5182 = vmatpush1.bf16.msra.mxu0 %v5167
    %5183 = vmatprep.subr.bf16.mxu0 0
    %5184 = vmatpush1.bf16.msra.mxu0 %v5168
    %5185 = vmatprep.subr.bf16.mxu0 0
    %5186 = vmatpush1.bf16.msra.mxu0 %v5169
    %5187 = vmatprep.subr.bf16.mxu0 0
    %5188 = vmatpush1.bf16.msra.mxu0 %v5170
    %5189 = vmatprep.subr.bf16.mxu0 0
    %5190 = vmatpush1.bf16.msra.mxu0 0
    %5191 = vmatprep.subr.bf16.mxu0 0
    %5192 = vmatpush1.bf16.msra.mxu0 0
    %5193 = vmatprep.subr.bf16.mxu0 0
    %5194 = vmatpush1.bf16.msra.mxu0 0
    %5195 = vmatprep.subr.bf16.mxu0 0
    %5196 = vmatpush1.bf16.msra.mxu0 0
    %5197 = vmatprep.subr.bf16.mxu0 0
    %5198 = vmatpush1.bf16.msra.mxu0 0
    %5199 = vmatprep.subr.bf16.mxu0 0
    %5200 = vmatpush1.bf16.msra.mxu0 0
    %5201 = vmatprep.subr.bf16.mxu0 0
    %5202 = vmatpush1.bf16.msra.mxu0 0
    %5203 = vmatprep.subr.bf16.mxu0 0
    %5204 = vmatpush1.bf16.msra.mxu0 0
    %5205 = vmatprep.subr.bf16.mxu0 0
    %5206 = vmatpush1.bf16.msra.mxu0 0
    %5207 = vmatprep.subr.bf16.mxu0 0
    %5208 = vmatpush1.bf16.msra.mxu0 0
    %5209 = vmatprep.subr.bf16.mxu0 0
    %5210 = vmatpush1.bf16.msra.mxu0 0
    %5211 = vmatprep.mubr.bf16.mxu0 0
    %5212 = vmatmul.mubr.bf16.gmra.mrb[0].mxu0 %v5177
    %v5213 = vpop.f32.mrb[0].mxu0
    %v5214 = vadd.f32 0.0, %v5213
    %v5215 = vpop.f32.mrb[0].mxu0
    %v5216 = vpop.f32.mrb[0].mxu0
    %v5217 = vpop.f32.mrb[0].mxu0
    %5218 = vdwg.mxu0
    %v5219 = vadd.f32 %v5134, %v5214
    %v5220 = vtanh.pop %v5219
    %v5221 = vpack.c.bf16 %v5220, %v5220
    %v5222 = vld [vmem:[%s8] sm:$0xf]
    %v5223 = vld [vmem:[%s8 + $0x4] sm:$0xf]
    %v5224 = vld [vmem:[%s8 + $0x8] sm:$0xf]
    %v5225 = vld [vmem:[%s8 + $0xc] sm:$0xf]
    %v5226 = vld [vmem:[%s8 + $0x10] sm:$0xf]
    %v5227 = vld [vmem:[%s8 + $0x14] sm:$0xf]
    %v5228 = vld [vmem:[%s8 + $0x18] sm:$0xf]
    %v5229 = vld [vmem:[%s8 + $0x1c] sm:$0xf]
    %v5230 = vld [vmem:[%s8 + $0x20] sm:$0xf]
    %v5231 = vld [vmem:[%s8 + $0x24] sm:$0xf]
    %v5232 = vld [vmem:[%s8 + $0x28] sm:$0xf]
    %v5233 = vld [vmem:[%s8 + $0x2c] sm:$0xf]
    %v5234 = vld [vmem:[%s8 + $0x30] sm:$0xf]
    %v5235 = vld [vmem:[%s8 + $0x34] sm:$0xf]
    %v5236 = vld [vmem:[%s8 + $0x38] sm:$0xf]
    %v5237 = vld [vmem:[#allocation7] sm:$0x1]
    %v5239 = vlaneseq
    %v5240 = vshrl.u32 %v5239, 7
    %v5241 = vsub.s32 0, %v5240
    %v5242 = vrot.slane %v5237, %v5241
    %v5259 = vunpack.c.l.b16 %v5222
    %v5260 = vunpack.c.l.b16 %v5223
    %v5261 = vunpack.c.l.b16 %v5224
    %v5262 = vunpack.c.l.b16 %v5225
    %v5263 = vunpack.c.l.b16 %v5226
    %v5264 = vunpack.c.l.b16 %v5227
    %v5265 = vunpack.c.l.b16 %v5228
    %v5266 = vunpack.c.l.b16 %v5229
    %v5267 = vunpack.c.l.b16 %v5230
    %v5268 = vunpack.c.l.b16 %v5231
    %v5269 = vunpack.c.l.b16 %v5232
    %v5270 = vunpack.c.l.b16 %v5233
    %v5271 = vunpack.c.l.b16 %v5234
    %v5272 = vunpack.c.l.b16 %v5235
    %v5273 = vunpack.c.l.b16 %v5236
    %v5274 = vpack.c.b16 %v5260, %v5259
    %v5275 = vpack.c.b16 %v5262, %v5261
    %v5276 = vpack.c.b16 %v5264, %v5263
    %v5277 = vpack.c.b16 %v5266, %v5265
    %v5278 = vpack.c.b16 %v5268, %v5267
    %v5279 = vpack.c.b16 %v5270, %v5269
    %v5280 = vpack.c.b16 %v5272, %v5271
    %v5281 = vpack.c.b16 %v5273, %v5273
    %vm5289 = vcmask 982016
    %v5291 = vsel %vm5289, %v5221, 0
    %v5294 = vsel %vm3255, %v5281, 0
    %5296 = vmatprep.subr.bf16.mxu0 0
    %5297 = vmatpush1.bf16.msra.mxu0 %v5274
    %5298 = vmatprep.subr.bf16.mxu0 0
    %5299 = vmatpush1.bf16.msra.mxu0 %v5275
    %5300 = vmatprep.subr.bf16.mxu0 0
    %5301 = vmatpush1.bf16.msra.mxu0 %v5276
    %5302 = vmatprep.subr.bf16.mxu0 0
    %5303 = vmatpush1.bf16.msra.mxu0 %v5277
    %5304 = vmatprep.subr.bf16.mxu0 0
    %5305 = vmatpush1.bf16.msra.mxu0 %v5278
    %5306 = vmatprep.subr.bf16.mxu0 0
    %5307 = vmatpush1.bf16.msra.mxu0 %v5279
    %5308 = vmatprep.subr.bf16.mxu0 0
    %5309 = vmatpush1.bf16.msra.mxu0 %v5280
    %5310 = vmatprep.subr.bf16.mxu0 0
    %5311 = vmatpush1.bf16.msra.mxu0 %v5294
    %5312 = vmatprep.subr.bf16.mxu0 0
    %5313 = vmatpush1.bf16.msra.mxu0 0
    %5314 = vmatprep.subr.bf16.mxu0 0
    %5315 = vmatpush1.bf16.msra.mxu0 0
    %5316 = vmatprep.subr.bf16.mxu0 0
    %5317 = vmatpush1.bf16.msra.mxu0 0
    %5318 = vmatprep.subr.bf16.mxu0 0
    %5319 = vmatpush1.bf16.msra.mxu0 0
    %5320 = vmatprep.subr.bf16.mxu0 0
    %5321 = vmatpush1.bf16.msra.mxu0 0
    %5322 = vmatprep.subr.bf16.mxu0 0
    %5323 = vmatpush1.bf16.msra.mxu0 0
    %5324 = vmatprep.subr.bf16.mxu0 0
    %5325 = vmatpush1.bf16.msra.mxu0 0
    %5326 = vmatprep.subr.bf16.mxu0 0
    %5327 = vmatpush1.bf16.msra.mxu0 0
    %5328 = vmatprep.mubr.bf16.mxu0 0
    %5329 = vmatmul.mubr.bf16.gmra.mrb[0].mxu0 %v5291
    %v5330 = vpop.f32.mrb[0].mxu0
    %v5331 = vadd.f32 %v5242, %v5330
    %v5332 = vpop.f32.mrb[0].mxu0
    %v5333 = vpop.f32.mrb[0].mxu0
    %v5334 = vpop.f32.mrb[0].mxu0
    %5335 = vdwg.mxu0
    %v5336 = vtanh.pop %v5331
    %v5337 = vpack.c.bf16 %v5336, %v5336
    %v5338 = vld [vmem:[#allocation9] sm:$0xf]
    %v5339 = vld [vmem:[#allocation9 + $0x4] sm:$0xf]
    %v5340 = vld [vmem:[#allocation9 + $0x8] sm:$0xf]
    %v5341 = vld [vmem:[#allocation9 + $0xc] sm:$0xf]
    %v5342 = vld [vmem:[#allocation9 + $0x10] sm:$0xf]
    %v5343 = vld [vmem:[#allocation9 + $0x14] sm:$0xf]
    %v5344 = vld [vmem:[#allocation9 + $0x18] sm:$0xf]
    %v5345 = vld [vmem:[#allocation9 + $0x1c] sm:$0xf]
    %v5346 = vld [vmem:[#allocation9 + $0x20] sm:$0xf]
    %v5347 = vld [vmem:[#allocation9 + $0x24] sm:$0xf]
    %v5348 = vld [vmem:[#allocation9 + $0x28] sm:$0x3]
    %v5349 = vld [vmem:[%s11] sm:$0x1]
    %v5351 = vlaneseq
    %v5352 = vshrl.u32 %v5351, 7
    %v5353 = vsub.s32 0, %v5352
    %v5354 = vrot.slane %v5349, %v5353
    %v5367 = vunpack.c.l.b16 %v5338
    %v5368 = vunpack.c.l.b16 %v5339
    %v5369 = vunpack.c.l.b16 %v5340
    %v5370 = vunpack.c.l.b16 %v5341
    %v5371 = vunpack.c.l.b16 %v5342
    %v5372 = vunpack.c.l.b16 %v5343
    %v5373 = vunpack.c.l.b16 %v5344
    %v5374 = vunpack.c.l.b16 %v5345
    %v5375 = vunpack.c.l.b16 %v5346
    %v5376 = vunpack.c.l.b16 %v5347
    %v5377 = vunpack.c.l.b16 %v5348
    %v5378 = vpack.c.b16 %v5368, %v5367
    %v5379 = vpack.c.b16 %v5370, %v5369
    %v5380 = vpack.c.b16 %v5372, %v5371
    %v5381 = vpack.c.b16 %v5374, %v5373
    %v5382 = vpack.c.b16 %v5376, %v5375
    %v5383 = vpack.c.b16 %v5377, %v5377
    %v5390 = vsel %vm3657, %v5337, 0
    %v5393 = vsel %vm3670, %v5383, 0
    %5395 = vmatprep.subr.bf16.mxu0 0
    %5396 = vmatpush1.bf16.msra.mxu0 %v5378
    %5397 = vmatprep.subr.bf16.mxu0 0
    %5398 = vmatpush1.bf16.msra.mxu0 %v5379
    %5399 = vmatprep.subr.bf16.mxu0 0
    %5400 = vmatpush1.bf16.msra.mxu0 %v5380
    %5401 = vmatprep.subr.bf16.mxu0 0
    %5402 = vmatpush1.bf16.msra.mxu0 %v5381
    %5403 = vmatprep.subr.bf16.mxu0 0
    %5404 = vmatpush1.bf16.msra.mxu0 %v5382
    %5405 = vmatprep.subr.bf16.mxu0 0
    %5406 = vmatpush1.bf16.msra.mxu0 %v5393
    %5407 = vmatprep.subr.bf16.mxu0 0
    %5408 = vmatpush1.bf16.msra.mxu0 0
    %5409 = vmatprep.subr.bf16.mxu0 0
    %5410 = vmatpush1.bf16.msra.mxu0 0
    %5411 = vmatprep.subr.bf16.mxu0 0
    %5412 = vmatpush1.bf16.msra.mxu0 0
    %5413 = vmatprep.subr.bf16.mxu0 0
    %5414 = vmatpush1.bf16.msra.mxu0 0
    %5415 = vmatprep.subr.bf16.mxu0 0
    %5416 = vmatpush1.bf16.msra.mxu0 0
    %5417 = vmatprep.subr.bf16.mxu0 0
    %5418 = vmatpush1.bf16.msra.mxu0 0
    %5419 = vmatprep.subr.bf16.mxu0 0
    %5420 = vmatpush1.bf16.msra.mxu0 0
    %5421 = vmatprep.subr.bf16.mxu0 0
    %5422 = vmatpush1.bf16.msra.mxu0 0
    %5423 = vmatprep.subr.bf16.mxu0 0
    %5424 = vmatpush1.bf16.msra.mxu0 0
    %5425 = vmatprep.subr.bf16.mxu0 0
    %5426 = vmatpush1.bf16.msra.mxu0 0
    %5427 = vmatprep.mubr.bf16.mxu0 0
    %5428 = vmatmul.mubr.bf16.gmra.mrb[0].mxu0 %v5390
    %v5429 = vpop.f32.mrb[0].mxu0
    %v5430 = vadd.f32 %v5354, %v5429
    %v5431 = vpop.f32.mrb[0].mxu0
    %v5432 = vpop.f32.mrb[0].mxu0
    %v5433 = vpop.f32.mrb[0].mxu0
    %5434 = vdwg.mxu0
    %5435 = vst [vmem:[%s13] sm:$0xff] %v5430
    // Predicated region
    $region74: #{_forward_impl.2} parent=1 // pred_check
      _
    $region75: #{_forward_impl.2} parent=1 // pred_check_branch
      %5437 = sbr.rel (0) target = $region77
    $region76: #{_forward_impl.2} parent=1 // pred_region
      _
    $region77: #{_forward_impl.2} parent=1 // pred_fallthru
      _
    // Predicated region
    $region78: #{_forward_impl.2} parent=1 // pred_check
      _
    $region79: #{_forward_impl.2} parent=1 // pred_check_branch
      %5439 = sbr.rel (0) target = $region81
    $region80: #{_forward_impl.2} parent=1 // pred_region
      _
    $region81: #{_forward_impl.2} parent=1 // pred_fallthru
      _
    %5440 = vsyncpa [#allocation3], 1
    %5441 = vsyncpa [#allocation5], 1
    %5442 = vsyncpa [#allocation8], 1

</llo_original>
